<compile_context>
chip_gen: v7x
topology: tpu7x:2x2x1
jax: 0.10.0
libtpu: 0.0.40
codegen_flags: <defaults>
</compile_context>

<pallas_src>
import functools

import jax
import jax.numpy as jnp
from jax.experimental import pallas as pl
from jax.experimental.pallas import tpu as pltpu


# ----------------------------------------------------------------------------
# Fused Pallas kernel
# ----------------------------------------------------------------------------
def _fused_bilstm_kernel(seq_ref, emb_ref, *refs,
                         num_layers, hidden, seq_len, batch):
    """Fused embedding + BiLSTM stack + global max-pool + FC.

    refs layout (L = num_layers):
      refs[0 : 6*L]            per-layer weights (w_ih_f, w_hh_f, b_f,
                                                  w_ih_b, w_hh_b, b_b) * L
                               gate columns pre-permuted to (i, f, o, g);
                               w_hh_* pre-cast to bf16.
      refs[6*L], refs[6*L+1]   w_fc (2H, H), b_fc (1, H)
      refs[6*L+2]              o_ref (B, H)                      [output]
    """
    H, L, T, B = hidden, num_layers, seq_len, batch
    w = refs[:6 * L]
    w_fc_ref = refs[6 * L]
    b_fc_ref = refs[6 * L + 1]
    o_ref = refs[6 * L + 2]

    V, E = emb_ref.shape

    # ---- Fused embedding lookup: one-hot (T*B, V) @ (V, E) on the MXU. ----
    ids = seq_ref[...]                                        # (T*B, 1) int32
    iota = jax.lax.broadcasted_iota(jnp.int32, (T * B, V), 1)
    onehot = jnp.where(ids == iota, 1.0, 0.0)                 # (T*B, V) f32
    x_flat = jnp.dot(onehot, emb_ref[...],
                     preferred_element_type=jnp.float32)      # (T*B, E)

    def bilstm_layer(gx_f, gx_b, w_hh_f, w_hh_b, *, collect):
        """Interleaved fwd/bwd recurrence, fully unrolled.

        gx_* are (T*B, 4H) time-major flat with gate order (i, f, o, g).
        Returns (hs_f, hs_b) lists if collect, else running-max (m_f, m_b).
        """
        h_f = jnp.zeros((B, H), jnp.float32)
        c_f = jnp.zeros((B, H), jnp.float32)
        h_b = jnp.zeros((B, H), jnp.float32)
        c_b = jnp.zeros((B, H), jnp.float32)
        hs_f = [None] * T
        hs_b = [None] * T
        m_f = m_b = None
        for s in range(T):
            t_f = s
            t_b = T - 1 - s
            # Two independent recurrent matmuls issued back-to-back
            # (bf16 operands, f32 accumulation) -> latencies overlap.
            gates_f = (gx_f[t_f * B:(t_f + 1) * B, :]
                       + jnp.dot(h_f.astype(w_hh_f.dtype), w_hh_f,
                                 preferred_element_type=jnp.float32))
            gates_b = (gx_b[t_b * B:(t_b + 1) * B, :]
                       + jnp.dot(h_b.astype(w_hh_b.dtype), w_hh_b,
                                 preferred_element_type=jnp.float32))
            # Gate order (i, f, o, g): one 3H sigmoid + one H tanh per dir.
            sg_f = jax.nn.sigmoid(gates_f[:, :3 * H])
            g_f = jnp.tanh(gates_f[:, 3 * H:])
            sg_b = jax.nn.sigmoid(gates_b[:, :3 * H])
            g_b = jnp.tanh(gates_b[:, 3 * H:])

            c_f = sg_f[:, H:2 * H] * c_f + sg_f[:, :H] * g_f
            c_b = sg_b[:, H:2 * H] * c_b + sg_b[:, :H] * g_b
            h_f = sg_f[:, 2 * H:3 * H] * jnp.tanh(c_f)
            h_b = sg_b[:, 2 * H:3 * H] * jnp.tanh(c_b)

            if collect:
                hs_f[t_f] = h_f
                hs_b[t_b] = h_b
            else:
                m_f = h_f if m_f is None else jnp.maximum(m_f, h_f)
                m_b = h_b if m_b is None else jnp.maximum(m_b, h_b)
        if collect:
            return hs_f, hs_b
        return m_f, m_b

    # layer_in: (T*B, E) for layer 0, (T*B, 2H) for later layers; time-major.
    layer_in = x_flat
    m_f = m_b = None
    for l in range(L):
        w_ih_f = w[6 * l + 0][...]
        w_hh_f = w[6 * l + 1][...]          # bf16
        b_f = w[6 * l + 2][...]
        w_ih_b = w[6 * l + 3][...]
        w_hh_b = w[6 * l + 4][...]          # bf16
        b_b = w[6 * l + 5][...]

        # Hoisted input projection: one batched matmul per direction (no
        # recurrence dependence); serial path carries only the h @ w_hh step.
        gx_f = jnp.dot(layer_in, w_ih_f,
                       preferred_element_type=jnp.float32) + b_f
        gx_b = jnp.dot(layer_in, w_ih_b,
                       preferred_element_type=jnp.float32) + b_b

        if l < L - 1:
            hs_f, hs_b = bilstm_layer(gx_f, gx_b, w_hh_f, w_hh_b,
                                      collect=True)
            # Inter-layer activations stay in vregs; next layer gets one
            # (T*B, 2H) lane-concatenated input (single K=2H matmul per dir).
            layer_in = jnp.concatenate(
                [jnp.concatenate(hs_f, axis=0),
                 jnp.concatenate(hs_b, axis=0)], axis=1)
        else:
            m_f, m_b = bilstm_layer(gx_f, gx_b, w_hh_f, w_hh_b,
                                    collect=False)

    # Global max over time already folded into (m_f, m_b); fused FC.
    m = jnp.concatenate([m_f, m_b], axis=1)                   # (B, 2H)
    out = (jnp.dot(m, w_fc_ref[...], preferred_element_type=jnp.float32)
           + b_fc_ref[...])
    o_ref[...] = out.astype(o_ref.dtype)


# ----------------------------------------------------------------------------
# Wrapper
# ----------------------------------------------------------------------------
def bilstm_kmer_branch(sequences, params):
    """Forward pass equivalent to BiLSTMKmerBranch.forward (eval mode)."""
    layers = params["lstm_layers"]
    L = len(layers)
    B, T = sequences.shape
    H = layers[0]["w_hh_f"].shape[0]

    # Time-major flattened ids (row = t*B + b) so the fused embedding matmul
    # directly yields time-major flat activations for layer 0.
    seq_tm = sequences.T.reshape(T * B, 1).astype(jnp.int32)

    def reorder_gates(a):
        # PyTorch gate order (i, f, g, o) -> kernel order (i, f, o, g) so the
        # kernel runs one contiguous 3H sigmoid + one H tanh per direction.
        # (In production these permutations would be baked into the params.)
        return jnp.concatenate(
            [a[..., :2 * H], a[..., 3 * H:4 * H], a[..., 2 * H:3 * H]],
            axis=-1)

    inputs = [seq_tm, params["embedding"].astype(jnp.float32)]
    for lyr in layers:
        inputs += [
            reorder_gates(lyr["w_ih_f"]).astype(jnp.float32),
            reorder_gates(lyr["w_hh_f"]).astype(jnp.bfloat16),   # MXU operand
            reorder_gates(lyr["b_f"]).astype(jnp.float32),
            reorder_gates(lyr["w_ih_b"]).astype(jnp.float32),
            reorder_gates(lyr["w_hh_b"]).astype(jnp.bfloat16),   # MXU operand
            reorder_gates(lyr["b_b"]).astype(jnp.float32),
        ]
    inputs += [params["w_fc"].astype(jnp.float32),
               params["b_fc"].astype(jnp.float32)]

    kernel = functools.partial(_fused_bilstm_kernel, num_layers=L, hidden=H,
                               seq_len=T, batch=B)
    return pl.pallas_call(
        kernel,
        out_shape=jax.ShapeDtypeStruct((B, H), jnp.float32),
        in_specs=[pl.BlockSpec(memory_space=pltpu.MemorySpace.VMEM)]
        * len(inputs),
        out_specs=pl.BlockSpec(memory_space=pltpu.MemorySpace.VMEM),
    )(*inputs)


# ----------------------------------------------------------------------------
# Pure-JAX reference (for validation, f32 end-to-end, PyTorch gate order)
# ----------------------------------------------------------------------------
def _lstm_direction_ref(x_tbd, w_ih, w_hh, bias, *, reverse):
    _, B, _ = x_tbd.shape
    H = w_hh.shape[0]
    xs = x_tbd[::-1] if reverse else x_tbd

    def step(carry, x_t):
        h, c = carry
        gates = x_t @ w_ih + h @ w_hh + bias
        i, f, g, o = jnp.split(gates, 4, axis=-1)
        i, f, o = jax.nn.sigmoid(i), jax.nn.sigmoid(f), jax.nn.sigmoid(o)
        g = jnp.tanh(g)
        c = f * c + i * g
        h = o * jnp.tanh(c)
        return (h, c), h

    init = (jnp.zeros((B, H), jnp.float32), jnp.zeros((B, H), jnp.float32))
    _, ys = jax.lax.scan(step, init, xs)
    return ys[::-1] if reverse else ys


def bilstm_kmer_branch_ref(sequences, params):
    emb = jnp.take(params["embedding"], sequences, axis=0)
    x = jnp.transpose(emb, (1, 0, 2)).astype(jnp.float32)
    for layer in params["lstm_layers"]:
        y_f = _lstm_direction_ref(
            x, layer["w_ih_f"], layer["w_hh_f"], layer["b_f"], reverse=False)
        y_b = _lstm_direction_ref(
            x, layer["w_ih_b"], layer["w_hh_b"], layer["b_b"], reverse=True)
        x = jnp.concatenate([y_f, y_b], axis=-1)
    pooled = jnp.max(x, axis=0)
    return pooled @ params["w_fc"] + params["b_fc"]


# ----------------------------------------------------------------------------
# Deterministic parameter construction
# ----------------------------------------------------------------------------
def make_params(key, vocab_size, hidden_dim, embed_dim, num_layers):
    keys = jax.random.split(key, 2 + num_layers)

    emb = 0.1 * jax.random.normal(
        keys[0], (vocab_size, embed_dim), dtype=jnp.float32)
    emb = emb.at[vocab_size - 1].set(0.0)   # padding_idx row is zero

    layers = []
    din = embed_dim
    for l in range(num_layers):
        lk = jax.random.split(keys[1 + l], 8)
        scale = 0.1
        layer = {
            "w_ih_f": scale * jax.random.normal(lk[0], (din, 4 * hidden_dim)),
            "w_hh_f": scale * jax.random.normal(lk[1], (hidden_dim, 4 * hidden_dim)),
            "b_f":    scale * jax.random.normal(lk[2], (1, 4 * hidden_dim)),
            "w_ih_b": scale * jax.random.normal(lk[3], (din, 4 * hidden_dim)),
            "w_hh_b": scale * jax.random.normal(lk[4], (hidden_dim, 4 * hidden_dim)),
            "b_b":    scale * jax.random.normal(lk[5], (1, 4 * hidden_dim)),
        }
        layer = {k: v.astype(jnp.float32) for k, v in layer.items()}
        layers.append(layer)
        din = 2 * hidden_dim

    w_fc = 0.1 * jax.random.normal(
        keys[-1], (2 * hidden_dim, hidden_dim), dtype=jnp.float32)
    b_fc = jnp.zeros((1, hidden_dim), dtype=jnp.float32)

    return {
        "embedding": emb,
        "lstm_layers": layers,
        "w_fc": w_fc,
        "b_fc": b_fc,
    }


# ----------------------------------------------------------------------------
if __name__ == "__main__":
    VOCAB = 16
    HIDDEN = 32
    EMBED = 128
    LAYERS = 2
    B, T = 2, 8

    key = jax.random.PRNGKey(0)
    k_seq, k_par = jax.random.split(key)

    sequences = jax.random.randint(k_seq, (B, T), 0, VOCAB, dtype=jnp.int32)
    params = make_params(k_par, VOCAB, HIDDEN, EMBED, LAYERS)

    fwd = jax.jit(bilstm_kmer_branch)
    out = jax.block_until_ready(fwd(sequences, params))
    assert out.shape == (B, HIDDEN), out.shape

    ref = jax.block_until_ready(bilstm_kmer_branch_ref(sequences, params))
    # Tolerance loosened vs. a pure-f32 kernel: the recurrent h @ w_hh matmul
    # uses bf16 operands (f32 accumulation) per the perf review.
    assert jnp.allclose(out, ref, atol=2e-2, rtol=2e-2), (
        float(jnp.max(jnp.abs(out - ref))))

    print("KERNEL_OK")
</pallas_src>

<mosaic_0001>
module attributes {stable_mosaic.version = 11 : i64} {
  func.func @_fused_bilstm_kernel(%arg0: memref<16x1xi32, #tpu.memory_space<vmem>>, %arg1: memref<16x128xf32, #tpu.memory_space<vmem>>, %arg2: memref<128x128xf32, #tpu.memory_space<vmem>>, %arg3: memref<32x128xbf16, #tpu.memory_space<vmem>>, %arg4: memref<1x128xf32, #tpu.memory_space<vmem>>, %arg5: memref<128x128xf32, #tpu.memory_space<vmem>>, %arg6: memref<32x128xbf16, #tpu.memory_space<vmem>>, %arg7: memref<1x128xf32, #tpu.memory_space<vmem>>, %arg8: memref<64x128xf32, #tpu.memory_space<vmem>>, %arg9: memref<32x128xbf16, #tpu.memory_space<vmem>>, %arg10: memref<1x128xf32, #tpu.memory_space<vmem>>, %arg11: memref<64x128xf32, #tpu.memory_space<vmem>>, %arg12: memref<32x128xbf16, #tpu.memory_space<vmem>>, %arg13: memref<1x128xf32, #tpu.memory_space<vmem>>, %arg14: memref<64x32xf32, #tpu.memory_space<vmem>>, %arg15: memref<1x32xf32, #tpu.memory_space<vmem>>, %arg16: memref<2x32xf32, #tpu.memory_space<vmem>>) attributes {dimension_semantics = [], scalar_prefetch = 0 : i64, scratch_operands = 0 : i64, tpu.core_type = #tpu.core_type<tc>} {
    %c0 = arith.constant 0 : index
    %c0_0 = arith.constant 0 : index
    %0 = vector.load %arg0[%c0, %c0_0] : memref<16x1xi32, #tpu.memory_space<vmem>>, vector<16x1xi32>
    %1 = tpu.iota {dimensions = array<i32: 1>} : vector<16x16xi32>
    %2 = vector.broadcast %0 : vector<16x1xi32> to vector<16x16xi32>
    %3 = arith.cmpi eq, %2, %1 : vector<16x16xi32>
    %cst = arith.constant 1.000000e+00 : f32
    %cst_1 = arith.constant 0.000000e+00 : f32
    %4 = vector.broadcast %cst : f32 to vector<16x16xf32>
    %5 = vector.broadcast %cst_1 : f32 to vector<16x16xf32>
    %6 = arith.select %3, %4, %5 : vector<16x16xi1>, vector<16x16xf32>
    %c0_2 = arith.constant 0 : index
    %c0_3 = arith.constant 0 : index
    %7 = vector.load %arg1[%c0_2, %c0_3] : memref<16x128xf32, #tpu.memory_space<vmem>>, vector<16x128xf32>
    %cst_4 = arith.constant dense<0.000000e+00> : vector<16x128xf32>
    %8 = tpu.matmul %6, %7, %cst_4 {dimension_numbers = #tpu.dot_dimension_numbers<[1], [0], [0], [1], [0, 0, 1, 1], [], []>} : vector<16x16xf32>, vector<16x128xf32>, vector<16x128xf32> -> vector<16x128xf32>
    %c0_5 = arith.constant 0 : index
    %c0_6 = arith.constant 0 : index
    %9 = vector.load %arg2[%c0_5, %c0_6] : memref<128x128xf32, #tpu.memory_space<vmem>>, vector<128x128xf32>
    %c0_7 = arith.constant 0 : index
    %c0_8 = arith.constant 0 : index
    %10 = vector.load %arg3[%c0_7, %c0_8] : memref<32x128xbf16, #tpu.memory_space<vmem>>, vector<32x128xbf16>
    %c0_9 = arith.constant 0 : index
    %c0_10 = arith.constant 0 : index
    %11 = vector.load %arg4[%c0_9, %c0_10] : memref<1x128xf32, #tpu.memory_space<vmem>>, vector<1x128xf32>
    %c0_11 = arith.constant 0 : index
    %c0_12 = arith.constant 0 : index
    %12 = vector.load %arg5[%c0_11, %c0_12] : memref<128x128xf32, #tpu.memory_space<vmem>>, vector<128x128xf32>
    %c0_13 = arith.constant 0 : index
    %c0_14 = arith.constant 0 : index
    %13 = vector.load %arg6[%c0_13, %c0_14] : memref<32x128xbf16, #tpu.memory_space<vmem>>, vector<32x128xbf16>
    %c0_15 = arith.constant 0 : index
    %c0_16 = arith.constant 0 : index
    %14 = vector.load %arg7[%c0_15, %c0_16] : memref<1x128xf32, #tpu.memory_space<vmem>>, vector<1x128xf32>
    %cst_17 = arith.constant dense<0.000000e+00> : vector<16x128xf32>
    %15 = tpu.matmul %8, %9, %cst_17 {dimension_numbers = #tpu.dot_dimension_numbers<[1], [0], [0], [1], [0, 0, 1, 1], [], []>} : vector<16x128xf32>, vector<128x128xf32>, vector<16x128xf32> -> vector<16x128xf32>
    %16 = vector.broadcast %11 : vector<1x128xf32> to vector<16x128xf32>
    %17 = arith.addf %15, %16 : vector<16x128xf32>
    %cst_18 = arith.constant dense<0.000000e+00> : vector<16x128xf32>
    %18 = tpu.matmul %8, %12, %cst_18 {dimension_numbers = #tpu.dot_dimension_numbers<[1], [0], [0], [1], [0, 0, 1, 1], [], []>} : vector<16x128xf32>, vector<128x128xf32>, vector<16x128xf32> -> vector<16x128xf32>
    %19 = vector.broadcast %14 : vector<1x128xf32> to vector<16x128xf32>
    %20 = arith.addf %18, %19 : vector<16x128xf32>
    %cst_19 = arith.constant 0.000000e+00 : f32
    %21 = vector.broadcast %cst_19 : f32 to vector<2x32xf32>
    %cst_20 = arith.constant 0.000000e+00 : f32
    %22 = vector.broadcast %cst_20 : f32 to vector<2x32xf32>
    %cst_21 = arith.constant 0.000000e+00 : f32
    %23 = vector.broadcast %cst_21 : f32 to vector<2x32xf32>
    %cst_22 = arith.constant 0.000000e+00 : f32
    %24 = vector.broadcast %cst_22 : f32 to vector<2x32xf32>
    %25 = vector.extract_strided_slice %17 {offsets = [0, 0], sizes = [2, 128], strides = [1, 1]} : vector<16x128xf32> to vector<2x128xf32>
    %26 = arith.truncf %21 : vector<2x32xf32> to vector<2x32xbf16>
    %cst_23 = arith.constant dense<0.000000e+00> : vector<2x128xf32>
    %27 = tpu.matmul %26, %10, %cst_23 {dimension_numbers = #tpu.dot_dimension_numbers<[1], [0], [0], [1], [0, 0, 1, 1], [], []>} : vector<2x32xbf16>, vector<32x128xbf16>, vector<2x128xf32> -> vector<2x128xf32>
    %28 = arith.addf %25, %27 : vector<2x128xf32>
    %29 = vector.extract_strided_slice %20 {offsets = [14, 0], sizes = [2, 128], strides = [1, 1]} : vector<16x128xf32> to vector<2x128xf32>
    %30 = arith.truncf %23 : vector<2x32xf32> to vector<2x32xbf16>
    %cst_24 = arith.constant dense<0.000000e+00> : vector<2x128xf32>
    %31 = tpu.matmul %30, %13, %cst_24 {dimension_numbers = #tpu.dot_dimension_numbers<[1], [0], [0], [1], [0, 0, 1, 1], [], []>} : vector<2x32xbf16>, vector<32x128xbf16>, vector<2x128xf32> -> vector<2x128xf32>
    %32 = arith.addf %29, %31 : vector<2x128xf32>
    %33 = vector.extract_strided_slice %28 {offsets = [0, 0], sizes = [2, 96], strides = [1, 1]} : vector<2x128xf32> to vector<2x96xf32>
    %34 = arith.negf %33 : vector<2x96xf32>
    %35 = math.exp %34 : vector<2x96xf32>
    %cst_25 = arith.constant 1.000000e+00 : f32
    %36 = vector.broadcast %cst_25 : f32 to vector<2x96xf32>
    %37 = arith.addf %36, %35 : vector<2x96xf32>
    %38 = arith.divf %36, %37 : vector<2x96xf32>
    %39 = vector.extract_strided_slice %28 {offsets = [0, 96], sizes = [2, 32], strides = [1, 1]} : vector<2x128xf32> to vector<2x32xf32>
    %40 = math.tanh %39 : vector<2x32xf32>
    %41 = vector.extract_strided_slice %32 {offsets = [0, 0], sizes = [2, 96], strides = [1, 1]} : vector<2x128xf32> to vector<2x96xf32>
    %42 = arith.negf %41 : vector<2x96xf32>
    %43 = math.exp %42 : vector<2x96xf32>
    %cst_26 = arith.constant 1.000000e+00 : f32
    %44 = vector.broadcast %cst_26 : f32 to vector<2x96xf32>
    %45 = arith.addf %44, %43 : vector<2x96xf32>
    %46 = arith.divf %44, %45 : vector<2x96xf32>
    %47 = vector.extract_strided_slice %32 {offsets = [0, 96], sizes = [2, 32], strides = [1, 1]} : vector<2x128xf32> to vector<2x32xf32>
    %48 = math.tanh %47 : vector<2x32xf32>
    %49 = vector.extract_strided_slice %38 {offsets = [0, 32], sizes = [2, 32], strides = [1, 1]} : vector<2x96xf32> to vector<2x32xf32>
    %50 = arith.mulf %49, %22 : vector<2x32xf32>
    %51 = vector.extract_strided_slice %38 {offsets = [0, 0], sizes = [2, 32], strides = [1, 1]} : vector<2x96xf32> to vector<2x32xf32>
    %52 = arith.mulf %51, %40 : vector<2x32xf32>
    %53 = arith.addf %50, %52 : vector<2x32xf32>
    %54 = vector.extract_strided_slice %46 {offsets = [0, 32], sizes = [2, 32], strides = [1, 1]} : vector<2x96xf32> to vector<2x32xf32>
    %55 = arith.mulf %54, %24 : vector<2x32xf32>
    %56 = vector.extract_strided_slice %46 {offsets = [0, 0], sizes = [2, 32], strides = [1, 1]} : vector<2x96xf32> to vector<2x32xf32>
    %57 = arith.mulf %56, %48 : vector<2x32xf32>
    %58 = arith.addf %55, %57 : vector<2x32xf32>
    %59 = vector.extract_strided_slice %38 {offsets = [0, 64], sizes = [2, 32], strides = [1, 1]} : vector<2x96xf32> to vector<2x32xf32>
    %60 = math.tanh %53 : vector<2x32xf32>
    %61 = arith.mulf %59, %60 : vector<2x32xf32>
    %62 = vector.extract_strided_slice %46 {offsets = [0, 64], sizes = [2, 32], strides = [1, 1]} : vector<2x96xf32> to vector<2x32xf32>
    %63 = math.tanh %58 : vector<2x32xf32>
    %64 = arith.mulf %62, %63 : vector<2x32xf32>
    %65 = vector.extract_strided_slice %17 {offsets = [2, 0], sizes = [2, 128], strides = [1, 1]} : vector<16x128xf32> to vector<2x128xf32>
    %66 = arith.truncf %61 : vector<2x32xf32> to vector<2x32xbf16>
    %cst_27 = arith.constant dense<0.000000e+00> : vector<2x128xf32>
    %67 = tpu.matmul %66, %10, %cst_27 {dimension_numbers = #tpu.dot_dimension_numbers<[1], [0], [0], [1], [0, 0, 1, 1], [], []>} : vector<2x32xbf16>, vector<32x128xbf16>, vector<2x128xf32> -> vector<2x128xf32>
    %68 = arith.addf %65, %67 : vector<2x128xf32>
    %69 = vector.extract_strided_slice %20 {offsets = [12, 0], sizes = [2, 128], strides = [1, 1]} : vector<16x128xf32> to vector<2x128xf32>
    %70 = arith.truncf %64 : vector<2x32xf32> to vector<2x32xbf16>
    %cst_28 = arith.constant dense<0.000000e+00> : vector<2x128xf32>
    %71 = tpu.matmul %70, %13, %cst_28 {dimension_numbers = #tpu.dot_dimension_numbers<[1], [0], [0], [1], [0, 0, 1, 1], [], []>} : vector<2x32xbf16>, vector<32x128xbf16>, vector<2x128xf32> -> vector<2x128xf32>
    %72 = arith.addf %69, %71 : vector<2x128xf32>
    %73 = vector.extract_strided_slice %68 {offsets = [0, 0], sizes = [2, 96], strides = [1, 1]} : vector<2x128xf32> to vector<2x96xf32>
    %74 = arith.negf %73 : vector<2x96xf32>
    %75 = math.exp %74 : vector<2x96xf32>
    %cst_29 = arith.constant 1.000000e+00 : f32
    %76 = vector.broadcast %cst_29 : f32 to vector<2x96xf32>
    %77 = arith.addf %76, %75 : vector<2x96xf32>
    %78 = arith.divf %76, %77 : vector<2x96xf32>
    %79 = vector.extract_strided_slice %68 {offsets = [0, 96], sizes = [2, 32], strides = [1, 1]} : vector<2x128xf32> to vector<2x32xf32>
    %80 = math.tanh %79 : vector<2x32xf32>
    %81 = vector.extract_strided_slice %72 {offsets = [0, 0], sizes = [2, 96], strides = [1, 1]} : vector<2x128xf32> to vector<2x96xf32>
    %82 = arith.negf %81 : vector<2x96xf32>
    %83 = math.exp %82 : vector<2x96xf32>
    %cst_30 = arith.constant 1.000000e+00 : f32
    %84 = vector.broadcast %cst_30 : f32 to vector<2x96xf32>
    %85 = arith.addf %84, %83 : vector<2x96xf32>
    %86 = arith.divf %84, %85 : vector<2x96xf32>
    %87 = vector.extract_strided_slice %72 {offsets = [0, 96], sizes = [2, 32], strides = [1, 1]} : vector<2x128xf32> to vector<2x32xf32>
    %88 = math.tanh %87 : vector<2x32xf32>
    %89 = vector.extract_strided_slice %78 {offsets = [0, 32], sizes = [2, 32], strides = [1, 1]} : vector<2x96xf32> to vector<2x32xf32>
    %90 = arith.mulf %89, %53 : vector<2x32xf32>
    %91 = vector.extract_strided_slice %78 {offsets = [0, 0], sizes = [2, 32], strides = [1, 1]} : vector<2x96xf32> to vector<2x32xf32>
    %92 = arith.mulf %91, %80 : vector<2x32xf32>
    %93 = arith.addf %90, %92 : vector<2x32xf32>
    %94 = vector.extract_strided_slice %86 {offsets = [0, 32], sizes = [2, 32], strides = [1, 1]} : vector<2x96xf32> to vector<2x32xf32>
    %95 = arith.mulf %94, %58 : vector<2x32xf32>
    %96 = vector.extract_strided_slice %86 {offsets = [0, 0], sizes = [2, 32], strides = [1, 1]} : vector<2x96xf32> to vector<2x32xf32>
    %97 = arith.mulf %96, %88 : vector<2x32xf32>
    %98 = arith.addf %95, %97 : vector<2x32xf32>
    %99 = vector.extract_strided_slice %78 {offsets = [0, 64], sizes = [2, 32], strides = [1, 1]} : vector<2x96xf32> to vector<2x32xf32>
    %100 = math.tanh %93 : vector<2x32xf32>
    %101 = arith.mulf %99, %100 : vector<2x32xf32>
    %102 = vector.extract_strided_slice %86 {offsets = [0, 64], sizes = [2, 32], strides = [1, 1]} : vector<2x96xf32> to vector<2x32xf32>
    %103 = math.tanh %98 : vector<2x32xf32>
    %104 = arith.mulf %102, %103 : vector<2x32xf32>
    %105 = vector.extract_strided_slice %17 {offsets = [4, 0], sizes = [2, 128], strides = [1, 1]} : vector<16x128xf32> to vector<2x128xf32>
    %106 = arith.truncf %101 : vector<2x32xf32> to vector<2x32xbf16>
    %cst_31 = arith.constant dense<0.000000e+00> : vector<2x128xf32>
    %107 = tpu.matmul %106, %10, %cst_31 {dimension_numbers = #tpu.dot_dimension_numbers<[1], [0], [0], [1], [0, 0, 1, 1], [], []>} : vector<2x32xbf16>, vector<32x128xbf16>, vector<2x128xf32> -> vector<2x128xf32>
    %108 = arith.addf %105, %107 : vector<2x128xf32>
    %109 = vector.extract_strided_slice %20 {offsets = [10, 0], sizes = [2, 128], strides = [1, 1]} : vector<16x128xf32> to vector<2x128xf32>
    %110 = arith.truncf %104 : vector<2x32xf32> to vector<2x32xbf16>
    %cst_32 = arith.constant dense<0.000000e+00> : vector<2x128xf32>
    %111 = tpu.matmul %110, %13, %cst_32 {dimension_numbers = #tpu.dot_dimension_numbers<[1], [0], [0], [1], [0, 0, 1, 1], [], []>} : vector<2x32xbf16>, vector<32x128xbf16>, vector<2x128xf32> -> vector<2x128xf32>
    %112 = arith.addf %109, %111 : vector<2x128xf32>
    %113 = vector.extract_strided_slice %108 {offsets = [0, 0], sizes = [2, 96], strides = [1, 1]} : vector<2x128xf32> to vector<2x96xf32>
    %114 = arith.negf %113 : vector<2x96xf32>
    %115 = math.exp %114 : vector<2x96xf32>
    %cst_33 = arith.constant 1.000000e+00 : f32
    %116 = vector.broadcast %cst_33 : f32 to vector<2x96xf32>
    %117 = arith.addf %116, %115 : vector<2x96xf32>
    %118 = arith.divf %116, %117 : vector<2x96xf32>
    %119 = vector.extract_strided_slice %108 {offsets = [0, 96], sizes = [2, 32], strides = [1, 1]} : vector<2x128xf32> to vector<2x32xf32>
    %120 = math.tanh %119 : vector<2x32xf32>
    %121 = vector.extract_strided_slice %112 {offsets = [0, 0], sizes = [2, 96], strides = [1, 1]} : vector<2x128xf32> to vector<2x96xf32>
    %122 = arith.negf %121 : vector<2x96xf32>
    %123 = math.exp %122 : vector<2x96xf32>
    %cst_34 = arith.constant 1.000000e+00 : f32
    %124 = vector.broadcast %cst_34 : f32 to vector<2x96xf32>
    %125 = arith.addf %124, %123 : vector<2x96xf32>
    %126 = arith.divf %124, %125 : vector<2x96xf32>
    %127 = vector.extract_strided_slice %112 {offsets = [0, 96], sizes = [2, 32], strides = [1, 1]} : vector<2x128xf32> to vector<2x32xf32>
    %128 = math.tanh %127 : vector<2x32xf32>
    %129 = vector.extract_strided_slice %118 {offsets = [0, 32], sizes = [2, 32], strides = [1, 1]} : vector<2x96xf32> to vector<2x32xf32>
    %130 = arith.mulf %129, %93 : vector<2x32xf32>
    %131 = vector.extract_strided_slice %118 {offsets = [0, 0], sizes = [2, 32], strides = [1, 1]} : vector<2x96xf32> to vector<2x32xf32>
    %132 = arith.mulf %131, %120 : vector<2x32xf32>
    %133 = arith.addf %130, %132 : vector<2x32xf32>
    %134 = vector.extract_strided_slice %126 {offsets = [0, 32], sizes = [2, 32], strides = [1, 1]} : vector<2x96xf32> to vector<2x32xf32>
    %135 = arith.mulf %134, %98 : vector<2x32xf32>
    %136 = vector.extract_strided_slice %126 {offsets = [0, 0], sizes = [2, 32], strides = [1, 1]} : vector<2x96xf32> to vector<2x32xf32>
    %137 = arith.mulf %136, %128 : vector<2x32xf32>
    %138 = arith.addf %135, %137 : vector<2x32xf32>
    %139 = vector.extract_strided_slice %118 {offsets = [0, 64], sizes = [2, 32], strides = [1, 1]} : vector<2x96xf32> to vector<2x32xf32>
    %140 = math.tanh %133 : vector<2x32xf32>
    %141 = arith.mulf %139, %140 : vector<2x32xf32>
    %142 = vector.extract_strided_slice %126 {offsets = [0, 64], sizes = [2, 32], strides = [1, 1]} : vector<2x96xf32> to vector<2x32xf32>
    %143 = math.tanh %138 : vector<2x32xf32>
    %144 = arith.mulf %142, %143 : vector<2x32xf32>
    %145 = vector.extract_strided_slice %17 {offsets = [6, 0], sizes = [2, 128], strides = [1, 1]} : vector<16x128xf32> to vector<2x128xf32>
    %146 = arith.truncf %141 : vector<2x32xf32> to vector<2x32xbf16>
    %cst_35 = arith.constant dense<0.000000e+00> : vector<2x128xf32>
    %147 = tpu.matmul %146, %10, %cst_35 {dimension_numbers = #tpu.dot_dimension_numbers<[1], [0], [0], [1], [0, 0, 1, 1], [], []>} : vector<2x32xbf16>, vector<32x128xbf16>, vector<2x128xf32> -> vector<2x128xf32>
    %148 = arith.addf %145, %147 : vector<2x128xf32>
    %149 = vector.extract_strided_slice %20 {offsets = [8, 0], sizes = [2, 128], strides = [1, 1]} : vector<16x128xf32> to vector<2x128xf32>
    %150 = arith.truncf %144 : vector<2x32xf32> to vector<2x32xbf16>
    %cst_36 = arith.constant dense<0.000000e+00> : vector<2x128xf32>
    %151 = tpu.matmul %150, %13, %cst_36 {dimension_numbers = #tpu.dot_dimension_numbers<[1], [0], [0], [1], [0, 0, 1, 1], [], []>} : vector<2x32xbf16>, vector<32x128xbf16>, vector<2x128xf32> -> vector<2x128xf32>
    %152 = arith.addf %149, %151 : vector<2x128xf32>
    %153 = vector.extract_strided_slice %148 {offsets = [0, 0], sizes = [2, 96], strides = [1, 1]} : vector<2x128xf32> to vector<2x96xf32>
    %154 = arith.negf %153 : vector<2x96xf32>
    %155 = math.exp %154 : vector<2x96xf32>
    %cst_37 = arith.constant 1.000000e+00 : f32
    %156 = vector.broadcast %cst_37 : f32 to vector<2x96xf32>
    %157 = arith.addf %156, %155 : vector<2x96xf32>
    %158 = arith.divf %156, %157 : vector<2x96xf32>
    %159 = vector.extract_strided_slice %148 {offsets = [0, 96], sizes = [2, 32], strides = [1, 1]} : vector<2x128xf32> to vector<2x32xf32>
    %160 = math.tanh %159 : vector<2x32xf32>
    %161 = vector.extract_strided_slice %152 {offsets = [0, 0], sizes = [2, 96], strides = [1, 1]} : vector<2x128xf32> to vector<2x96xf32>
    %162 = arith.negf %161 : vector<2x96xf32>
    %163 = math.exp %162 : vector<2x96xf32>
    %cst_38 = arith.constant 1.000000e+00 : f32
    %164 = vector.broadcast %cst_38 : f32 to vector<2x96xf32>
    %165 = arith.addf %164, %163 : vector<2x96xf32>
    %166 = arith.divf %164, %165 : vector<2x96xf32>
    %167 = vector.extract_strided_slice %152 {offsets = [0, 96], sizes = [2, 32], strides = [1, 1]} : vector<2x128xf32> to vector<2x32xf32>
    %168 = math.tanh %167 : vector<2x32xf32>
    %169 = vector.extract_strided_slice %158 {offsets = [0, 32], sizes = [2, 32], strides = [1, 1]} : vector<2x96xf32> to vector<2x32xf32>
    %170 = arith.mulf %169, %133 : vector<2x32xf32>
    %171 = vector.extract_strided_slice %158 {offsets = [0, 0], sizes = [2, 32], strides = [1, 1]} : vector<2x96xf32> to vector<2x32xf32>
    %172 = arith.mulf %171, %160 : vector<2x32xf32>
    %173 = arith.addf %170, %172 : vector<2x32xf32>
    %174 = vector.extract_strided_slice %166 {offsets = [0, 32], sizes = [2, 32], strides = [1, 1]} : vector<2x96xf32> to vector<2x32xf32>
    %175 = arith.mulf %174, %138 : vector<2x32xf32>
    %176 = vector.extract_strided_slice %166 {offsets = [0, 0], sizes = [2, 32], strides = [1, 1]} : vector<2x96xf32> to vector<2x32xf32>
    %177 = arith.mulf %176, %168 : vector<2x32xf32>
    %178 = arith.addf %175, %177 : vector<2x32xf32>
    %179 = vector.extract_strided_slice %158 {offsets = [0, 64], sizes = [2, 32], strides = [1, 1]} : vector<2x96xf32> to vector<2x32xf32>
    %180 = math.tanh %173 : vector<2x32xf32>
    %181 = arith.mulf %179, %180 : vector<2x32xf32>
    %182 = vector.extract_strided_slice %166 {offsets = [0, 64], sizes = [2, 32], strides = [1, 1]} : vector<2x96xf32> to vector<2x32xf32>
    %183 = math.tanh %178 : vector<2x32xf32>
    %184 = arith.mulf %182, %183 : vector<2x32xf32>
    %185 = vector.extract_strided_slice %17 {offsets = [8, 0], sizes = [2, 128], strides = [1, 1]} : vector<16x128xf32> to vector<2x128xf32>
    %186 = arith.truncf %181 : vector<2x32xf32> to vector<2x32xbf16>
    %cst_39 = arith.constant dense<0.000000e+00> : vector<2x128xf32>
    %187 = tpu.matmul %186, %10, %cst_39 {dimension_numbers = #tpu.dot_dimension_numbers<[1], [0], [0], [1], [0, 0, 1, 1], [], []>} : vector<2x32xbf16>, vector<32x128xbf16>, vector<2x128xf32> -> vector<2x128xf32>
    %188 = arith.addf %185, %187 : vector<2x128xf32>
    %189 = vector.extract_strided_slice %20 {offsets = [6, 0], sizes = [2, 128], strides = [1, 1]} : vector<16x128xf32> to vector<2x128xf32>
    %190 = arith.truncf %184 : vector<2x32xf32> to vector<2x32xbf16>
    %cst_40 = arith.constant dense<0.000000e+00> : vector<2x128xf32>
    %191 = tpu.matmul %190, %13, %cst_40 {dimension_numbers = #tpu.dot_dimension_numbers<[1], [0], [0], [1], [0, 0, 1, 1], [], []>} : vector<2x32xbf16>, vector<32x128xbf16>, vector<2x128xf32> -> vector<2x128xf32>
    %192 = arith.addf %189, %191 : vector<2x128xf32>
    %193 = vector.extract_strided_slice %188 {offsets = [0, 0], sizes = [2, 96], strides = [1, 1]} : vector<2x128xf32> to vector<2x96xf32>
    %194 = arith.negf %193 : vector<2x96xf32>
    %195 = math.exp %194 : vector<2x96xf32>
    %cst_41 = arith.constant 1.000000e+00 : f32
    %196 = vector.broadcast %cst_41 : f32 to vector<2x96xf32>
    %197 = arith.addf %196, %195 : vector<2x96xf32>
    %198 = arith.divf %196, %197 : vector<2x96xf32>
    %199 = vector.extract_strided_slice %188 {offsets = [0, 96], sizes = [2, 32], strides = [1, 1]} : vector<2x128xf32> to vector<2x32xf32>
    %200 = math.tanh %199 : vector<2x32xf32>
    %201 = vector.extract_strided_slice %192 {offsets = [0, 0], sizes = [2, 96], strides = [1, 1]} : vector<2x128xf32> to vector<2x96xf32>
    %202 = arith.negf %201 : vector<2x96xf32>
    %203 = math.exp %202 : vector<2x96xf32>
    %cst_42 = arith.constant 1.000000e+00 : f32
    %204 = vector.broadcast %cst_42 : f32 to vector<2x96xf32>
    %205 = arith.addf %204, %203 : vector<2x96xf32>
    %206 = arith.divf %204, %205 : vector<2x96xf32>
    %207 = vector.extract_strided_slice %192 {offsets = [0, 96], sizes = [2, 32], strides = [1, 1]} : vector<2x128xf32> to vector<2x32xf32>
    %208 = math.tanh %207 : vector<2x32xf32>
    %209 = vector.extract_strided_slice %198 {offsets = [0, 32], sizes = [2, 32], strides = [1, 1]} : vector<2x96xf32> to vector<2x32xf32>
    %210 = arith.mulf %209, %173 : vector<2x32xf32>
    %211 = vector.extract_strided_slice %198 {offsets = [0, 0], sizes = [2, 32], strides = [1, 1]} : vector<2x96xf32> to vector<2x32xf32>
    %212 = arith.mulf %211, %200 : vector<2x32xf32>
    %213 = arith.addf %210, %212 : vector<2x32xf32>
    %214 = vector.extract_strided_slice %206 {offsets = [0, 32], sizes = [2, 32], strides = [1, 1]} : vector<2x96xf32> to vector<2x32xf32>
    %215 = arith.mulf %214, %178 : vector<2x32xf32>
    %216 = vector.extract_strided_slice %206 {offsets = [0, 0], sizes = [2, 32], strides = [1, 1]} : vector<2x96xf32> to vector<2x32xf32>
    %217 = arith.mulf %216, %208 : vector<2x32xf32>
    %218 = arith.addf %215, %217 : vector<2x32xf32>
    %219 = vector.extract_strided_slice %198 {offsets = [0, 64], sizes = [2, 32], strides = [1, 1]} : vector<2x96xf32> to vector<2x32xf32>
    %220 = math.tanh %213 : vector<2x32xf32>
    %221 = arith.mulf %219, %220 : vector<2x32xf32>
    %222 = vector.extract_strided_slice %206 {offsets = [0, 64], sizes = [2, 32], strides = [1, 1]} : vector<2x96xf32> to vector<2x32xf32>
    %223 = math.tanh %218 : vector<2x32xf32>
    %224 = arith.mulf %222, %223 : vector<2x32xf32>
    %225 = vector.extract_strided_slice %17 {offsets = [10, 0], sizes = [2, 128], strides = [1, 1]} : vector<16x128xf32> to vector<2x128xf32>
    %226 = arith.truncf %221 : vector<2x32xf32> to vector<2x32xbf16>
    %cst_43 = arith.constant dense<0.000000e+00> : vector<2x128xf32>
    %227 = tpu.matmul %226, %10, %cst_43 {dimension_numbers = #tpu.dot_dimension_numbers<[1], [0], [0], [1], [0, 0, 1, 1], [], []>} : vector<2x32xbf16>, vector<32x128xbf16>, vector<2x128xf32> -> vector<2x128xf32>
    %228 = arith.addf %225, %227 : vector<2x128xf32>
    %229 = vector.extract_strided_slice %20 {offsets = [4, 0], sizes = [2, 128], strides = [1, 1]} : vector<16x128xf32> to vector<2x128xf32>
    %230 = arith.truncf %224 : vector<2x32xf32> to vector<2x32xbf16>
    %cst_44 = arith.constant dense<0.000000e+00> : vector<2x128xf32>
    %231 = tpu.matmul %230, %13, %cst_44 {dimension_numbers = #tpu.dot_dimension_numbers<[1], [0], [0], [1], [0, 0, 1, 1], [], []>} : vector<2x32xbf16>, vector<32x128xbf16>, vector<2x128xf32> -> vector<2x128xf32>
    %232 = arith.addf %229, %231 : vector<2x128xf32>
    %233 = vector.extract_strided_slice %228 {offsets = [0, 0], sizes = [2, 96], strides = [1, 1]} : vector<2x128xf32> to vector<2x96xf32>
    %234 = arith.negf %233 : vector<2x96xf32>
    %235 = math.exp %234 : vector<2x96xf32>
    %cst_45 = arith.constant 1.000000e+00 : f32
    %236 = vector.broadcast %cst_45 : f32 to vector<2x96xf32>
    %237 = arith.addf %236, %235 : vector<2x96xf32>
    %238 = arith.divf %236, %237 : vector<2x96xf32>
    %239 = vector.extract_strided_slice %228 {offsets = [0, 96], sizes = [2, 32], strides = [1, 1]} : vector<2x128xf32> to vector<2x32xf32>
    %240 = math.tanh %239 : vector<2x32xf32>
    %241 = vector.extract_strided_slice %232 {offsets = [0, 0], sizes = [2, 96], strides = [1, 1]} : vector<2x128xf32> to vector<2x96xf32>
    %242 = arith.negf %241 : vector<2x96xf32>
    %243 = math.exp %242 : vector<2x96xf32>
    %cst_46 = arith.constant 1.000000e+00 : f32
    %244 = vector.broadcast %cst_46 : f32 to vector<2x96xf32>
    %245 = arith.addf %244, %243 : vector<2x96xf32>
    %246 = arith.divf %244, %245 : vector<2x96xf32>
    %247 = vector.extract_strided_slice %232 {offsets = [0, 96], sizes = [2, 32], strides = [1, 1]} : vector<2x128xf32> to vector<2x32xf32>
    %248 = math.tanh %247 : vector<2x32xf32>
    %249 = vector.extract_strided_slice %238 {offsets = [0, 32], sizes = [2, 32], strides = [1, 1]} : vector<2x96xf32> to vector<2x32xf32>
    %250 = arith.mulf %249, %213 : vector<2x32xf32>
    %251 = vector.extract_strided_slice %238 {offsets = [0, 0], sizes = [2, 32], strides = [1, 1]} : vector<2x96xf32> to vector<2x32xf32>
    %252 = arith.mulf %251, %240 : vector<2x32xf32>
    %253 = arith.addf %250, %252 : vector<2x32xf32>
    %254 = vector.extract_strided_slice %246 {offsets = [0, 32], sizes = [2, 32], strides = [1, 1]} : vector<2x96xf32> to vector<2x32xf32>
    %255 = arith.mulf %254, %218 : vector<2x32xf32>
    %256 = vector.extract_strided_slice %246 {offsets = [0, 0], sizes = [2, 32], strides = [1, 1]} : vector<2x96xf32> to vector<2x32xf32>
    %257 = arith.mulf %256, %248 : vector<2x32xf32>
    %258 = arith.addf %255, %257 : vector<2x32xf32>
    %259 = vector.extract_strided_slice %238 {offsets = [0, 64], sizes = [2, 32], strides = [1, 1]} : vector<2x96xf32> to vector<2x32xf32>
    %260 = math.tanh %253 : vector<2x32xf32>
    %261 = arith.mulf %259, %260 : vector<2x32xf32>
    %262 = vector.extract_strided_slice %246 {offsets = [0, 64], sizes = [2, 32], strides = [1, 1]} : vector<2x96xf32> to vector<2x32xf32>
    %263 = math.tanh %258 : vector<2x32xf32>
    %264 = arith.mulf %262, %263 : vector<2x32xf32>
    %265 = vector.extract_strided_slice %17 {offsets = [12, 0], sizes = [2, 128], strides = [1, 1]} : vector<16x128xf32> to vector<2x128xf32>
    %266 = arith.truncf %261 : vector<2x32xf32> to vector<2x32xbf16>
    %cst_47 = arith.constant dense<0.000000e+00> : vector<2x128xf32>
    %267 = tpu.matmul %266, %10, %cst_47 {dimension_numbers = #tpu.dot_dimension_numbers<[1], [0], [0], [1], [0, 0, 1, 1], [], []>} : vector<2x32xbf16>, vector<32x128xbf16>, vector<2x128xf32> -> vector<2x128xf32>
    %268 = arith.addf %265, %267 : vector<2x128xf32>
    %269 = vector.extract_strided_slice %20 {offsets = [2, 0], sizes = [2, 128], strides = [1, 1]} : vector<16x128xf32> to vector<2x128xf32>
    %270 = arith.truncf %264 : vector<2x32xf32> to vector<2x32xbf16>
    %cst_48 = arith.constant dense<0.000000e+00> : vector<2x128xf32>
    %271 = tpu.matmul %270, %13, %cst_48 {dimension_numbers = #tpu.dot_dimension_numbers<[1], [0], [0], [1], [0, 0, 1, 1], [], []>} : vector<2x32xbf16>, vector<32x128xbf16>, vector<2x128xf32> -> vector<2x128xf32>
    %272 = arith.addf %269, %271 : vector<2x128xf32>
    %273 = vector.extract_strided_slice %268 {offsets = [0, 0], sizes = [2, 96], strides = [1, 1]} : vector<2x128xf32> to vector<2x96xf32>
    %274 = arith.negf %273 : vector<2x96xf32>
    %275 = math.exp %274 : vector<2x96xf32>
    %cst_49 = arith.constant 1.000000e+00 : f32
    %276 = vector.broadcast %cst_49 : f32 to vector<2x96xf32>
    %277 = arith.addf %276, %275 : vector<2x96xf32>
    %278 = arith.divf %276, %277 : vector<2x96xf32>
    %279 = vector.extract_strided_slice %268 {offsets = [0, 96], sizes = [2, 32], strides = [1, 1]} : vector<2x128xf32> to vector<2x32xf32>
    %280 = math.tanh %279 : vector<2x32xf32>
    %281 = vector.extract_strided_slice %272 {offsets = [0, 0], sizes = [2, 96], strides = [1, 1]} : vector<2x128xf32> to vector<2x96xf32>
    %282 = arith.negf %281 : vector<2x96xf32>
    %283 = math.exp %282 : vector<2x96xf32>
    %cst_50 = arith.constant 1.000000e+00 : f32
    %284 = vector.broadcast %cst_50 : f32 to vector<2x96xf32>
    %285 = arith.addf %284, %283 : vector<2x96xf32>
    %286 = arith.divf %284, %285 : vector<2x96xf32>
    %287 = vector.extract_strided_slice %272 {offsets = [0, 96], sizes = [2, 32], strides = [1, 1]} : vector<2x128xf32> to vector<2x32xf32>
    %288 = math.tanh %287 : vector<2x32xf32>
    %289 = vector.extract_strided_slice %278 {offsets = [0, 32], sizes = [2, 32], strides = [1, 1]} : vector<2x96xf32> to vector<2x32xf32>
    %290 = arith.mulf %289, %253 : vector<2x32xf32>
    %291 = vector.extract_strided_slice %278 {offsets = [0, 0], sizes = [2, 32], strides = [1, 1]} : vector<2x96xf32> to vector<2x32xf32>
    %292 = arith.mulf %291, %280 : vector<2x32xf32>
    %293 = arith.addf %290, %292 : vector<2x32xf32>
    %294 = vector.extract_strided_slice %286 {offsets = [0, 32], sizes = [2, 32], strides = [1, 1]} : vector<2x96xf32> to vector<2x32xf32>
    %295 = arith.mulf %294, %258 : vector<2x32xf32>
    %296 = vector.extract_strided_slice %286 {offsets = [0, 0], sizes = [2, 32], strides = [1, 1]} : vector<2x96xf32> to vector<2x32xf32>
    %297 = arith.mulf %296, %288 : vector<2x32xf32>
    %298 = arith.addf %295, %297 : vector<2x32xf32>
    %299 = vector.extract_strided_slice %278 {offsets = [0, 64], sizes = [2, 32], strides = [1, 1]} : vector<2x96xf32> to vector<2x32xf32>
    %300 = math.tanh %293 : vector<2x32xf32>
    %301 = arith.mulf %299, %300 : vector<2x32xf32>
    %302 = vector.extract_strided_slice %286 {offsets = [0, 64], sizes = [2, 32], strides = [1, 1]} : vector<2x96xf32> to vector<2x32xf32>
    %303 = math.tanh %298 : vector<2x32xf32>
    %304 = arith.mulf %302, %303 : vector<2x32xf32>
    %305 = vector.extract_strided_slice %17 {offsets = [14, 0], sizes = [2, 128], strides = [1, 1]} : vector<16x128xf32> to vector<2x128xf32>
    %306 = arith.truncf %301 : vector<2x32xf32> to vector<2x32xbf16>
    %cst_51 = arith.constant dense<0.000000e+00> : vector<2x128xf32>
    %307 = tpu.matmul %306, %10, %cst_51 {dimension_numbers = #tpu.dot_dimension_numbers<[1], [0], [0], [1], [0, 0, 1, 1], [], []>} : vector<2x32xbf16>, vector<32x128xbf16>, vector<2x128xf32> -> vector<2x128xf32>
    %308 = arith.addf %305, %307 : vector<2x128xf32>
    %309 = vector.extract_strided_slice %20 {offsets = [0, 0], sizes = [2, 128], strides = [1, 1]} : vector<16x128xf32> to vector<2x128xf32>
    %310 = arith.truncf %304 : vector<2x32xf32> to vector<2x32xbf16>
    %cst_52 = arith.constant dense<0.000000e+00> : vector<2x128xf32>
    %311 = tpu.matmul %310, %13, %cst_52 {dimension_numbers = #tpu.dot_dimension_numbers<[1], [0], [0], [1], [0, 0, 1, 1], [], []>} : vector<2x32xbf16>, vector<32x128xbf16>, vector<2x128xf32> -> vector<2x128xf32>
    %312 = arith.addf %309, %311 : vector<2x128xf32>
    %313 = vector.extract_strided_slice %308 {offsets = [0, 0], sizes = [2, 96], strides = [1, 1]} : vector<2x128xf32> to vector<2x96xf32>
    %314 = arith.negf %313 : vector<2x96xf32>
    %315 = math.exp %314 : vector<2x96xf32>
    %cst_53 = arith.constant 1.000000e+00 : f32
    %316 = vector.broadcast %cst_53 : f32 to vector<2x96xf32>
    %317 = arith.addf %316, %315 : vector<2x96xf32>
    %318 = arith.divf %316, %317 : vector<2x96xf32>
    %319 = vector.extract_strided_slice %308 {offsets = [0, 96], sizes = [2, 32], strides = [1, 1]} : vector<2x128xf32> to vector<2x32xf32>
    %320 = math.tanh %319 : vector<2x32xf32>
    %321 = vector.extract_strided_slice %312 {offsets = [0, 0], sizes = [2, 96], strides = [1, 1]} : vector<2x128xf32> to vector<2x96xf32>
    %322 = arith.negf %321 : vector<2x96xf32>
    %323 = math.exp %322 : vector<2x96xf32>
    %cst_54 = arith.constant 1.000000e+00 : f32
    %324 = vector.broadcast %cst_54 : f32 to vector<2x96xf32>
    %325 = arith.addf %324, %323 : vector<2x96xf32>
    %326 = arith.divf %324, %325 : vector<2x96xf32>
    %327 = vector.extract_strided_slice %312 {offsets = [0, 96], sizes = [2, 32], strides = [1, 1]} : vector<2x128xf32> to vector<2x32xf32>
    %328 = math.tanh %327 : vector<2x32xf32>
    %329 = vector.extract_strided_slice %318 {offsets = [0, 32], sizes = [2, 32], strides = [1, 1]} : vector<2x96xf32> to vector<2x32xf32>
    %330 = arith.mulf %329, %293 : vector<2x32xf32>
    %331 = vector.extract_strided_slice %318 {offsets = [0, 0], sizes = [2, 32], strides = [1, 1]} : vector<2x96xf32> to vector<2x32xf32>
    %332 = arith.mulf %331, %320 : vector<2x32xf32>
    %333 = arith.addf %330, %332 : vector<2x32xf32>
    %334 = vector.extract_strided_slice %326 {offsets = [0, 32], sizes = [2, 32], strides = [1, 1]} : vector<2x96xf32> to vector<2x32xf32>
    %335 = arith.mulf %334, %298 : vector<2x32xf32>
    %336 = vector.extract_strided_slice %326 {offsets = [0, 0], sizes = [2, 32], strides = [1, 1]} : vector<2x96xf32> to vector<2x32xf32>
    %337 = arith.mulf %336, %328 : vector<2x32xf32>
    %338 = arith.addf %335, %337 : vector<2x32xf32>
    %339 = vector.extract_strided_slice %318 {offsets = [0, 64], sizes = [2, 32], strides = [1, 1]} : vector<2x96xf32> to vector<2x32xf32>
    %340 = math.tanh %333 : vector<2x32xf32>
    %341 = arith.mulf %339, %340 : vector<2x32xf32>
    %342 = vector.extract_strided_slice %326 {offsets = [0, 64], sizes = [2, 32], strides = [1, 1]} : vector<2x96xf32> to vector<2x32xf32>
    %343 = math.tanh %338 : vector<2x32xf32>
    %344 = arith.mulf %342, %343 : vector<2x32xf32>
    %345 = tpu.concatenate %61, %101, %141, %181, %221, %261, %301, %341 in 0 : vector<2x32xf32>, vector<2x32xf32>, vector<2x32xf32>, vector<2x32xf32>, vector<2x32xf32>, vector<2x32xf32>, vector<2x32xf32>, vector<2x32xf32> -> vector<16x32xf32>
    %346 = tpu.concatenate %344, %304, %264, %224, %184, %144, %104, %64 in 0 : vector<2x32xf32>, vector<2x32xf32>, vector<2x32xf32>, vector<2x32xf32>, vector<2x32xf32>, vector<2x32xf32>, vector<2x32xf32>, vector<2x32xf32> -> vector<16x32xf32>
    %347 = tpu.concatenate %345, %346 in 1 : vector<16x32xf32>, vector<16x32xf32> -> vector<16x64xf32>
    %c0_55 = arith.constant 0 : index
    %c0_56 = arith.constant 0 : index
    %348 = vector.load %arg8[%c0_55, %c0_56] : memref<64x128xf32, #tpu.memory_space<vmem>>, vector<64x128xf32>
    %c0_57 = arith.constant 0 : index
    %c0_58 = arith.constant 0 : index
    %349 = vector.load %arg9[%c0_57, %c0_58] : memref<32x128xbf16, #tpu.memory_space<vmem>>, vector<32x128xbf16>
    %c0_59 = arith.constant 0 : index
    %c0_60 = arith.constant 0 : index
    %350 = vector.load %arg10[%c0_59, %c0_60] : memref<1x128xf32, #tpu.memory_space<vmem>>, vector<1x128xf32>
    %c0_61 = arith.constant 0 : index
    %c0_62 = arith.constant 0 : index
    %351 = vector.load %arg11[%c0_61, %c0_62] : memref<64x128xf32, #tpu.memory_space<vmem>>, vector<64x128xf32>
    %c0_63 = arith.constant 0 : index
    %c0_64 = arith.constant 0 : index
    %352 = vector.load %arg12[%c0_63, %c0_64] : memref<32x128xbf16, #tpu.memory_space<vmem>>, vector<32x128xbf16>
    %c0_65 = arith.constant 0 : index
    %c0_66 = arith.constant 0 : index
    %353 = vector.load %arg13[%c0_65, %c0_66] : memref<1x128xf32, #tpu.memory_space<vmem>>, vector<1x128xf32>
    %cst_67 = arith.constant dense<0.000000e+00> : vector<16x128xf32>
    %354 = tpu.matmul %347, %348, %cst_67 {dimension_numbers = #tpu.dot_dimension_numbers<[1], [0], [0], [1], [0, 0, 1, 1], [], []>} : vector<16x64xf32>, vector<64x128xf32>, vector<16x128xf32> -> vector<16x128xf32>
    %355 = vector.broadcast %350 : vector<1x128xf32> to vector<16x128xf32>
    %356 = arith.addf %354, %355 : vector<16x128xf32>
    %cst_68 = arith.constant dense<0.000000e+00> : vector<16x128xf32>
    %357 = tpu.matmul %347, %351, %cst_68 {dimension_numbers = #tpu.dot_dimension_numbers<[1], [0], [0], [1], [0, 0, 1, 1], [], []>} : vector<16x64xf32>, vector<64x128xf32>, vector<16x128xf32> -> vector<16x128xf32>
    %358 = vector.broadcast %353 : vector<1x128xf32> to vector<16x128xf32>
    %359 = arith.addf %357, %358 : vector<16x128xf32>
    %cst_69 = arith.constant 0.000000e+00 : f32
    %360 = vector.broadcast %cst_69 : f32 to vector<2x32xf32>
    %cst_70 = arith.constant 0.000000e+00 : f32
    %361 = vector.broadcast %cst_70 : f32 to vector<2x32xf32>
    %cst_71 = arith.constant 0.000000e+00 : f32
    %362 = vector.broadcast %cst_71 : f32 to vector<2x32xf32>
    %cst_72 = arith.constant 0.000000e+00 : f32
    %363 = vector.broadcast %cst_72 : f32 to vector<2x32xf32>
    %364 = vector.extract_strided_slice %356 {offsets = [0, 0], sizes = [2, 128], strides = [1, 1]} : vector<16x128xf32> to vector<2x128xf32>
    %365 = arith.truncf %360 : vector<2x32xf32> to vector<2x32xbf16>
    %cst_73 = arith.constant dense<0.000000e+00> : vector<2x128xf32>
    %366 = tpu.matmul %365, %349, %cst_73 {dimension_numbers = #tpu.dot_dimension_numbers<[1], [0], [0], [1], [0, 0, 1, 1], [], []>} : vector<2x32xbf16>, vector<32x128xbf16>, vector<2x128xf32> -> vector<2x128xf32>
    %367 = arith.addf %364, %366 : vector<2x128xf32>
    %368 = vector.extract_strided_slice %359 {offsets = [14, 0], sizes = [2, 128], strides = [1, 1]} : vector<16x128xf32> to vector<2x128xf32>
    %369 = arith.truncf %362 : vector<2x32xf32> to vector<2x32xbf16>
    %cst_74 = arith.constant dense<0.000000e+00> : vector<2x128xf32>
    %370 = tpu.matmul %369, %352, %cst_74 {dimension_numbers = #tpu.dot_dimension_numbers<[1], [0], [0], [1], [0, 0, 1, 1], [], []>} : vector<2x32xbf16>, vector<32x128xbf16>, vector<2x128xf32> -> vector<2x128xf32>
    %371 = arith.addf %368, %370 : vector<2x128xf32>
    %372 = vector.extract_strided_slice %367 {offsets = [0, 0], sizes = [2, 96], strides = [1, 1]} : vector<2x128xf32> to vector<2x96xf32>
    %373 = arith.negf %372 : vector<2x96xf32>
    %374 = math.exp %373 : vector<2x96xf32>
    %cst_75 = arith.constant 1.000000e+00 : f32
    %375 = vector.broadcast %cst_75 : f32 to vector<2x96xf32>
    %376 = arith.addf %375, %374 : vector<2x96xf32>
    %377 = arith.divf %375, %376 : vector<2x96xf32>
    %378 = vector.extract_strided_slice %367 {offsets = [0, 96], sizes = [2, 32], strides = [1, 1]} : vector<2x128xf32> to vector<2x32xf32>
    %379 = math.tanh %378 : vector<2x32xf32>
    %380 = vector.extract_strided_slice %371 {offsets = [0, 0], sizes = [2, 96], strides = [1, 1]} : vector<2x128xf32> to vector<2x96xf32>
    %381 = arith.negf %380 : vector<2x96xf32>
    %382 = math.exp %381 : vector<2x96xf32>
    %cst_76 = arith.constant 1.000000e+00 : f32
    %383 = vector.broadcast %cst_76 : f32 to vector<2x96xf32>
    %384 = arith.addf %383, %382 : vector<2x96xf32>
    %385 = arith.divf %383, %384 : vector<2x96xf32>
    %386 = vector.extract_strided_slice %371 {offsets = [0, 96], sizes = [2, 32], strides = [1, 1]} : vector<2x128xf32> to vector<2x32xf32>
    %387 = math.tanh %386 : vector<2x32xf32>
    %388 = vector.extract_strided_slice %377 {offsets = [0, 32], sizes = [2, 32], strides = [1, 1]} : vector<2x96xf32> to vector<2x32xf32>
    %389 = arith.mulf %388, %361 : vector<2x32xf32>
    %390 = vector.extract_strided_slice %377 {offsets = [0, 0], sizes = [2, 32], strides = [1, 1]} : vector<2x96xf32> to vector<2x32xf32>
    %391 = arith.mulf %390, %379 : vector<2x32xf32>
    %392 = arith.addf %389, %391 : vector<2x32xf32>
    %393 = vector.extract_strided_slice %385 {offsets = [0, 32], sizes = [2, 32], strides = [1, 1]} : vector<2x96xf32> to vector<2x32xf32>
    %394 = arith.mulf %393, %363 : vector<2x32xf32>
    %395 = vector.extract_strided_slice %385 {offsets = [0, 0], sizes = [2, 32], strides = [1, 1]} : vector<2x96xf32> to vector<2x32xf32>
    %396 = arith.mulf %395, %387 : vector<2x32xf32>
    %397 = arith.addf %394, %396 : vector<2x32xf32>
    %398 = vector.extract_strided_slice %377 {offsets = [0, 64], sizes = [2, 32], strides = [1, 1]} : vector<2x96xf32> to vector<2x32xf32>
    %399 = math.tanh %392 : vector<2x32xf32>
    %400 = arith.mulf %398, %399 : vector<2x32xf32>
    %401 = vector.extract_strided_slice %385 {offsets = [0, 64], sizes = [2, 32], strides = [1, 1]} : vector<2x96xf32> to vector<2x32xf32>
    %402 = math.tanh %397 : vector<2x32xf32>
    %403 = arith.mulf %401, %402 : vector<2x32xf32>
    %404 = vector.extract_strided_slice %356 {offsets = [2, 0], sizes = [2, 128], strides = [1, 1]} : vector<16x128xf32> to vector<2x128xf32>
    %405 = arith.truncf %400 : vector<2x32xf32> to vector<2x32xbf16>
    %cst_77 = arith.constant dense<0.000000e+00> : vector<2x128xf32>
    %406 = tpu.matmul %405, %349, %cst_77 {dimension_numbers = #tpu.dot_dimension_numbers<[1], [0], [0], [1], [0, 0, 1, 1], [], []>} : vector<2x32xbf16>, vector<32x128xbf16>, vector<2x128xf32> -> vector<2x128xf32>
    %407 = arith.addf %404, %406 : vector<2x128xf32>
    %408 = vector.extract_strided_slice %359 {offsets = [12, 0], sizes = [2, 128], strides = [1, 1]} : vector<16x128xf32> to vector<2x128xf32>
    %409 = arith.truncf %403 : vector<2x32xf32> to vector<2x32xbf16>
    %cst_78 = arith.constant dense<0.000000e+00> : vector<2x128xf32>
    %410 = tpu.matmul %409, %352, %cst_78 {dimension_numbers = #tpu.dot_dimension_numbers<[1], [0], [0], [1], [0, 0, 1, 1], [], []>} : vector<2x32xbf16>, vector<32x128xbf16>, vector<2x128xf32> -> vector<2x128xf32>
    %411 = arith.addf %408, %410 : vector<2x128xf32>
    %412 = vector.extract_strided_slice %407 {offsets = [0, 0], sizes = [2, 96], strides = [1, 1]} : vector<2x128xf32> to vector<2x96xf32>
    %413 = arith.negf %412 : vector<2x96xf32>
    %414 = math.exp %413 : vector<2x96xf32>
    %cst_79 = arith.constant 1.000000e+00 : f32
    %415 = vector.broadcast %cst_79 : f32 to vector<2x96xf32>
    %416 = arith.addf %415, %414 : vector<2x96xf32>
    %417 = arith.divf %415, %416 : vector<2x96xf32>
    %418 = vector.extract_strided_slice %407 {offsets = [0, 96], sizes = [2, 32], strides = [1, 1]} : vector<2x128xf32> to vector<2x32xf32>
    %419 = math.tanh %418 : vector<2x32xf32>
    %420 = vector.extract_strided_slice %411 {offsets = [0, 0], sizes = [2, 96], strides = [1, 1]} : vector<2x128xf32> to vector<2x96xf32>
    %421 = arith.negf %420 : vector<2x96xf32>
    %422 = math.exp %421 : vector<2x96xf32>
    %cst_80 = arith.constant 1.000000e+00 : f32
    %423 = vector.broadcast %cst_80 : f32 to vector<2x96xf32>
    %424 = arith.addf %423, %422 : vector<2x96xf32>
    %425 = arith.divf %423, %424 : vector<2x96xf32>
    %426 = vector.extract_strided_slice %411 {offsets = [0, 96], sizes = [2, 32], strides = [1, 1]} : vector<2x128xf32> to vector<2x32xf32>
    %427 = math.tanh %426 : vector<2x32xf32>
    %428 = vector.extract_strided_slice %417 {offsets = [0, 32], sizes = [2, 32], strides = [1, 1]} : vector<2x96xf32> to vector<2x32xf32>
    %429 = arith.mulf %428, %392 : vector<2x32xf32>
    %430 = vector.extract_strided_slice %417 {offsets = [0, 0], sizes = [2, 32], strides = [1, 1]} : vector<2x96xf32> to vector<2x32xf32>
    %431 = arith.mulf %430, %419 : vector<2x32xf32>
    %432 = arith.addf %429, %431 : vector<2x32xf32>
    %433 = vector.extract_strided_slice %425 {offsets = [0, 32], sizes = [2, 32], strides = [1, 1]} : vector<2x96xf32> to vector<2x32xf32>
    %434 = arith.mulf %433, %397 : vector<2x32xf32>
    %435 = vector.extract_strided_slice %425 {offsets = [0, 0], sizes = [2, 32], strides = [1, 1]} : vector<2x96xf32> to vector<2x32xf32>
    %436 = arith.mulf %435, %427 : vector<2x32xf32>
    %437 = arith.addf %434, %436 : vector<2x32xf32>
    %438 = vector.extract_strided_slice %417 {offsets = [0, 64], sizes = [2, 32], strides = [1, 1]} : vector<2x96xf32> to vector<2x32xf32>
    %439 = math.tanh %432 : vector<2x32xf32>
    %440 = arith.mulf %438, %439 : vector<2x32xf32>
    %441 = vector.extract_strided_slice %425 {offsets = [0, 64], sizes = [2, 32], strides = [1, 1]} : vector<2x96xf32> to vector<2x32xf32>
    %442 = math.tanh %437 : vector<2x32xf32>
    %443 = arith.mulf %441, %442 : vector<2x32xf32>
    %444 = arith.maximumf %400, %440 : vector<2x32xf32>
    %445 = arith.maximumf %403, %443 : vector<2x32xf32>
    %446 = vector.extract_strided_slice %356 {offsets = [4, 0], sizes = [2, 128], strides = [1, 1]} : vector<16x128xf32> to vector<2x128xf32>
    %447 = arith.truncf %440 : vector<2x32xf32> to vector<2x32xbf16>
    %cst_81 = arith.constant dense<0.000000e+00> : vector<2x128xf32>
    %448 = tpu.matmul %447, %349, %cst_81 {dimension_numbers = #tpu.dot_dimension_numbers<[1], [0], [0], [1], [0, 0, 1, 1], [], []>} : vector<2x32xbf16>, vector<32x128xbf16>, vector<2x128xf32> -> vector<2x128xf32>
    %449 = arith.addf %446, %448 : vector<2x128xf32>
    %450 = vector.extract_strided_slice %359 {offsets = [10, 0], sizes = [2, 128], strides = [1, 1]} : vector<16x128xf32> to vector<2x128xf32>
    %451 = arith.truncf %443 : vector<2x32xf32> to vector<2x32xbf16>
    %cst_82 = arith.constant dense<0.000000e+00> : vector<2x128xf32>
    %452 = tpu.matmul %451, %352, %cst_82 {dimension_numbers = #tpu.dot_dimension_numbers<[1], [0], [0], [1], [0, 0, 1, 1], [], []>} : vector<2x32xbf16>, vector<32x128xbf16>, vector<2x128xf32> -> vector<2x128xf32>
    %453 = arith.addf %450, %452 : vector<2x128xf32>
    %454 = vector.extract_strided_slice %449 {offsets = [0, 0], sizes = [2, 96], strides = [1, 1]} : vector<2x128xf32> to vector<2x96xf32>
    %455 = arith.negf %454 : vector<2x96xf32>
    %456 = math.exp %455 : vector<2x96xf32>
    %cst_83 = arith.constant 1.000000e+00 : f32
    %457 = vector.broadcast %cst_83 : f32 to vector<2x96xf32>
    %458 = arith.addf %457, %456 : vector<2x96xf32>
    %459 = arith.divf %457, %458 : vector<2x96xf32>
    %460 = vector.extract_strided_slice %449 {offsets = [0, 96], sizes = [2, 32], strides = [1, 1]} : vector<2x128xf32> to vector<2x32xf32>
    %461 = math.tanh %460 : vector<2x32xf32>
    %462 = vector.extract_strided_slice %453 {offsets = [0, 0], sizes = [2, 96], strides = [1, 1]} : vector<2x128xf32> to vector<2x96xf32>
    %463 = arith.negf %462 : vector<2x96xf32>
    %464 = math.exp %463 : vector<2x96xf32>
    %cst_84 = arith.constant 1.000000e+00 : f32
    %465 = vector.broadcast %cst_84 : f32 to vector<2x96xf32>
    %466 = arith.addf %465, %464 : vector<2x96xf32>
    %467 = arith.divf %465, %466 : vector<2x96xf32>
    %468 = vector.extract_strided_slice %453 {offsets = [0, 96], sizes = [2, 32], strides = [1, 1]} : vector<2x128xf32> to vector<2x32xf32>
    %469 = math.tanh %468 : vector<2x32xf32>
    %470 = vector.extract_strided_slice %459 {offsets = [0, 32], sizes = [2, 32], strides = [1, 1]} : vector<2x96xf32> to vector<2x32xf32>
    %471 = arith.mulf %470, %432 : vector<2x32xf32>
    %472 = vector.extract_strided_slice %459 {offsets = [0, 0], sizes = [2, 32], strides = [1, 1]} : vector<2x96xf32> to vector<2x32xf32>
    %473 = arith.mulf %472, %461 : vector<2x32xf32>
    %474 = arith.addf %471, %473 : vector<2x32xf32>
    %475 = vector.extract_strided_slice %467 {offsets = [0, 32], sizes = [2, 32], strides = [1, 1]} : vector<2x96xf32> to vector<2x32xf32>
    %476 = arith.mulf %475, %437 : vector<2x32xf32>
    %477 = vector.extract_strided_slice %467 {offsets = [0, 0], sizes = [2, 32], strides = [1, 1]} : vector<2x96xf32> to vector<2x32xf32>
    %478 = arith.mulf %477, %469 : vector<2x32xf32>
    %479 = arith.addf %476, %478 : vector<2x32xf32>
    %480 = vector.extract_strided_slice %459 {offsets = [0, 64], sizes = [2, 32], strides = [1, 1]} : vector<2x96xf32> to vector<2x32xf32>
    %481 = math.tanh %474 : vector<2x32xf32>
    %482 = arith.mulf %480, %481 : vector<2x32xf32>
    %483 = vector.extract_strided_slice %467 {offsets = [0, 64], sizes = [2, 32], strides = [1, 1]} : vector<2x96xf32> to vector<2x32xf32>
    %484 = math.tanh %479 : vector<2x32xf32>
    %485 = arith.mulf %483, %484 : vector<2x32xf32>
    %486 = arith.maximumf %444, %482 : vector<2x32xf32>
    %487 = arith.maximumf %445, %485 : vector<2x32xf32>
    %488 = vector.extract_strided_slice %356 {offsets = [6, 0], sizes = [2, 128], strides = [1, 1]} : vector<16x128xf32> to vector<2x128xf32>
    %489 = arith.truncf %482 : vector<2x32xf32> to vector<2x32xbf16>
    %cst_85 = arith.constant dense<0.000000e+00> : vector<2x128xf32>
    %490 = tpu.matmul %489, %349, %cst_85 {dimension_numbers = #tpu.dot_dimension_numbers<[1], [0], [0], [1], [0, 0, 1, 1], [], []>} : vector<2x32xbf16>, vector<32x128xbf16>, vector<2x128xf32> -> vector<2x128xf32>
    %491 = arith.addf %488, %490 : vector<2x128xf32>
    %492 = vector.extract_strided_slice %359 {offsets = [8, 0], sizes = [2, 128], strides = [1, 1]} : vector<16x128xf32> to vector<2x128xf32>
    %493 = arith.truncf %485 : vector<2x32xf32> to vector<2x32xbf16>
    %cst_86 = arith.constant dense<0.000000e+00> : vector<2x128xf32>
    %494 = tpu.matmul %493, %352, %cst_86 {dimension_numbers = #tpu.dot_dimension_numbers<[1], [0], [0], [1], [0, 0, 1, 1], [], []>} : vector<2x32xbf16>, vector<32x128xbf16>, vector<2x128xf32> -> vector<2x128xf32>
    %495 = arith.addf %492, %494 : vector<2x128xf32>
    %496 = vector.extract_strided_slice %491 {offsets = [0, 0], sizes = [2, 96], strides = [1, 1]} : vector<2x128xf32> to vector<2x96xf32>
    %497 = arith.negf %496 : vector<2x96xf32>
    %498 = math.exp %497 : vector<2x96xf32>
    %cst_87 = arith.constant 1.000000e+00 : f32
    %499 = vector.broadcast %cst_87 : f32 to vector<2x96xf32>
    %500 = arith.addf %499, %498 : vector<2x96xf32>
    %501 = arith.divf %499, %500 : vector<2x96xf32>
    %502 = vector.extract_strided_slice %491 {offsets = [0, 96], sizes = [2, 32], strides = [1, 1]} : vector<2x128xf32> to vector<2x32xf32>
    %503 = math.tanh %502 : vector<2x32xf32>
    %504 = vector.extract_strided_slice %495 {offsets = [0, 0], sizes = [2, 96], strides = [1, 1]} : vector<2x128xf32> to vector<2x96xf32>
    %505 = arith.negf %504 : vector<2x96xf32>
    %506 = math.exp %505 : vector<2x96xf32>
    %cst_88 = arith.constant 1.000000e+00 : f32
    %507 = vector.broadcast %cst_88 : f32 to vector<2x96xf32>
    %508 = arith.addf %507, %506 : vector<2x96xf32>
    %509 = arith.divf %507, %508 : vector<2x96xf32>
    %510 = vector.extract_strided_slice %495 {offsets = [0, 96], sizes = [2, 32], strides = [1, 1]} : vector<2x128xf32> to vector<2x32xf32>
    %511 = math.tanh %510 : vector<2x32xf32>
    %512 = vector.extract_strided_slice %501 {offsets = [0, 32], sizes = [2, 32], strides = [1, 1]} : vector<2x96xf32> to vector<2x32xf32>
    %513 = arith.mulf %512, %474 : vector<2x32xf32>
    %514 = vector.extract_strided_slice %501 {offsets = [0, 0], sizes = [2, 32], strides = [1, 1]} : vector<2x96xf32> to vector<2x32xf32>
    %515 = arith.mulf %514, %503 : vector<2x32xf32>
    %516 = arith.addf %513, %515 : vector<2x32xf32>
    %517 = vector.extract_strided_slice %509 {offsets = [0, 32], sizes = [2, 32], strides = [1, 1]} : vector<2x96xf32> to vector<2x32xf32>
    %518 = arith.mulf %517, %479 : vector<2x32xf32>
    %519 = vector.extract_strided_slice %509 {offsets = [0, 0], sizes = [2, 32], strides = [1, 1]} : vector<2x96xf32> to vector<2x32xf32>
    %520 = arith.mulf %519, %511 : vector<2x32xf32>
    %521 = arith.addf %518, %520 : vector<2x32xf32>
    %522 = vector.extract_strided_slice %501 {offsets = [0, 64], sizes = [2, 32], strides = [1, 1]} : vector<2x96xf32> to vector<2x32xf32>
    %523 = math.tanh %516 : vector<2x32xf32>
    %524 = arith.mulf %522, %523 : vector<2x32xf32>
    %525 = vector.extract_strided_slice %509 {offsets = [0, 64], sizes = [2, 32], strides = [1, 1]} : vector<2x96xf32> to vector<2x32xf32>
    %526 = math.tanh %521 : vector<2x32xf32>
    %527 = arith.mulf %525, %526 : vector<2x32xf32>
    %528 = arith.maximumf %486, %524 : vector<2x32xf32>
    %529 = arith.maximumf %487, %527 : vector<2x32xf32>
    %530 = vector.extract_strided_slice %356 {offsets = [8, 0], sizes = [2, 128], strides = [1, 1]} : vector<16x128xf32> to vector<2x128xf32>
    %531 = arith.truncf %524 : vector<2x32xf32> to vector<2x32xbf16>
    %cst_89 = arith.constant dense<0.000000e+00> : vector<2x128xf32>
    %532 = tpu.matmul %531, %349, %cst_89 {dimension_numbers = #tpu.dot_dimension_numbers<[1], [0], [0], [1], [0, 0, 1, 1], [], []>} : vector<2x32xbf16>, vector<32x128xbf16>, vector<2x128xf32> -> vector<2x128xf32>
    %533 = arith.addf %530, %532 : vector<2x128xf32>
    %534 = vector.extract_strided_slice %359 {offsets = [6, 0], sizes = [2, 128], strides = [1, 1]} : vector<16x128xf32> to vector<2x128xf32>
    %535 = arith.truncf %527 : vector<2x32xf32> to vector<2x32xbf16>
    %cst_90 = arith.constant dense<0.000000e+00> : vector<2x128xf32>
    %536 = tpu.matmul %535, %352, %cst_90 {dimension_numbers = #tpu.dot_dimension_numbers<[1], [0], [0], [1], [0, 0, 1, 1], [], []>} : vector<2x32xbf16>, vector<32x128xbf16>, vector<2x128xf32> -> vector<2x128xf32>
    %537 = arith.addf %534, %536 : vector<2x128xf32>
    %538 = vector.extract_strided_slice %533 {offsets = [0, 0], sizes = [2, 96], strides = [1, 1]} : vector<2x128xf32> to vector<2x96xf32>
    %539 = arith.negf %538 : vector<2x96xf32>
    %540 = math.exp %539 : vector<2x96xf32>
    %cst_91 = arith.constant 1.000000e+00 : f32
    %541 = vector.broadcast %cst_91 : f32 to vector<2x96xf32>
    %542 = arith.addf %541, %540 : vector<2x96xf32>
    %543 = arith.divf %541, %542 : vector<2x96xf32>
    %544 = vector.extract_strided_slice %533 {offsets = [0, 96], sizes = [2, 32], strides = [1, 1]} : vector<2x128xf32> to vector<2x32xf32>
    %545 = math.tanh %544 : vector<2x32xf32>
    %546 = vector.extract_strided_slice %537 {offsets = [0, 0], sizes = [2, 96], strides = [1, 1]} : vector<2x128xf32> to vector<2x96xf32>
    %547 = arith.negf %546 : vector<2x96xf32>
    %548 = math.exp %547 : vector<2x96xf32>
    %cst_92 = arith.constant 1.000000e+00 : f32
    %549 = vector.broadcast %cst_92 : f32 to vector<2x96xf32>
    %550 = arith.addf %549, %548 : vector<2x96xf32>
    %551 = arith.divf %549, %550 : vector<2x96xf32>
    %552 = vector.extract_strided_slice %537 {offsets = [0, 96], sizes = [2, 32], strides = [1, 1]} : vector<2x128xf32> to vector<2x32xf32>
    %553 = math.tanh %552 : vector<2x32xf32>
    %554 = vector.extract_strided_slice %543 {offsets = [0, 32], sizes = [2, 32], strides = [1, 1]} : vector<2x96xf32> to vector<2x32xf32>
    %555 = arith.mulf %554, %516 : vector<2x32xf32>
    %556 = vector.extract_strided_slice %543 {offsets = [0, 0], sizes = [2, 32], strides = [1, 1]} : vector<2x96xf32> to vector<2x32xf32>
    %557 = arith.mulf %556, %545 : vector<2x32xf32>
    %558 = arith.addf %555, %557 : vector<2x32xf32>
    %559 = vector.extract_strided_slice %551 {offsets = [0, 32], sizes = [2, 32], strides = [1, 1]} : vector<2x96xf32> to vector<2x32xf32>
    %560 = arith.mulf %559, %521 : vector<2x32xf32>
    %561 = vector.extract_strided_slice %551 {offsets = [0, 0], sizes = [2, 32], strides = [1, 1]} : vector<2x96xf32> to vector<2x32xf32>
    %562 = arith.mulf %561, %553 : vector<2x32xf32>
    %563 = arith.addf %560, %562 : vector<2x32xf32>
    %564 = vector.extract_strided_slice %543 {offsets = [0, 64], sizes = [2, 32], strides = [1, 1]} : vector<2x96xf32> to vector<2x32xf32>
    %565 = math.tanh %558 : vector<2x32xf32>
    %566 = arith.mulf %564, %565 : vector<2x32xf32>
    %567 = vector.extract_strided_slice %551 {offsets = [0, 64], sizes = [2, 32], strides = [1, 1]} : vector<2x96xf32> to vector<2x32xf32>
    %568 = math.tanh %563 : vector<2x32xf32>
    %569 = arith.mulf %567, %568 : vector<2x32xf32>
    %570 = arith.maximumf %528, %566 : vector<2x32xf32>
    %571 = arith.maximumf %529, %569 : vector<2x32xf32>
    %572 = vector.extract_strided_slice %356 {offsets = [10, 0], sizes = [2, 128], strides = [1, 1]} : vector<16x128xf32> to vector<2x128xf32>
    %573 = arith.truncf %566 : vector<2x32xf32> to vector<2x32xbf16>
    %cst_93 = arith.constant dense<0.000000e+00> : vector<2x128xf32>
    %574 = tpu.matmul %573, %349, %cst_93 {dimension_numbers = #tpu.dot_dimension_numbers<[1], [0], [0], [1], [0, 0, 1, 1], [], []>} : vector<2x32xbf16>, vector<32x128xbf16>, vector<2x128xf32> -> vector<2x128xf32>
    %575 = arith.addf %572, %574 : vector<2x128xf32>
    %576 = vector.extract_strided_slice %359 {offsets = [4, 0], sizes = [2, 128], strides = [1, 1]} : vector<16x128xf32> to vector<2x128xf32>
    %577 = arith.truncf %569 : vector<2x32xf32> to vector<2x32xbf16>
    %cst_94 = arith.constant dense<0.000000e+00> : vector<2x128xf32>
    %578 = tpu.matmul %577, %352, %cst_94 {dimension_numbers = #tpu.dot_dimension_numbers<[1], [0], [0], [1], [0, 0, 1, 1], [], []>} : vector<2x32xbf16>, vector<32x128xbf16>, vector<2x128xf32> -> vector<2x128xf32>
    %579 = arith.addf %576, %578 : vector<2x128xf32>
    %580 = vector.extract_strided_slice %575 {offsets = [0, 0], sizes = [2, 96], strides = [1, 1]} : vector<2x128xf32> to vector<2x96xf32>
    %581 = arith.negf %580 : vector<2x96xf32>
    %582 = math.exp %581 : vector<2x96xf32>
    %cst_95 = arith.constant 1.000000e+00 : f32
    %583 = vector.broadcast %cst_95 : f32 to vector<2x96xf32>
    %584 = arith.addf %583, %582 : vector<2x96xf32>
    %585 = arith.divf %583, %584 : vector<2x96xf32>
    %586 = vector.extract_strided_slice %575 {offsets = [0, 96], sizes = [2, 32], strides = [1, 1]} : vector<2x128xf32> to vector<2x32xf32>
    %587 = math.tanh %586 : vector<2x32xf32>
    %588 = vector.extract_strided_slice %579 {offsets = [0, 0], sizes = [2, 96], strides = [1, 1]} : vector<2x128xf32> to vector<2x96xf32>
    %589 = arith.negf %588 : vector<2x96xf32>
    %590 = math.exp %589 : vector<2x96xf32>
    %cst_96 = arith.constant 1.000000e+00 : f32
    %591 = vector.broadcast %cst_96 : f32 to vector<2x96xf32>
    %592 = arith.addf %591, %590 : vector<2x96xf32>
    %593 = arith.divf %591, %592 : vector<2x96xf32>
    %594 = vector.extract_strided_slice %579 {offsets = [0, 96], sizes = [2, 32], strides = [1, 1]} : vector<2x128xf32> to vector<2x32xf32>
    %595 = math.tanh %594 : vector<2x32xf32>
    %596 = vector.extract_strided_slice %585 {offsets = [0, 32], sizes = [2, 32], strides = [1, 1]} : vector<2x96xf32> to vector<2x32xf32>
    %597 = arith.mulf %596, %558 : vector<2x32xf32>
    %598 = vector.extract_strided_slice %585 {offsets = [0, 0], sizes = [2, 32], strides = [1, 1]} : vector<2x96xf32> to vector<2x32xf32>
    %599 = arith.mulf %598, %587 : vector<2x32xf32>
    %600 = arith.addf %597, %599 : vector<2x32xf32>
    %601 = vector.extract_strided_slice %593 {offsets = [0, 32], sizes = [2, 32], strides = [1, 1]} : vector<2x96xf32> to vector<2x32xf32>
    %602 = arith.mulf %601, %563 : vector<2x32xf32>
    %603 = vector.extract_strided_slice %593 {offsets = [0, 0], sizes = [2, 32], strides = [1, 1]} : vector<2x96xf32> to vector<2x32xf32>
    %604 = arith.mulf %603, %595 : vector<2x32xf32>
    %605 = arith.addf %602, %604 : vector<2x32xf32>
    %606 = vector.extract_strided_slice %585 {offsets = [0, 64], sizes = [2, 32], strides = [1, 1]} : vector<2x96xf32> to vector<2x32xf32>
    %607 = math.tanh %600 : vector<2x32xf32>
    %608 = arith.mulf %606, %607 : vector<2x32xf32>
    %609 = vector.extract_strided_slice %593 {offsets = [0, 64], sizes = [2, 32], strides = [1, 1]} : vector<2x96xf32> to vector<2x32xf32>
    %610 = math.tanh %605 : vector<2x32xf32>
    %611 = arith.mulf %609, %610 : vector<2x32xf32>
    %612 = arith.maximumf %570, %608 : vector<2x32xf32>
    %613 = arith.maximumf %571, %611 : vector<2x32xf32>
    %614 = vector.extract_strided_slice %356 {offsets = [12, 0], sizes = [2, 128], strides = [1, 1]} : vector<16x128xf32> to vector<2x128xf32>
    %615 = arith.truncf %608 : vector<2x32xf32> to vector<2x32xbf16>
    %cst_97 = arith.constant dense<0.000000e+00> : vector<2x128xf32>
    %616 = tpu.matmul %615, %349, %cst_97 {dimension_numbers = #tpu.dot_dimension_numbers<[1], [0], [0], [1], [0, 0, 1, 1], [], []>} : vector<2x32xbf16>, vector<32x128xbf16>, vector<2x128xf32> -> vector<2x128xf32>
    %617 = arith.addf %614, %616 : vector<2x128xf32>
    %618 = vector.extract_strided_slice %359 {offsets = [2, 0], sizes = [2, 128], strides = [1, 1]} : vector<16x128xf32> to vector<2x128xf32>
    %619 = arith.truncf %611 : vector<2x32xf32> to vector<2x32xbf16>
    %cst_98 = arith.constant dense<0.000000e+00> : vector<2x128xf32>
    %620 = tpu.matmul %619, %352, %cst_98 {dimension_numbers = #tpu.dot_dimension_numbers<[1], [0], [0], [1], [0, 0, 1, 1], [], []>} : vector<2x32xbf16>, vector<32x128xbf16>, vector<2x128xf32> -> vector<2x128xf32>
    %621 = arith.addf %618, %620 : vector<2x128xf32>
    %622 = vector.extract_strided_slice %617 {offsets = [0, 0], sizes = [2, 96], strides = [1, 1]} : vector<2x128xf32> to vector<2x96xf32>
    %623 = arith.negf %622 : vector<2x96xf32>
    %624 = math.exp %623 : vector<2x96xf32>
    %cst_99 = arith.constant 1.000000e+00 : f32
    %625 = vector.broadcast %cst_99 : f32 to vector<2x96xf32>
    %626 = arith.addf %625, %624 : vector<2x96xf32>
    %627 = arith.divf %625, %626 : vector<2x96xf32>
    %628 = vector.extract_strided_slice %617 {offsets = [0, 96], sizes = [2, 32], strides = [1, 1]} : vector<2x128xf32> to vector<2x32xf32>
    %629 = math.tanh %628 : vector<2x32xf32>
    %630 = vector.extract_strided_slice %621 {offsets = [0, 0], sizes = [2, 96], strides = [1, 1]} : vector<2x128xf32> to vector<2x96xf32>
    %631 = arith.negf %630 : vector<2x96xf32>
    %632 = math.exp %631 : vector<2x96xf32>
    %cst_100 = arith.constant 1.000000e+00 : f32
    %633 = vector.broadcast %cst_100 : f32 to vector<2x96xf32>
    %634 = arith.addf %633, %632 : vector<2x96xf32>
    %635 = arith.divf %633, %634 : vector<2x96xf32>
    %636 = vector.extract_strided_slice %621 {offsets = [0, 96], sizes = [2, 32], strides = [1, 1]} : vector<2x128xf32> to vector<2x32xf32>
    %637 = math.tanh %636 : vector<2x32xf32>
    %638 = vector.extract_strided_slice %627 {offsets = [0, 32], sizes = [2, 32], strides = [1, 1]} : vector<2x96xf32> to vector<2x32xf32>
    %639 = arith.mulf %638, %600 : vector<2x32xf32>
    %640 = vector.extract_strided_slice %627 {offsets = [0, 0], sizes = [2, 32], strides = [1, 1]} : vector<2x96xf32> to vector<2x32xf32>
    %641 = arith.mulf %640, %629 : vector<2x32xf32>
    %642 = arith.addf %639, %641 : vector<2x32xf32>
    %643 = vector.extract_strided_slice %635 {offsets = [0, 32], sizes = [2, 32], strides = [1, 1]} : vector<2x96xf32> to vector<2x32xf32>
    %644 = arith.mulf %643, %605 : vector<2x32xf32>
    %645 = vector.extract_strided_slice %635 {offsets = [0, 0], sizes = [2, 32], strides = [1, 1]} : vector<2x96xf32> to vector<2x32xf32>
    %646 = arith.mulf %645, %637 : vector<2x32xf32>
    %647 = arith.addf %644, %646 : vector<2x32xf32>
    %648 = vector.extract_strided_slice %627 {offsets = [0, 64], sizes = [2, 32], strides = [1, 1]} : vector<2x96xf32> to vector<2x32xf32>
    %649 = math.tanh %642 : vector<2x32xf32>
    %650 = arith.mulf %648, %649 : vector<2x32xf32>
    %651 = vector.extract_strided_slice %635 {offsets = [0, 64], sizes = [2, 32], strides = [1, 1]} : vector<2x96xf32> to vector<2x32xf32>
    %652 = math.tanh %647 : vector<2x32xf32>
    %653 = arith.mulf %651, %652 : vector<2x32xf32>
    %654 = arith.maximumf %612, %650 : vector<2x32xf32>
    %655 = arith.maximumf %613, %653 : vector<2x32xf32>
    %656 = vector.extract_strided_slice %356 {offsets = [14, 0], sizes = [2, 128], strides = [1, 1]} : vector<16x128xf32> to vector<2x128xf32>
    %657 = arith.truncf %650 : vector<2x32xf32> to vector<2x32xbf16>
    %cst_101 = arith.constant dense<0.000000e+00> : vector<2x128xf32>
    %658 = tpu.matmul %657, %349, %cst_101 {dimension_numbers = #tpu.dot_dimension_numbers<[1], [0], [0], [1], [0, 0, 1, 1], [], []>} : vector<2x32xbf16>, vector<32x128xbf16>, vector<2x128xf32> -> vector<2x128xf32>
    %659 = arith.addf %656, %658 : vector<2x128xf32>
    %660 = vector.extract_strided_slice %359 {offsets = [0, 0], sizes = [2, 128], strides = [1, 1]} : vector<16x128xf32> to vector<2x128xf32>
    %661 = arith.truncf %653 : vector<2x32xf32> to vector<2x32xbf16>
    %cst_102 = arith.constant dense<0.000000e+00> : vector<2x128xf32>
    %662 = tpu.matmul %661, %352, %cst_102 {dimension_numbers = #tpu.dot_dimension_numbers<[1], [0], [0], [1], [0, 0, 1, 1], [], []>} : vector<2x32xbf16>, vector<32x128xbf16>, vector<2x128xf32> -> vector<2x128xf32>
    %663 = arith.addf %660, %662 : vector<2x128xf32>
    %664 = vector.extract_strided_slice %659 {offsets = [0, 0], sizes = [2, 96], strides = [1, 1]} : vector<2x128xf32> to vector<2x96xf32>
    %665 = arith.negf %664 : vector<2x96xf32>
    %666 = math.exp %665 : vector<2x96xf32>
    %cst_103 = arith.constant 1.000000e+00 : f32
    %667 = vector.broadcast %cst_103 : f32 to vector<2x96xf32>
    %668 = arith.addf %667, %666 : vector<2x96xf32>
    %669 = arith.divf %667, %668 : vector<2x96xf32>
    %670 = vector.extract_strided_slice %659 {offsets = [0, 96], sizes = [2, 32], strides = [1, 1]} : vector<2x128xf32> to vector<2x32xf32>
    %671 = math.tanh %670 : vector<2x32xf32>
    %672 = vector.extract_strided_slice %663 {offsets = [0, 0], sizes = [2, 96], strides = [1, 1]} : vector<2x128xf32> to vector<2x96xf32>
    %673 = arith.negf %672 : vector<2x96xf32>
    %674 = math.exp %673 : vector<2x96xf32>
    %cst_104 = arith.constant 1.000000e+00 : f32
    %675 = vector.broadcast %cst_104 : f32 to vector<2x96xf32>
    %676 = arith.addf %675, %674 : vector<2x96xf32>
    %677 = arith.divf %675, %676 : vector<2x96xf32>
    %678 = vector.extract_strided_slice %663 {offsets = [0, 96], sizes = [2, 32], strides = [1, 1]} : vector<2x128xf32> to vector<2x32xf32>
    %679 = math.tanh %678 : vector<2x32xf32>
    %680 = vector.extract_strided_slice %669 {offsets = [0, 32], sizes = [2, 32], strides = [1, 1]} : vector<2x96xf32> to vector<2x32xf32>
    %681 = arith.mulf %680, %642 : vector<2x32xf32>
    %682 = vector.extract_strided_slice %669 {offsets = [0, 0], sizes = [2, 32], strides = [1, 1]} : vector<2x96xf32> to vector<2x32xf32>
    %683 = arith.mulf %682, %671 : vector<2x32xf32>
    %684 = arith.addf %681, %683 : vector<2x32xf32>
    %685 = vector.extract_strided_slice %677 {offsets = [0, 32], sizes = [2, 32], strides = [1, 1]} : vector<2x96xf32> to vector<2x32xf32>
    %686 = arith.mulf %685, %647 : vector<2x32xf32>
    %687 = vector.extract_strided_slice %677 {offsets = [0, 0], sizes = [2, 32], strides = [1, 1]} : vector<2x96xf32> to vector<2x32xf32>
    %688 = arith.mulf %687, %679 : vector<2x32xf32>
    %689 = arith.addf %686, %688 : vector<2x32xf32>
    %690 = vector.extract_strided_slice %669 {offsets = [0, 64], sizes = [2, 32], strides = [1, 1]} : vector<2x96xf32> to vector<2x32xf32>
    %691 = math.tanh %684 : vector<2x32xf32>
    %692 = arith.mulf %690, %691 : vector<2x32xf32>
    %693 = vector.extract_strided_slice %677 {offsets = [0, 64], sizes = [2, 32], strides = [1, 1]} : vector<2x96xf32> to vector<2x32xf32>
    %694 = math.tanh %689 : vector<2x32xf32>
    %695 = arith.mulf %693, %694 : vector<2x32xf32>
    %696 = arith.maximumf %654, %692 : vector<2x32xf32>
    %697 = arith.maximumf %655, %695 : vector<2x32xf32>
    %698 = tpu.concatenate %696, %697 in 1 : vector<2x32xf32>, vector<2x32xf32> -> vector<2x64xf32>
    %c0_105 = arith.constant 0 : index
    %c0_106 = arith.constant 0 : index
    %699 = vector.load %arg14[%c0_105, %c0_106] : memref<64x32xf32, #tpu.memory_space<vmem>>, vector<64x32xf32>
    %cst_107 = arith.constant dense<0.000000e+00> : vector<2x32xf32>
    %700 = tpu.matmul %698, %699, %cst_107 {dimension_numbers = #tpu.dot_dimension_numbers<[1], [0], [0], [1], [0, 0, 1, 1], [], []>} : vector<2x64xf32>, vector<64x32xf32>, vector<2x32xf32> -> vector<2x32xf32>
    %c0_108 = arith.constant 0 : index
    %c0_109 = arith.constant 0 : index
    %701 = vector.load %arg15[%c0_108, %c0_109] : memref<1x32xf32, #tpu.memory_space<vmem>>, vector<1x32xf32>
    %702 = vector.broadcast %701 : vector<1x32xf32> to vector<2x32xf32>
    %703 = arith.addf %700, %702 : vector<2x32xf32>
    %c0_110 = arith.constant 0 : index
    %c0_111 = arith.constant 0 : index
    %704 = vector.load %arg16[%c0_110, %c0_111] : memref<2x32xf32, #tpu.memory_space<vmem>>, vector<2x32xf32>
    tpu.vector_store %arg16[%c0_110, %c0_111], %703 {strides = array<i32>} : memref<2x32xf32, #tpu.memory_space<vmem>>, vector<2x32xf32>,
    return
  }
}

</mosaic_0001>

<llo_original>
// kernel: bilstm_kmer_branch.1
$region0: #{bilstm_kmer_branch.1}
  #allocation0 [shape = 'u32[]', space=smem, size = 0x4, offset = 0x4, fixed_abs, tag = 'smem constant byte address 0x4 - core index']
  #allocation1 [shape = 'u32[144,128]{1,0:T(1,128)}', space=vmem, size = 0x12000, scoped, tag = 'internal scratch']
  %s0 = inlined_call_operand.vmem [shape: s32[16,1], index: 0, kind: input, shape index: {}]
  %s1 = inlined_call_operand.vmem [shape: f32[16,128], index: 1, kind: input, shape index: {}]
  %s2 = inlined_call_operand.vmem [shape: f32[128,128], index: 2, kind: input, shape index: {}]
  %s3 = inlined_call_operand.vmem [shape: bf16[32,128], index: 3, kind: input, shape index: {}]
  %s4 = inlined_call_operand.vmem [shape: f32[1,128], index: 4, kind: input, shape index: {}]
  %s5 = inlined_call_operand.vmem [shape: f32[128,128], index: 5, kind: input, shape index: {}]
  %s6 = inlined_call_operand.vmem [shape: bf16[32,128], index: 6, kind: input, shape index: {}]
  %s7 = inlined_call_operand.vmem [shape: f32[1,128], index: 7, kind: input, shape index: {}]
  %s8 = inlined_call_operand.vmem [shape: f32[64,128], index: 8, kind: input, shape index: {}]
  %s9 = inlined_call_operand.vmem [shape: bf16[32,128], index: 9, kind: input, shape index: {}]
  %s10 = inlined_call_operand.vmem [shape: f32[1,128], index: 10, kind: input, shape index: {}]
  %s11 = inlined_call_operand.vmem [shape: f32[64,128], index: 11, kind: input, shape index: {}]
  %s12 = inlined_call_operand.vmem [shape: bf16[32,128], index: 12, kind: input, shape index: {}]
  %s13 = inlined_call_operand.vmem [shape: f32[1,128], index: 13, kind: input, shape index: {}]
  %s14 = inlined_call_operand.vmem [shape: f32[64,32], index: 14, kind: input, shape index: {}]
  %s15 = inlined_call_operand.vmem [shape: f32[1,32], index: 15, kind: input, shape index: {}]
  %s16 = inlined_call_operand.hbm [shape: f32[2,32], index: 16, kind: output, shape index: {}]
  %s17 = sld [smem:[#allocation0]]
  $region74: #{bilstm_kmer_branch.1} parent=0
    _
  %s19 = ssub.s32 1, %s17
  %s20 = scalar_select 0, %s19, %s17
  $region1: #{bilstm_kmer_branch.1} parent=0
    #allocation2 [shape = 'u8[1024]{0}', space=vmem, size = 0x400, scoped, tag = 'output window, operand 0, single buffered']
    #allocation3 [shape = 's32[1]{0}', space=sflag, size = 0x4, scoped, tag = 'scoped memory for bilstm_kmer_branch.1']
    %21 = vsyncpa [#allocation3], 0
    // Predicated region
    $region2: #{bilstm_kmer_branch.1} parent=1 // pred_check
      _
    $region3: #{bilstm_kmer_branch.1} parent=1 // pred_check_branch
      %23 = sbr.rel (0) target = $region5
    $region4: #{bilstm_kmer_branch.1} parent=1 // pred_region
      _
    $region5: #{bilstm_kmer_branch.1} parent=1 // pred_fallthru
      _
    // Predicated region
    $region6: #{bilstm_kmer_branch.1} parent=1 // pred_check
      _
    $region7: #{bilstm_kmer_branch.1} parent=1 // pred_check_branch
      %25 = sbr.rel (0) target = $region9
    $region8: #{bilstm_kmer_branch.1} parent=1 // pred_region
      _
    $region9: #{bilstm_kmer_branch.1} parent=1 // pred_fallthru
      _
    // Predicated region
    $region10: #{bilstm_kmer_branch.1} parent=1 // pred_check
      _
    $region11: #{bilstm_kmer_branch.1} parent=1 // pred_check_branch
      %27 = sbr.rel (0) target = $region13
    $region12: #{bilstm_kmer_branch.1} parent=1 // pred_region
      _
    $region13: #{bilstm_kmer_branch.1} parent=1 // pred_fallthru
      _
    // Predicated region
    $region14: #{bilstm_kmer_branch.1} parent=1 // pred_check
      _
    $region15: #{bilstm_kmer_branch.1} parent=1 // pred_check_branch
      %29 = sbr.rel (0) target = $region17
    $region16: #{bilstm_kmer_branch.1} parent=1 // pred_region
      _
    $region17: #{bilstm_kmer_branch.1} parent=1 // pred_fallthru
      _
    // Predicated region
    $region18: #{bilstm_kmer_branch.1} parent=1 // pred_check
      _
    $region19: #{bilstm_kmer_branch.1} parent=1 // pred_check_branch
      %31 = sbr.rel (0) target = $region21
    $region20: #{bilstm_kmer_branch.1} parent=1 // pred_region
      _
    $region21: #{bilstm_kmer_branch.1} parent=1 // pred_fallthru
      _
    // Predicated region
    $region22: #{bilstm_kmer_branch.1} parent=1 // pred_check
      _
    $region23: #{bilstm_kmer_branch.1} parent=1 // pred_check_branch
      %33 = sbr.rel (0) target = $region25
    $region24: #{bilstm_kmer_branch.1} parent=1 // pred_region
      _
    $region25: #{bilstm_kmer_branch.1} parent=1 // pred_fallthru
      _
    // Predicated region
    $region26: #{bilstm_kmer_branch.1} parent=1 // pred_check
      _
    $region27: #{bilstm_kmer_branch.1} parent=1 // pred_check_branch
      %35 = sbr.rel (0) target = $region29
    $region28: #{bilstm_kmer_branch.1} parent=1 // pred_region
      _
    $region29: #{bilstm_kmer_branch.1} parent=1 // pred_fallthru
      _
    // Predicated region
    $region30: #{bilstm_kmer_branch.1} parent=1 // pred_check
      _
    $region31: #{bilstm_kmer_branch.1} parent=1 // pred_check_branch
      %37 = sbr.rel (0) target = $region33
    $region32: #{bilstm_kmer_branch.1} parent=1 // pred_region
      _
    $region33: #{bilstm_kmer_branch.1} parent=1 // pred_fallthru
      _
    // Predicated region
    $region34: #{bilstm_kmer_branch.1} parent=1 // pred_check
      _
    $region35: #{bilstm_kmer_branch.1} parent=1 // pred_check_branch
      %39 = sbr.rel (0) target = $region37
    $region36: #{bilstm_kmer_branch.1} parent=1 // pred_region
      _
    $region37: #{bilstm_kmer_branch.1} parent=1 // pred_fallthru
      _
    // Predicated region
    $region38: #{bilstm_kmer_branch.1} parent=1 // pred_check
      _
    $region39: #{bilstm_kmer_branch.1} parent=1 // pred_check_branch
      %41 = sbr.rel (0) target = $region41
    $region40: #{bilstm_kmer_branch.1} parent=1 // pred_region
      _
    $region41: #{bilstm_kmer_branch.1} parent=1 // pred_fallthru
      _
    // Predicated region
    $region42: #{bilstm_kmer_branch.1} parent=1 // pred_check
      _
    $region43: #{bilstm_kmer_branch.1} parent=1 // pred_check_branch
      %43 = sbr.rel (0) target = $region45
    $region44: #{bilstm_kmer_branch.1} parent=1 // pred_region
      _
    $region45: #{bilstm_kmer_branch.1} parent=1 // pred_fallthru
      _
    // Predicated region
    $region46: #{bilstm_kmer_branch.1} parent=1 // pred_check
      _
    $region47: #{bilstm_kmer_branch.1} parent=1 // pred_check_branch
      %45 = sbr.rel (0) target = $region49
    $region48: #{bilstm_kmer_branch.1} parent=1 // pred_region
      _
    $region49: #{bilstm_kmer_branch.1} parent=1 // pred_fallthru
      _
    // Predicated region
    $region50: #{bilstm_kmer_branch.1} parent=1 // pred_check
      _
    $region51: #{bilstm_kmer_branch.1} parent=1 // pred_check_branch
      %47 = sbr.rel (0) target = $region53
    $region52: #{bilstm_kmer_branch.1} parent=1 // pred_region
      _
    $region53: #{bilstm_kmer_branch.1} parent=1 // pred_fallthru
      _
    // Predicated region
    $region54: #{bilstm_kmer_branch.1} parent=1 // pred_check
      _
    $region55: #{bilstm_kmer_branch.1} parent=1 // pred_check_branch
      %49 = sbr.rel (0) target = $region57
    $region56: #{bilstm_kmer_branch.1} parent=1 // pred_region
      _
    $region57: #{bilstm_kmer_branch.1} parent=1 // pred_fallthru
      _
    // Predicated region
    $region58: #{bilstm_kmer_branch.1} parent=1 // pred_check
      _
    $region59: #{bilstm_kmer_branch.1} parent=1 // pred_check_branch
      %51 = sbr.rel (0) target = $region61
    $region60: #{bilstm_kmer_branch.1} parent=1 // pred_region
      _
    $region61: #{bilstm_kmer_branch.1} parent=1 // pred_fallthru
      _
    // Predicated region
    $region62: #{bilstm_kmer_branch.1} parent=1 // pred_check
      _
    $region63: #{bilstm_kmer_branch.1} parent=1 // pred_check_branch
      %53 = sbr.rel (0) target = $region65
    $region64: #{bilstm_kmer_branch.1} parent=1 // pred_region
      _
    $region65: #{bilstm_kmer_branch.1} parent=1 // pred_fallthru
      _
    %v55 = vld [vmem:[%s0] sm:$0xff]
    %v56 = vld [vmem:[%s0 + $0x8] sm:$0xff]
    %v57 = vlaneseq
    %v58 = vand.u32 %v57, 127
    %59 = vset.pattern.permute.xlu0 0
    %60 = vperm.xlu0 %59, %v55
    %v61 = vpop.permute.xlu0 %60
    %62 = vset.pattern.permute.xlu0 0
    %63 = vperm.xlu0 %62, %v56
    %v64 = vpop.permute.xlu0 %63
    %vm65 = vcmp.eq.s32.totalorder %v61, %v58
    %vm66 = vcmp.eq.s32.totalorder %v64, %v58
    %v67 = vsel %vm65, 1.0, 0.0
    %v68 = vsel %vm66, 1.0, 0.0
    %v69 = vld [vmem:[%s1] sm:$0xff]
    %v70 = vld [vmem:[%s1 + $0x8] sm:$0xff]
    %vm71 = vcmask 130048
    %v73 = vsel %vm71, %v67, 0
    %v76 = vsel %vm71, %v68, 0
    %78 = vmatprep.subr.mxu0 0.0
    %79 = vmatpush1.msra.mxu0 %v69
    %80 = vmatprep.subr.mxu0 0.0
    %81 = vmatpush1.msra.mxu0 %v70
    %82 = vmatprep.subr.mxu0 0.0
    %83 = vmatpush1.msra.mxu0 0.0
    %84 = vmatprep.subr.mxu0 0.0
    %85 = vmatpush1.msra.mxu0 0.0
    %86 = vmatprep.subr.mxu0 0.0
    %87 = vmatpush1.msra.mxu0 0.0
    %88 = vmatprep.subr.mxu0 0.0
    %89 = vmatpush1.msra.mxu0 0.0
    %90 = vmatprep.subr.mxu0 0.0
    %91 = vmatpush1.msra.mxu0 0.0
    %92 = vmatprep.subr.mxu0 0.0
    %93 = vmatpush1.msra.mxu0 0.0
    %94 = vmatprep.subr.mxu0 0.0
    %95 = vmatpush1.msra.mxu0 0.0
    %96 = vmatprep.subr.mxu0 0.0
    %97 = vmatpush1.msra.mxu0 0.0
    %98 = vmatprep.subr.mxu0 0.0
    %99 = vmatpush1.msra.mxu0 0.0
    %100 = vmatprep.subr.mxu0 0.0
    %101 = vmatpush1.msra.mxu0 0.0
    %102 = vmatprep.subr.mxu0 0.0
    %103 = vmatpush1.msra.mxu0 0.0
    %104 = vmatprep.subr.mxu0 0.0
    %105 = vmatpush1.msra.mxu0 0.0
    %106 = vmatprep.subr.mxu0 0.0
    %107 = vmatpush1.msra.mxu0 0.0
    %108 = vmatprep.subr.mxu0 0.0
    %109 = vmatpush1.msra.mxu0 0.0
    %110 = vmatprep.subr.mxu0 0.0
    %111 = vmatpush1.msra.mxu0 0.0
    %112 = vmatprep.subr.mxu0 0.0
    %113 = vmatpush1.msra.mxu0 0.0
    %114 = vmatprep.subr.mxu0 0.0
    %115 = vmatpush1.msra.mxu0 0.0
    %116 = vmatprep.subr.mxu0 0.0
    %117 = vmatpush1.msra.mxu0 0.0
    %118 = vmatprep.subr.mxu0 0.0
    %119 = vmatpush1.msra.mxu0 0.0
    %120 = vmatprep.subr.mxu0 0.0
    %121 = vmatpush1.msra.mxu0 0.0
    %122 = vmatprep.subr.mxu0 0.0
    %123 = vmatpush1.msra.mxu0 0.0
    %124 = vmatprep.subr.mxu0 0.0
    %125 = vmatpush1.msra.mxu0 0.0
    %126 = vmatprep.subr.mxu0 0.0
    %127 = vmatpush1.msra.mxu0 0.0
    %128 = vmatprep.subr.mxu0 0.0
    %129 = vmatpush1.msra.mxu0 0.0
    %130 = vmatprep.subr.mxu0 0.0
    %131 = vmatpush1.msra.mxu0 0.0
    %132 = vmatprep.subr.mxu0 0.0
    %133 = vmatpush1.msra.mxu0 0.0
    %134 = vmatprep.subr.mxu0 0.0
    %135 = vmatpush1.msra.mxu0 0.0
    %136 = vmatprep.subr.mxu0 0.0
    %137 = vmatpush1.msra.mxu0 0.0
    %138 = vmatprep.subr.mxu0 0.0
    %139 = vmatpush1.msra.mxu0 0.0
    %140 = vmatprep.subr.mxu0 0.0
    %141 = vmatpush1.msra.mxu0 0.0
    %142 = vmatprep.mubr.f32.mxu0 0.0
    %143 = vmatmul.mubr.f32.gmra.mrb[0].mxu0 %v73
    %v144 = vpop.f32.mrb[0].mxu0
    %v145 = vadd.f32 0.0, %v144
    %v146 = vpop.f32.mrb[0].mxu0
    %147 = vmatprep.mubr.f32.mxu0 0.0
    %148 = vmatmul.mubr.f32.gmra.mrb[0].mxu0 %v76
    %v149 = vpop.f32.mrb[0].mxu0
    %v150 = vadd.f32 0.0, %v149
    %v151 = vpop.f32.mrb[0].mxu0
    %152 = vdwg.mxu0
    %v153 = vld [vmem:[%s2] sm:$0xff]
    %v154 = vld [vmem:[%s2 + $0x8] sm:$0xff]
    %v155 = vld [vmem:[%s2 + $0x10] sm:$0xff]
    %v156 = vld [vmem:[%s2 + $0x18] sm:$0xff]
    %v157 = vld [vmem:[%s2 + $0x20] sm:$0xff]
    %v158 = vld [vmem:[%s2 + $0x28] sm:$0xff]
    %v159 = vld [vmem:[%s2 + $0x30] sm:$0xff]
    %v160 = vld [vmem:[%s2 + $0x38] sm:$0xff]
    %v161 = vld [vmem:[%s2 + $0x40] sm:$0xff]
    %v162 = vld [vmem:[%s2 + $0x48] sm:$0xff]
    %v163 = vld [vmem:[%s2 + $0x50] sm:$0xff]
    %v164 = vld [vmem:[%s2 + $0x58] sm:$0xff]
    %v165 = vld [vmem:[%s2 + $0x60] sm:$0xff]
    %v166 = vld [vmem:[%s2 + $0x68] sm:$0xff]
    %v167 = vld [vmem:[%s2 + $0x70] sm:$0xff]
    %v168 = vld [vmem:[%s2 + $0x78] sm:$0xff]
    %v169 = vld [vmem:[%s3] sm:$0xf]
    %v170 = vld [vmem:[%s3 + $0x4] sm:$0xf]
    %v171 = vld [vmem:[%s3 + $0x8] sm:$0xf]
    %v172 = vld [vmem:[%s3 + $0xc] sm:$0xf]
    %v173 = vld [vmem:[%s4] sm:$0x1]
    %v174 = vld [vmem:[%s5] sm:$0xff]
    %v175 = vld [vmem:[%s5 + $0x8] sm:$0xff]
    %v176 = vld [vmem:[%s5 + $0x10] sm:$0xff]
    %v177 = vld [vmem:[%s5 + $0x18] sm:$0xff]
    %v178 = vld [vmem:[%s5 + $0x20] sm:$0xff]
    %v179 = vld [vmem:[%s5 + $0x28] sm:$0xff]
    %v180 = vld [vmem:[%s5 + $0x30] sm:$0xff]
    %v181 = vld [vmem:[%s5 + $0x38] sm:$0xff]
    %v182 = vld [vmem:[%s5 + $0x40] sm:$0xff]
    %v183 = vld [vmem:[%s5 + $0x48] sm:$0xff]
    %v184 = vld [vmem:[%s5 + $0x50] sm:$0xff]
    %v185 = vld [vmem:[%s5 + $0x58] sm:$0xff]
    %v186 = vld [vmem:[%s5 + $0x60] sm:$0xff]
    %v187 = vld [vmem:[%s5 + $0x68] sm:$0xff]
    %v188 = vld [vmem:[%s5 + $0x70] sm:$0xff]
    %v189 = vld [vmem:[%s5 + $0x78] sm:$0xff]
    %v190 = vld [vmem:[%s6] sm:$0xf]
    %v191 = vld [vmem:[%s6 + $0x4] sm:$0xf]
    %v192 = vld [vmem:[%s6 + $0x8] sm:$0xf]
    %v193 = vld [vmem:[%s6 + $0xc] sm:$0xf]
    %v194 = vld [vmem:[%s7] sm:$0x1]
    %v196 = vlaneseq
    %v197 = vshrl.u32 %v196, 7
    %v198 = vsub.s32 0, %v197
    %v199 = vrot.slane %v173, %v198
    %201 = vmatprep.subr.mxu0 0.0
    %202 = vmatpush1.msra.mxu0 %v153
    %203 = vmatprep.subr.mxu0 0.0
    %204 = vmatpush1.msra.mxu0 %v154
    %205 = vmatprep.subr.mxu0 0.0
    %206 = vmatpush1.msra.mxu0 %v155
    %207 = vmatprep.subr.mxu0 0.0
    %208 = vmatpush1.msra.mxu0 %v156
    %209 = vmatprep.subr.mxu0 0.0
    %210 = vmatpush1.msra.mxu0 %v157
    %211 = vmatprep.subr.mxu0 0.0
    %212 = vmatpush1.msra.mxu0 %v158
    %213 = vmatprep.subr.mxu0 0.0
    %214 = vmatpush1.msra.mxu0 %v159
    %215 = vmatprep.subr.mxu0 0.0
    %216 = vmatpush1.msra.mxu0 %v160
    %217 = vmatprep.subr.mxu0 0.0
    %218 = vmatpush1.msra.mxu0 %v161
    %219 = vmatprep.subr.mxu0 0.0
    %220 = vmatpush1.msra.mxu0 %v162
    %221 = vmatprep.subr.mxu0 0.0
    %222 = vmatpush1.msra.mxu0 %v163
    %223 = vmatprep.subr.mxu0 0.0
    %224 = vmatpush1.msra.mxu0 %v164
    %225 = vmatprep.subr.mxu0 0.0
    %226 = vmatpush1.msra.mxu0 %v165
    %227 = vmatprep.subr.mxu0 0.0
    %228 = vmatpush1.msra.mxu0 %v166
    %229 = vmatprep.subr.mxu0 0.0
    %230 = vmatpush1.msra.mxu0 %v167
    %231 = vmatprep.subr.mxu0 0.0
    %232 = vmatpush1.msra.mxu0 %v168
    %233 = vmatprep.subr.mxu0 0.0
    %234 = vmatpush1.msra.mxu0 0.0
    %235 = vmatprep.subr.mxu0 0.0
    %236 = vmatpush1.msra.mxu0 0.0
    %237 = vmatprep.subr.mxu0 0.0
    %238 = vmatpush1.msra.mxu0 0.0
    %239 = vmatprep.subr.mxu0 0.0
    %240 = vmatpush1.msra.mxu0 0.0
    %241 = vmatprep.subr.mxu0 0.0
    %242 = vmatpush1.msra.mxu0 0.0
    %243 = vmatprep.subr.mxu0 0.0
    %244 = vmatpush1.msra.mxu0 0.0
    %245 = vmatprep.subr.mxu0 0.0
    %246 = vmatpush1.msra.mxu0 0.0
    %247 = vmatprep.subr.mxu0 0.0
    %248 = vmatpush1.msra.mxu0 0.0
    %249 = vmatprep.subr.mxu0 0.0
    %250 = vmatpush1.msra.mxu0 0.0
    %251 = vmatprep.subr.mxu0 0.0
    %252 = vmatpush1.msra.mxu0 0.0
    %253 = vmatprep.subr.mxu0 0.0
    %254 = vmatpush1.msra.mxu0 0.0
    %255 = vmatprep.subr.mxu0 0.0
    %256 = vmatpush1.msra.mxu0 0.0
    %257 = vmatprep.subr.mxu0 0.0
    %258 = vmatpush1.msra.mxu0 0.0
    %259 = vmatprep.subr.mxu0 0.0
    %260 = vmatpush1.msra.mxu0 0.0
    %261 = vmatprep.subr.mxu0 0.0
    %262 = vmatpush1.msra.mxu0 0.0
    %263 = vmatprep.subr.mxu0 0.0
    %264 = vmatpush1.msra.mxu0 0.0
    %265 = vmatprep.mubr.f32.mxu0 0.0
    %266 = vmatmul.mubr.f32.gmra.mrb[0].mxu0 %v145
    %v267 = vpop.f32.mrb[0].mxu0
    %v268 = vadd.f32 %v199, %v267
    %v269 = vpop.f32.mrb[0].mxu0
    %270 = vmatprep.mubr.f32.mxu0 0.0
    %271 = vmatmul.mubr.f32.gmra.mrb[0].mxu0 %v150
    %v272 = vpop.f32.mrb[0].mxu0
    %v273 = vadd.f32 %v199, %v272
    %v274 = vpop.f32.mrb[0].mxu0
    %275 = vdwg.mxu0
    %v277 = vlaneseq
    %v278 = vshrl.u32 %v277, 7
    %v279 = vsub.s32 0, %v278
    %v280 = vrot.slane %v194, %v279
    %282 = vmatprep.subr.mxu0 0.0
    %283 = vmatpush1.msra.mxu0 %v174
    %284 = vmatprep.subr.mxu0 0.0
    %285 = vmatpush1.msra.mxu0 %v175
    %286 = vmatprep.subr.mxu0 0.0
    %287 = vmatpush1.msra.mxu0 %v176
    %288 = vmatprep.subr.mxu0 0.0
    %289 = vmatpush1.msra.mxu0 %v177
    %290 = vmatprep.subr.mxu0 0.0
    %291 = vmatpush1.msra.mxu0 %v178
    %292 = vmatprep.subr.mxu0 0.0
    %293 = vmatpush1.msra.mxu0 %v179
    %294 = vmatprep.subr.mxu0 0.0
    %295 = vmatpush1.msra.mxu0 %v180
    %296 = vmatprep.subr.mxu0 0.0
    %297 = vmatpush1.msra.mxu0 %v181
    %298 = vmatprep.subr.mxu0 0.0
    %299 = vmatpush1.msra.mxu0 %v182
    %300 = vmatprep.subr.mxu0 0.0
    %301 = vmatpush1.msra.mxu0 %v183
    %302 = vmatprep.subr.mxu0 0.0
    %303 = vmatpush1.msra.mxu0 %v184
    %304 = vmatprep.subr.mxu0 0.0
    %305 = vmatpush1.msra.mxu0 %v185
    %306 = vmatprep.subr.mxu0 0.0
    %307 = vmatpush1.msra.mxu0 %v186
    %308 = vmatprep.subr.mxu0 0.0
    %309 = vmatpush1.msra.mxu0 %v187
    %310 = vmatprep.subr.mxu0 0.0
    %311 = vmatpush1.msra.mxu0 %v188
    %312 = vmatprep.subr.mxu0 0.0
    %313 = vmatpush1.msra.mxu0 %v189
    %314 = vmatprep.subr.mxu0 0.0
    %315 = vmatpush1.msra.mxu0 0.0
    %316 = vmatprep.subr.mxu0 0.0
    %317 = vmatpush1.msra.mxu0 0.0
    %318 = vmatprep.subr.mxu0 0.0
    %319 = vmatpush1.msra.mxu0 0.0
    %320 = vmatprep.subr.mxu0 0.0
    %321 = vmatpush1.msra.mxu0 0.0
    %322 = vmatprep.subr.mxu0 0.0
    %323 = vmatpush1.msra.mxu0 0.0
    %324 = vmatprep.subr.mxu0 0.0
    %325 = vmatpush1.msra.mxu0 0.0
    %326 = vmatprep.subr.mxu0 0.0
    %327 = vmatpush1.msra.mxu0 0.0
    %328 = vmatprep.subr.mxu0 0.0
    %329 = vmatpush1.msra.mxu0 0.0
    %330 = vmatprep.subr.mxu0 0.0
    %331 = vmatpush1.msra.mxu0 0.0
    %332 = vmatprep.subr.mxu0 0.0
    %333 = vmatpush1.msra.mxu0 0.0
    %334 = vmatprep.subr.mxu0 0.0
    %335 = vmatpush1.msra.mxu0 0.0
    %336 = vmatprep.subr.mxu0 0.0
    %337 = vmatpush1.msra.mxu0 0.0
    %338 = vmatprep.subr.mxu0 0.0
    %339 = vmatpush1.msra.mxu0 0.0
    %340 = vmatprep.subr.mxu0 0.0
    %341 = vmatpush1.msra.mxu0 0.0
    %342 = vmatprep.subr.mxu0 0.0
    %343 = vmatpush1.msra.mxu0 0.0
    %344 = vmatprep.subr.mxu0 0.0
    %345 = vmatpush1.msra.mxu0 0.0
    %346 = vmatprep.mubr.f32.mxu0 0.0
    %347 = vmatmul.mubr.f32.gmra.mrb[0].mxu0 %v145
    %v348 = vpop.f32.mrb[0].mxu0
    %v349 = vadd.f32 %v280, %v348
    %v350 = vpop.f32.mrb[0].mxu0
    %351 = vmatprep.mubr.f32.mxu0 0.0
    %352 = vmatmul.mubr.f32.gmra.mrb[0].mxu0 %v150
    %v353 = vpop.f32.mrb[0].mxu0
    %v354 = vadd.f32 %v280, %v353
    %v355 = vpop.f32.mrb[0].mxu0
    %356 = vdwg.mxu0
    %v361 = vunpack.c.l.b16 %v169
    %v362 = vunpack.c.l.b16 %v170
    %v363 = vunpack.c.l.b16 %v171
    %v364 = vunpack.c.l.b16 %v172
    %v365 = vpack.c.b16 %v362, %v361
    %v366 = vpack.c.b16 %v364, %v363
    %vm369 = vcmask 261120
    %v371 = vsel %vm369, 0, 0
    %373 = vmatprep.subr.bf16.mxu0 0
    %374 = vmatpush1.bf16.msra.mxu0 %v365
    %375 = vmatprep.subr.bf16.mxu0 0
    %376 = vmatpush1.bf16.msra.mxu0 %v366
    %377 = vmatprep.subr.bf16.mxu0 0
    %378 = vmatpush1.bf16.msra.mxu0 0
    %379 = vmatprep.subr.bf16.mxu0 0
    %380 = vmatpush1.bf16.msra.mxu0 0
    %381 = vmatprep.subr.bf16.mxu0 0
    %382 = vmatpush1.bf16.msra.mxu0 0
    %383 = vmatprep.subr.bf16.mxu0 0
    %384 = vmatpush1.bf16.msra.mxu0 0
    %385 = vmatprep.subr.bf16.mxu0 0
    %386 = vmatpush1.bf16.msra.mxu0 0
    %387 = vmatprep.subr.bf16.mxu0 0
    %388 = vmatpush1.bf16.msra.mxu0 0
    %389 = vmatprep.subr.bf16.mxu0 0
    %390 = vmatpush1.bf16.msra.mxu0 0
    %391 = vmatprep.subr.bf16.mxu0 0
    %392 = vmatpush1.bf16.msra.mxu0 0
    %393 = vmatprep.subr.bf16.mxu0 0
    %394 = vmatpush1.bf16.msra.mxu0 0
    %395 = vmatprep.subr.bf16.mxu0 0
    %396 = vmatpush1.bf16.msra.mxu0 0
    %397 = vmatprep.subr.bf16.mxu0 0
    %398 = vmatpush1.bf16.msra.mxu0 0
    %399 = vmatprep.subr.bf16.mxu0 0
    %400 = vmatpush1.bf16.msra.mxu0 0
    %401 = vmatprep.subr.bf16.mxu0 0
    %402 = vmatpush1.bf16.msra.mxu0 0
    %403 = vmatprep.subr.bf16.mxu0 0
    %404 = vmatpush1.bf16.msra.mxu0 0
    %405 = vmatprep.mubr.bf16.mxu0 0
    %406 = vmatmul.mubr.bf16.gmra.mrb[0].mxu0 %v371
    %v407 = vpop.f32.mrb[0].mxu0
    %v408 = vadd.f32 0.0, %v407
    %v409 = vpop.f32.mrb[0].mxu0
    %v410 = vpop.f32.mrb[0].mxu0
    %v411 = vpop.f32.mrb[0].mxu0
    %412 = vdwg.mxu0
    %v413 = vadd.f32 %v268, %v408
    %v418 = vunpack.c.l.b16 %v190
    %v419 = vunpack.c.l.b16 %v191
    %v420 = vunpack.c.l.b16 %v192
    %v421 = vunpack.c.l.b16 %v193
    %v422 = vpack.c.b16 %v419, %v418
    %v423 = vpack.c.b16 %v421, %v420
    %426 = vmatprep.subr.bf16.mxu0 0
    %427 = vmatpush1.bf16.msra.mxu0 %v422
    %428 = vmatprep.subr.bf16.mxu0 0
    %429 = vmatpush1.bf16.msra.mxu0 %v423
    %430 = vmatprep.subr.bf16.mxu0 0
    %431 = vmatpush1.bf16.msra.mxu0 0
    %432 = vmatprep.subr.bf16.mxu0 0
    %433 = vmatpush1.bf16.msra.mxu0 0
    %434 = vmatprep.subr.bf16.mxu0 0
    %435 = vmatpush1.bf16.msra.mxu0 0
    %436 = vmatprep.subr.bf16.mxu0 0
    %437 = vmatpush1.bf16.msra.mxu0 0
    %438 = vmatprep.subr.bf16.mxu0 0
    %439 = vmatpush1.bf16.msra.mxu0 0
    %440 = vmatprep.subr.bf16.mxu0 0
    %441 = vmatpush1.bf16.msra.mxu0 0
    %442 = vmatprep.subr.bf16.mxu0 0
    %443 = vmatpush1.bf16.msra.mxu0 0
    %444 = vmatprep.subr.bf16.mxu0 0
    %445 = vmatpush1.bf16.msra.mxu0 0
    %446 = vmatprep.subr.bf16.mxu0 0
    %447 = vmatpush1.bf16.msra.mxu0 0
    %448 = vmatprep.subr.bf16.mxu0 0
    %449 = vmatpush1.bf16.msra.mxu0 0
    %450 = vmatprep.subr.bf16.mxu0 0
    %451 = vmatpush1.bf16.msra.mxu0 0
    %452 = vmatprep.subr.bf16.mxu0 0
    %453 = vmatpush1.bf16.msra.mxu0 0
    %454 = vmatprep.subr.bf16.mxu0 0
    %455 = vmatpush1.bf16.msra.mxu0 0
    %456 = vmatprep.subr.bf16.mxu0 0
    %457 = vmatpush1.bf16.msra.mxu0 0
    %458 = vmatprep.mubr.bf16.mxu0 0
    %459 = vmatmul.mubr.bf16.gmra.mrb[0].mxu0 %v371
    %v460 = vpop.f32.mrb[0].mxu0
    %v461 = vadd.f32 0.0, %v460
    %v462 = vpop.f32.mrb[0].mxu0
    %v463 = vpop.f32.mrb[0].mxu0
    %v464 = vpop.f32.mrb[0].mxu0
    %465 = vdwg.mxu0
    %v467 = vrot.slane %v461, 2
    %v469 = vadd.f32 %v354, %v467
    %v470 = vxor.u32 %v413, 2147483648
    %v471 = vmul.f32 %v470, 1.442695
    %v472 = vpow.pop %v471
    %v473 = vadd.f32 %v472, 1.0
    %v474 = vrcp.pop %v473
    %v475 = vmul.f32 1.0, %v474
    %v476 = vtanh.pop %v413
    %v477 = vxor.u32 %v469, 2147483648
    %v478 = vmul.f32 %v477, 1.442695
    %v479 = vpow.pop %v478
    %v480 = vadd.f32 %v479, 1.0
    %v481 = vrcp.pop %v480
    %v482 = vmul.f32 1.0, %v481
    %v483 = vtanh.pop %v469
    %v484 = vmul.f32 %v475, 0.0
    %486 = vrot.lane.b32.xlu0 %v476, 32
    %v487 = vpop.permute.xlu0 %486
    %v489 = vmul.f32 %v475, %v487
    %491 = vrot.lane.b32.xlu0 %v489, 32
    %v492 = vpop.permute.xlu0 %491
    %v494 = vadd.f32 %v484, %v492
    %v495 = vmul.f32 %v482, 0.0
    %497 = vrot.lane.b32.xlu0 %v483, 32
    %v498 = vpop.permute.xlu0 %497
    %v500 = vmul.f32 %v482, %v498
    %502 = vrot.lane.b32.xlu0 %v500, 32
    %v503 = vpop.permute.xlu0 %502
    %v505 = vadd.f32 %v495, %v503
    %v506 = vtanh.pop %v494
    %508 = vrot.lane.b32.xlu0 %v506, 32
    %v509 = vpop.permute.xlu0 %508
    %v511 = vmul.f32 %v475, %v509
    %v512 = vtanh.pop %v505
    %514 = vrot.lane.b32.xlu0 %v512, 32
    %v515 = vpop.permute.xlu0 %514
    %v517 = vmul.f32 %v482, %v515
    %v518 = vpack.c.bf16 %v511, %v511
    %520 = vrot.lane.b32.xlu0 %v518, 64
    %v521 = vpop.permute.xlu0 %520
    %v523 = vsel %vm369, %v521, 0
    %525 = vmatprep.subr.bf16.mxu0 0
    %526 = vmatpush1.bf16.msra.mxu0 %v365
    %527 = vmatprep.subr.bf16.mxu0 0
    %528 = vmatpush1.bf16.msra.mxu0 %v366
    %529 = vmatprep.subr.bf16.mxu0 0
    %530 = vmatpush1.bf16.msra.mxu0 0
    %531 = vmatprep.subr.bf16.mxu0 0
    %532 = vmatpush1.bf16.msra.mxu0 0
    %533 = vmatprep.subr.bf16.mxu0 0
    %534 = vmatpush1.bf16.msra.mxu0 0
    %535 = vmatprep.subr.bf16.mxu0 0
    %536 = vmatpush1.bf16.msra.mxu0 0
    %537 = vmatprep.subr.bf16.mxu0 0
    %538 = vmatpush1.bf16.msra.mxu0 0
    %539 = vmatprep.subr.bf16.mxu0 0
    %540 = vmatpush1.bf16.msra.mxu0 0
    %541 = vmatprep.subr.bf16.mxu0 0
    %542 = vmatpush1.bf16.msra.mxu0 0
    %543 = vmatprep.subr.bf16.mxu0 0
    %544 = vmatpush1.bf16.msra.mxu0 0
    %545 = vmatprep.subr.bf16.mxu0 0
    %546 = vmatpush1.bf16.msra.mxu0 0
    %547 = vmatprep.subr.bf16.mxu0 0
    %548 = vmatpush1.bf16.msra.mxu0 0
    %549 = vmatprep.subr.bf16.mxu0 0
    %550 = vmatpush1.bf16.msra.mxu0 0
    %551 = vmatprep.subr.bf16.mxu0 0
    %552 = vmatpush1.bf16.msra.mxu0 0
    %553 = vmatprep.subr.bf16.mxu0 0
    %554 = vmatpush1.bf16.msra.mxu0 0
    %555 = vmatprep.subr.bf16.mxu0 0
    %556 = vmatpush1.bf16.msra.mxu0 0
    %557 = vmatprep.mubr.bf16.mxu0 0
    %558 = vmatmul.mubr.bf16.gmra.mrb[0].mxu0 %v523
    %v559 = vpop.f32.mrb[0].mxu0
    %v560 = vadd.f32 0.0, %v559
    %v561 = vpop.f32.mrb[0].mxu0
    %v562 = vpop.f32.mrb[0].mxu0
    %v563 = vpop.f32.mrb[0].mxu0
    %564 = vdwg.mxu0
    %v566 = vrot.slane %v560, 6
    %v568 = vadd.f32 %v268, %v566
    %v569 = vpack.c.bf16 %v517, %v517
    %v571 = vrot.slane %v569, 3
    %572 = vrot.lane.b32.xlu0 %v571, 64
    %v573 = vpop.permute.xlu0 %572
    %v575 = vsel %vm369, %v573, 0
    %577 = vmatprep.subr.bf16.mxu0 0
    %578 = vmatpush1.bf16.msra.mxu0 %v422
    %579 = vmatprep.subr.bf16.mxu0 0
    %580 = vmatpush1.bf16.msra.mxu0 %v423
    %581 = vmatprep.subr.bf16.mxu0 0
    %582 = vmatpush1.bf16.msra.mxu0 0
    %583 = vmatprep.subr.bf16.mxu0 0
    %584 = vmatpush1.bf16.msra.mxu0 0
    %585 = vmatprep.subr.bf16.mxu0 0
    %586 = vmatpush1.bf16.msra.mxu0 0
    %587 = vmatprep.subr.bf16.mxu0 0
    %588 = vmatpush1.bf16.msra.mxu0 0
    %589 = vmatprep.subr.bf16.mxu0 0
    %590 = vmatpush1.bf16.msra.mxu0 0
    %591 = vmatprep.subr.bf16.mxu0 0
    %592 = vmatpush1.bf16.msra.mxu0 0
    %593 = vmatprep.subr.bf16.mxu0 0
    %594 = vmatpush1.bf16.msra.mxu0 0
    %595 = vmatprep.subr.bf16.mxu0 0
    %596 = vmatpush1.bf16.msra.mxu0 0
    %597 = vmatprep.subr.bf16.mxu0 0
    %598 = vmatpush1.bf16.msra.mxu0 0
    %599 = vmatprep.subr.bf16.mxu0 0
    %600 = vmatpush1.bf16.msra.mxu0 0
    %601 = vmatprep.subr.bf16.mxu0 0
    %602 = vmatpush1.bf16.msra.mxu0 0
    %603 = vmatprep.subr.bf16.mxu0 0
    %604 = vmatpush1.bf16.msra.mxu0 0
    %605 = vmatprep.subr.bf16.mxu0 0
    %606 = vmatpush1.bf16.msra.mxu0 0
    %607 = vmatprep.subr.bf16.mxu0 0
    %608 = vmatpush1.bf16.msra.mxu0 0
    %609 = vmatprep.mubr.bf16.mxu0 0
    %610 = vmatmul.mubr.bf16.gmra.mrb[0].mxu0 %v575
    %v611 = vpop.f32.mrb[0].mxu0
    %v612 = vadd.f32 0.0, %v611
    %v613 = vpop.f32.mrb[0].mxu0
    %v614 = vpop.f32.mrb[0].mxu0
    %v615 = vpop.f32.mrb[0].mxu0
    %616 = vdwg.mxu0
    %v618 = vrot.slane %v612, 4
    %v620 = vadd.f32 %v354, %v618
    %v621 = vxor.u32 %v568, 2147483648
    %v622 = vmul.f32 %v621, 1.442695
    %v623 = vpow.pop %v622
    %v624 = vadd.f32 %v623, 1.0
    %v625 = vrcp.pop %v624
    %v626 = vmul.f32 1.0, %v625
    %v627 = vtanh.pop %v568
    %v628 = vxor.u32 %v620, 2147483648
    %v629 = vmul.f32 %v628, 1.442695
    %v630 = vpow.pop %v629
    %v631 = vadd.f32 %v630, 1.0
    %v632 = vrcp.pop %v631
    %v633 = vmul.f32 1.0, %v632
    %v634 = vtanh.pop %v620
    %v636 = vrot.slane %v494, 6
    %v638 = vmul.f32 %v626, %v636
    %640 = vrot.lane.b32.xlu0 %v627, 32
    %v641 = vpop.permute.xlu0 %640
    %v643 = vmul.f32 %v626, %v641
    %645 = vrot.lane.b32.xlu0 %v643, 32
    %v646 = vpop.permute.xlu0 %645
    %v648 = vadd.f32 %v638, %v646
    %v650 = vrot.slane %v505, 2
    %v652 = vmul.f32 %v633, %v650
    %654 = vrot.lane.b32.xlu0 %v634, 32
    %v655 = vpop.permute.xlu0 %654
    %v657 = vmul.f32 %v633, %v655
    %659 = vrot.lane.b32.xlu0 %v657, 32
    %v660 = vpop.permute.xlu0 %659
    %v662 = vadd.f32 %v652, %v660
    %v663 = vtanh.pop %v648
    %665 = vrot.lane.b32.xlu0 %v663, 32
    %v666 = vpop.permute.xlu0 %665
    %v668 = vmul.f32 %v626, %v666
    %v669 = vtanh.pop %v662
    %671 = vrot.lane.b32.xlu0 %v669, 32
    %v672 = vpop.permute.xlu0 %671
    %v674 = vmul.f32 %v633, %v672
    %v675 = vpack.c.bf16 %v668, %v668
    %v677 = vrot.slane %v675, 1
    %678 = vrot.lane.b32.xlu0 %v677, 64
    %v679 = vpop.permute.xlu0 %678
    %v681 = vsel %vm369, %v679, 0
    %683 = vmatprep.subr.bf16.mxu0 0
    %684 = vmatpush1.bf16.msra.mxu0 %v365
    %685 = vmatprep.subr.bf16.mxu0 0
    %686 = vmatpush1.bf16.msra.mxu0 %v366
    %687 = vmatprep.subr.bf16.mxu0 0
    %688 = vmatpush1.bf16.msra.mxu0 0
    %689 = vmatprep.subr.bf16.mxu0 0
    %690 = vmatpush1.bf16.msra.mxu0 0
    %691 = vmatprep.subr.bf16.mxu0 0
    %692 = vmatpush1.bf16.msra.mxu0 0
    %693 = vmatprep.subr.bf16.mxu0 0
    %694 = vmatpush1.bf16.msra.mxu0 0
    %695 = vmatprep.subr.bf16.mxu0 0
    %696 = vmatpush1.bf16.msra.mxu0 0
    %697 = vmatprep.subr.bf16.mxu0 0
    %698 = vmatpush1.bf16.msra.mxu0 0
    %699 = vmatprep.subr.bf16.mxu0 0
    %700 = vmatpush1.bf16.msra.mxu0 0
    %701 = vmatprep.subr.bf16.mxu0 0
    %702 = vmatpush1.bf16.msra.mxu0 0
    %703 = vmatprep.subr.bf16.mxu0 0
    %704 = vmatpush1.bf16.msra.mxu0 0
    %705 = vmatprep.subr.bf16.mxu0 0
    %706 = vmatpush1.bf16.msra.mxu0 0
    %707 = vmatprep.subr.bf16.mxu0 0
    %708 = vmatpush1.bf16.msra.mxu0 0
    %709 = vmatprep.subr.bf16.mxu0 0
    %710 = vmatpush1.bf16.msra.mxu0 0
    %711 = vmatprep.subr.bf16.mxu0 0
    %712 = vmatpush1.bf16.msra.mxu0 0
    %713 = vmatprep.subr.bf16.mxu0 0
    %714 = vmatpush1.bf16.msra.mxu0 0
    %715 = vmatprep.mubr.bf16.mxu0 0
    %716 = vmatmul.mubr.bf16.gmra.mrb[0].mxu0 %v681
    %v717 = vpop.f32.mrb[0].mxu0
    %v718 = vadd.f32 0.0, %v717
    %v719 = vpop.f32.mrb[0].mxu0
    %v720 = vpop.f32.mrb[0].mxu0
    %v721 = vpop.f32.mrb[0].mxu0
    %722 = vdwg.mxu0
    %v724 = vrot.slane %v718, 4
    %v726 = vadd.f32 %v268, %v724
    %v727 = vpack.c.bf16 %v674, %v674
    %v729 = vrot.slane %v727, 2
    %730 = vrot.lane.b32.xlu0 %v729, 64
    %v731 = vpop.permute.xlu0 %730
    %v733 = vsel %vm369, %v731, 0
    %735 = vmatprep.subr.bf16.mxu0 0
    %736 = vmatpush1.bf16.msra.mxu0 %v422
    %737 = vmatprep.subr.bf16.mxu0 0
    %738 = vmatpush1.bf16.msra.mxu0 %v423
    %739 = vmatprep.subr.bf16.mxu0 0
    %740 = vmatpush1.bf16.msra.mxu0 0
    %741 = vmatprep.subr.bf16.mxu0 0
    %742 = vmatpush1.bf16.msra.mxu0 0
    %743 = vmatprep.subr.bf16.mxu0 0
    %744 = vmatpush1.bf16.msra.mxu0 0
    %745 = vmatprep.subr.bf16.mxu0 0
    %746 = vmatpush1.bf16.msra.mxu0 0
    %747 = vmatprep.subr.bf16.mxu0 0
    %748 = vmatpush1.bf16.msra.mxu0 0
    %749 = vmatprep.subr.bf16.mxu0 0
    %750 = vmatpush1.bf16.msra.mxu0 0
    %751 = vmatprep.subr.bf16.mxu0 0
    %752 = vmatpush1.bf16.msra.mxu0 0
    %753 = vmatprep.subr.bf16.mxu0 0
    %754 = vmatpush1.bf16.msra.mxu0 0
    %755 = vmatprep.subr.bf16.mxu0 0
    %756 = vmatpush1.bf16.msra.mxu0 0
    %757 = vmatprep.subr.bf16.mxu0 0
    %758 = vmatpush1.bf16.msra.mxu0 0
    %759 = vmatprep.subr.bf16.mxu0 0
    %760 = vmatpush1.bf16.msra.mxu0 0
    %761 = vmatprep.subr.bf16.mxu0 0
    %762 = vmatpush1.bf16.msra.mxu0 0
    %763 = vmatprep.subr.bf16.mxu0 0
    %764 = vmatpush1.bf16.msra.mxu0 0
    %765 = vmatprep.subr.bf16.mxu0 0
    %766 = vmatpush1.bf16.msra.mxu0 0
    %767 = vmatprep.mubr.bf16.mxu0 0
    %768 = vmatmul.mubr.bf16.gmra.mrb[0].mxu0 %v733
    %v769 = vpop.f32.mrb[0].mxu0
    %v770 = vadd.f32 0.0, %v769
    %v771 = vpop.f32.mrb[0].mxu0
    %v772 = vpop.f32.mrb[0].mxu0
    %v773 = vpop.f32.mrb[0].mxu0
    %774 = vdwg.mxu0
    %v776 = vrot.slane %v770, 6
    %v778 = vadd.f32 %v354, %v776
    %v779 = vxor.u32 %v726, 2147483648
    %v780 = vmul.f32 %v779, 1.442695
    %v781 = vpow.pop %v780
    %v782 = vadd.f32 %v781, 1.0
    %v783 = vrcp.pop %v782
    %v784 = vmul.f32 1.0, %v783
    %v785 = vtanh.pop %v726
    %v786 = vxor.u32 %v778, 2147483648
    %v787 = vmul.f32 %v786, 1.442695
    %v788 = vpow.pop %v787
    %v789 = vadd.f32 %v788, 1.0
    %v790 = vrcp.pop %v789
    %v791 = vmul.f32 1.0, %v790
    %v792 = vtanh.pop %v778
    %v794 = vrot.slane %v648, 6
    %v796 = vmul.f32 %v784, %v794
    %798 = vrot.lane.b32.xlu0 %v785, 32
    %v799 = vpop.permute.xlu0 %798
    %v801 = vmul.f32 %v784, %v799
    %803 = vrot.lane.b32.xlu0 %v801, 32
    %v804 = vpop.permute.xlu0 %803
    %v806 = vadd.f32 %v796, %v804
    %v808 = vrot.slane %v662, 2
    %v810 = vmul.f32 %v791, %v808
    %812 = vrot.lane.b32.xlu0 %v792, 32
    %v813 = vpop.permute.xlu0 %812
    %v815 = vmul.f32 %v791, %v813
    %817 = vrot.lane.b32.xlu0 %v815, 32
    %v818 = vpop.permute.xlu0 %817
    %v820 = vadd.f32 %v810, %v818
    %v821 = vtanh.pop %v806
    %823 = vrot.lane.b32.xlu0 %v821, 32
    %v824 = vpop.permute.xlu0 %823
    %v826 = vmul.f32 %v784, %v824
    %v827 = vtanh.pop %v820
    %829 = vrot.lane.b32.xlu0 %v827, 32
    %v830 = vpop.permute.xlu0 %829
    %v832 = vmul.f32 %v791, %v830
    %v833 = vpack.c.bf16 %v826, %v826
    %v835 = vrot.slane %v833, 2
    %836 = vrot.lane.b32.xlu0 %v835, 64
    %v837 = vpop.permute.xlu0 %836
    %v839 = vsel %vm369, %v837, 0
    %841 = vmatprep.subr.bf16.mxu0 0
    %842 = vmatpush1.bf16.msra.mxu0 %v365
    %843 = vmatprep.subr.bf16.mxu0 0
    %844 = vmatpush1.bf16.msra.mxu0 %v366
    %845 = vmatprep.subr.bf16.mxu0 0
    %846 = vmatpush1.bf16.msra.mxu0 0
    %847 = vmatprep.subr.bf16.mxu0 0
    %848 = vmatpush1.bf16.msra.mxu0 0
    %849 = vmatprep.subr.bf16.mxu0 0
    %850 = vmatpush1.bf16.msra.mxu0 0
    %851 = vmatprep.subr.bf16.mxu0 0
    %852 = vmatpush1.bf16.msra.mxu0 0
    %853 = vmatprep.subr.bf16.mxu0 0
    %854 = vmatpush1.bf16.msra.mxu0 0
    %855 = vmatprep.subr.bf16.mxu0 0
    %856 = vmatpush1.bf16.msra.mxu0 0
    %857 = vmatprep.subr.bf16.mxu0 0
    %858 = vmatpush1.bf16.msra.mxu0 0
    %859 = vmatprep.subr.bf16.mxu0 0
    %860 = vmatpush1.bf16.msra.mxu0 0
    %861 = vmatprep.subr.bf16.mxu0 0
    %862 = vmatpush1.bf16.msra.mxu0 0
    %863 = vmatprep.subr.bf16.mxu0 0
    %864 = vmatpush1.bf16.msra.mxu0 0
    %865 = vmatprep.subr.bf16.mxu0 0
    %866 = vmatpush1.bf16.msra.mxu0 0
    %867 = vmatprep.subr.bf16.mxu0 0
    %868 = vmatpush1.bf16.msra.mxu0 0
    %869 = vmatprep.subr.bf16.mxu0 0
    %870 = vmatpush1.bf16.msra.mxu0 0
    %871 = vmatprep.subr.bf16.mxu0 0
    %872 = vmatpush1.bf16.msra.mxu0 0
    %873 = vmatprep.mubr.bf16.mxu0 0
    %874 = vmatmul.mubr.bf16.gmra.mrb[0].mxu0 %v839
    %v875 = vpop.f32.mrb[0].mxu0
    %v876 = vadd.f32 0.0, %v875
    %v877 = vpop.f32.mrb[0].mxu0
    %v878 = vpop.f32.mrb[0].mxu0
    %v879 = vpop.f32.mrb[0].mxu0
    %880 = vdwg.mxu0
    %v882 = vrot.slane %v876, 2
    %v884 = vadd.f32 %v268, %v882
    %v885 = vpack.c.bf16 %v832, %v832
    %v887 = vrot.slane %v885, 1
    %888 = vrot.lane.b32.xlu0 %v887, 64
    %v889 = vpop.permute.xlu0 %888
    %v891 = vsel %vm369, %v889, 0
    %893 = vmatprep.subr.bf16.mxu0 0
    %894 = vmatpush1.bf16.msra.mxu0 %v422
    %895 = vmatprep.subr.bf16.mxu0 0
    %896 = vmatpush1.bf16.msra.mxu0 %v423
    %897 = vmatprep.subr.bf16.mxu0 0
    %898 = vmatpush1.bf16.msra.mxu0 0
    %899 = vmatprep.subr.bf16.mxu0 0
    %900 = vmatpush1.bf16.msra.mxu0 0
    %901 = vmatprep.subr.bf16.mxu0 0
    %902 = vmatpush1.bf16.msra.mxu0 0
    %903 = vmatprep.subr.bf16.mxu0 0
    %904 = vmatpush1.bf16.msra.mxu0 0
    %905 = vmatprep.subr.bf16.mxu0 0
    %906 = vmatpush1.bf16.msra.mxu0 0
    %907 = vmatprep.subr.bf16.mxu0 0
    %908 = vmatpush1.bf16.msra.mxu0 0
    %909 = vmatprep.subr.bf16.mxu0 0
    %910 = vmatpush1.bf16.msra.mxu0 0
    %911 = vmatprep.subr.bf16.mxu0 0
    %912 = vmatpush1.bf16.msra.mxu0 0
    %913 = vmatprep.subr.bf16.mxu0 0
    %914 = vmatpush1.bf16.msra.mxu0 0
    %915 = vmatprep.subr.bf16.mxu0 0
    %916 = vmatpush1.bf16.msra.mxu0 0
    %917 = vmatprep.subr.bf16.mxu0 0
    %918 = vmatpush1.bf16.msra.mxu0 0
    %919 = vmatprep.subr.bf16.mxu0 0
    %920 = vmatpush1.bf16.msra.mxu0 0
    %921 = vmatprep.subr.bf16.mxu0 0
    %922 = vmatpush1.bf16.msra.mxu0 0
    %923 = vmatprep.subr.bf16.mxu0 0
    %924 = vmatpush1.bf16.msra.mxu0 0
    %925 = vmatprep.mubr.bf16.mxu0 0
    %926 = vmatmul.mubr.bf16.gmra.mrb[0].mxu0 %v891
    %v927 = vpop.f32.mrb[0].mxu0
    %v928 = vadd.f32 0.0, %v927
    %v929 = vpop.f32.mrb[0].mxu0
    %v930 = vpop.f32.mrb[0].mxu0
    %v931 = vpop.f32.mrb[0].mxu0
    %932 = vdwg.mxu0
    %v933 = vadd.f32 %v354, %v928
    %v934 = vxor.u32 %v884, 2147483648
    %v935 = vmul.f32 %v934, 1.442695
    %v936 = vpow.pop %v935
    %v937 = vadd.f32 %v936, 1.0
    %v938 = vrcp.pop %v937
    %v939 = vmul.f32 1.0, %v938
    %v940 = vtanh.pop %v884
    %v941 = vxor.u32 %v933, 2147483648
    %v942 = vmul.f32 %v941, 1.442695
    %v943 = vpow.pop %v942
    %v944 = vadd.f32 %v943, 1.0
    %v945 = vrcp.pop %v944
    %v946 = vmul.f32 1.0, %v945
    %v947 = vtanh.pop %v933
    %v949 = vrot.slane %v806, 6
    %v951 = vmul.f32 %v939, %v949
    %953 = vrot.lane.b32.xlu0 %v940, 32
    %v954 = vpop.permute.xlu0 %953
    %v956 = vmul.f32 %v939, %v954
    %958 = vrot.lane.b32.xlu0 %v956, 32
    %v959 = vpop.permute.xlu0 %958
    %v961 = vadd.f32 %v951, %v959
    %v963 = vrot.slane %v820, 2
    %v965 = vmul.f32 %v946, %v963
    %967 = vrot.lane.b32.xlu0 %v947, 32
    %v968 = vpop.permute.xlu0 %967
    %v970 = vmul.f32 %v946, %v968
    %972 = vrot.lane.b32.xlu0 %v970, 32
    %v973 = vpop.permute.xlu0 %972
    %v975 = vadd.f32 %v965, %v973
    %v976 = vtanh.pop %v961
    %978 = vrot.lane.b32.xlu0 %v976, 32
    %v979 = vpop.permute.xlu0 %978
    %v981 = vmul.f32 %v939, %v979
    %v982 = vtanh.pop %v975
    %984 = vrot.lane.b32.xlu0 %v982, 32
    %v985 = vpop.permute.xlu0 %984
    %v987 = vmul.f32 %v946, %v985
    %v988 = vpack.c.bf16 %v981, %v981
    %v990 = vrot.slane %v988, 3
    %991 = vrot.lane.b32.xlu0 %v990, 64
    %v992 = vpop.permute.xlu0 %991
    %v994 = vsel %vm369, %v992, 0
    %996 = vmatprep.subr.bf16.mxu0 0
    %997 = vmatpush1.bf16.msra.mxu0 %v365
    %998 = vmatprep.subr.bf16.mxu0 0
    %999 = vmatpush1.bf16.msra.mxu0 %v366
    %1000 = vmatprep.subr.bf16.mxu0 0
    %1001 = vmatpush1.bf16.msra.mxu0 0
    %1002 = vmatprep.subr.bf16.mxu0 0
    %1003 = vmatpush1.bf16.msra.mxu0 0
    %1004 = vmatprep.subr.bf16.mxu0 0
    %1005 = vmatpush1.bf16.msra.mxu0 0
    %1006 = vmatprep.subr.bf16.mxu0 0
    %1007 = vmatpush1.bf16.msra.mxu0 0
    %1008 = vmatprep.subr.bf16.mxu0 0
    %1009 = vmatpush1.bf16.msra.mxu0 0
    %1010 = vmatprep.subr.bf16.mxu0 0
    %1011 = vmatpush1.bf16.msra.mxu0 0
    %1012 = vmatprep.subr.bf16.mxu0 0
    %1013 = vmatpush1.bf16.msra.mxu0 0
    %1014 = vmatprep.subr.bf16.mxu0 0
    %1015 = vmatpush1.bf16.msra.mxu0 0
    %1016 = vmatprep.subr.bf16.mxu0 0
    %1017 = vmatpush1.bf16.msra.mxu0 0
    %1018 = vmatprep.subr.bf16.mxu0 0
    %1019 = vmatpush1.bf16.msra.mxu0 0
    %1020 = vmatprep.subr.bf16.mxu0 0
    %1021 = vmatpush1.bf16.msra.mxu0 0
    %1022 = vmatprep.subr.bf16.mxu0 0
    %1023 = vmatpush1.bf16.msra.mxu0 0
    %1024 = vmatprep.subr.bf16.mxu0 0
    %1025 = vmatpush1.bf16.msra.mxu0 0
    %1026 = vmatprep.subr.bf16.mxu0 0
    %1027 = vmatpush1.bf16.msra.mxu0 0
    %1028 = vmatprep.mubr.bf16.mxu0 0
    %1029 = vmatmul.mubr.bf16.gmra.mrb[0].mxu0 %v994
    %v1030 = vpop.f32.mrb[0].mxu0
    %v1031 = vadd.f32 0.0, %v1030
    %v1032 = vpop.f32.mrb[0].mxu0
    %v1033 = vpop.f32.mrb[0].mxu0
    %v1034 = vpop.f32.mrb[0].mxu0
    %1035 = vdwg.mxu0
    %v1036 = vadd.f32 %v273, %v1031
    %v1037 = vpack.c.bf16 %v987, %v987
    %1039 = vrot.lane.b32.xlu0 %v1037, 64
    %v1040 = vpop.permute.xlu0 %1039
    %v1042 = vsel %vm369, %v1040, 0
    %1044 = vmatprep.subr.bf16.mxu0 0
    %1045 = vmatpush1.bf16.msra.mxu0 %v422
    %1046 = vmatprep.subr.bf16.mxu0 0
    %1047 = vmatpush1.bf16.msra.mxu0 %v423
    %1048 = vmatprep.subr.bf16.mxu0 0
    %1049 = vmatpush1.bf16.msra.mxu0 0
    %1050 = vmatprep.subr.bf16.mxu0 0
    %1051 = vmatpush1.bf16.msra.mxu0 0
    %1052 = vmatprep.subr.bf16.mxu0 0
    %1053 = vmatpush1.bf16.msra.mxu0 0
    %1054 = vmatprep.subr.bf16.mxu0 0
    %1055 = vmatpush1.bf16.msra.mxu0 0
    %1056 = vmatprep.subr.bf16.mxu0 0
    %1057 = vmatpush1.bf16.msra.mxu0 0
    %1058 = vmatprep.subr.bf16.mxu0 0
    %1059 = vmatpush1.bf16.msra.mxu0 0
    %1060 = vmatprep.subr.bf16.mxu0 0
    %1061 = vmatpush1.bf16.msra.mxu0 0
    %1062 = vmatprep.subr.bf16.mxu0 0
    %1063 = vmatpush1.bf16.msra.mxu0 0
    %1064 = vmatprep.subr.bf16.mxu0 0
    %1065 = vmatpush1.bf16.msra.mxu0 0
    %1066 = vmatprep.subr.bf16.mxu0 0
    %1067 = vmatpush1.bf16.msra.mxu0 0
    %1068 = vmatprep.subr.bf16.mxu0 0
    %1069 = vmatpush1.bf16.msra.mxu0 0
    %1070 = vmatprep.subr.bf16.mxu0 0
    %1071 = vmatpush1.bf16.msra.mxu0 0
    %1072 = vmatprep.subr.bf16.mxu0 0
    %1073 = vmatpush1.bf16.msra.mxu0 0
    %1074 = vmatprep.subr.bf16.mxu0 0
    %1075 = vmatpush1.bf16.msra.mxu0 0
    %1076 = vmatprep.mubr.bf16.mxu0 0
    %1077 = vmatmul.mubr.bf16.gmra.mrb[0].mxu0 %v1042
    %v1078 = vpop.f32.mrb[0].mxu0
    %v1079 = vadd.f32 0.0, %v1078
    %v1080 = vpop.f32.mrb[0].mxu0
    %v1081 = vpop.f32.mrb[0].mxu0
    %v1082 = vpop.f32.mrb[0].mxu0
    %1083 = vdwg.mxu0
    %v1085 = vrot.slane %v1079, 2
    %v1087 = vadd.f32 %v349, %v1085
    %v1088 = vxor.u32 %v1036, 2147483648
    %v1089 = vmul.f32 %v1088, 1.442695
    %v1090 = vpow.pop %v1089
    %v1091 = vadd.f32 %v1090, 1.0
    %v1092 = vrcp.pop %v1091
    %v1093 = vmul.f32 1.0, %v1092
    %v1094 = vtanh.pop %v1036
    %v1095 = vxor.u32 %v1087, 2147483648
    %v1096 = vmul.f32 %v1095, 1.442695
    %v1097 = vpow.pop %v1096
    %v1098 = vadd.f32 %v1097, 1.0
    %v1099 = vrcp.pop %v1098
    %v1100 = vmul.f32 1.0, %v1099
    %v1101 = vtanh.pop %v1087
    %v1103 = vrot.slane %v961, 6
    %v1105 = vmul.f32 %v1093, %v1103
    %1107 = vrot.lane.b32.xlu0 %v1094, 32
    %v1108 = vpop.permute.xlu0 %1107
    %v1110 = vmul.f32 %v1093, %v1108
    %1112 = vrot.lane.b32.xlu0 %v1110, 32
    %v1113 = vpop.permute.xlu0 %1112
    %v1115 = vadd.f32 %v1105, %v1113
    %v1117 = vrot.slane %v975, 2
    %v1119 = vmul.f32 %v1100, %v1117
    %1121 = vrot.lane.b32.xlu0 %v1101, 32
    %v1122 = vpop.permute.xlu0 %1121
    %v1124 = vmul.f32 %v1100, %v1122
    %1126 = vrot.lane.b32.xlu0 %v1124, 32
    %v1127 = vpop.permute.xlu0 %1126
    %v1129 = vadd.f32 %v1119, %v1127
    %v1130 = vtanh.pop %v1115
    %1132 = vrot.lane.b32.xlu0 %v1130, 32
    %v1133 = vpop.permute.xlu0 %1132
    %v1135 = vmul.f32 %v1093, %v1133
    %v1136 = vtanh.pop %v1129
    %1138 = vrot.lane.b32.xlu0 %v1136, 32
    %v1139 = vpop.permute.xlu0 %1138
    %v1141 = vmul.f32 %v1100, %v1139
    %v1142 = vpack.c.bf16 %v1135, %v1135
    %1144 = vrot.lane.b32.xlu0 %v1142, 64
    %v1145 = vpop.permute.xlu0 %1144
    %v1147 = vsel %vm369, %v1145, 0
    %1149 = vmatprep.subr.bf16.mxu0 0
    %1150 = vmatpush1.bf16.msra.mxu0 %v365
    %1151 = vmatprep.subr.bf16.mxu0 0
    %1152 = vmatpush1.bf16.msra.mxu0 %v366
    %1153 = vmatprep.subr.bf16.mxu0 0
    %1154 = vmatpush1.bf16.msra.mxu0 0
    %1155 = vmatprep.subr.bf16.mxu0 0
    %1156 = vmatpush1.bf16.msra.mxu0 0
    %1157 = vmatprep.subr.bf16.mxu0 0
    %1158 = vmatpush1.bf16.msra.mxu0 0
    %1159 = vmatprep.subr.bf16.mxu0 0
    %1160 = vmatpush1.bf16.msra.mxu0 0
    %1161 = vmatprep.subr.bf16.mxu0 0
    %1162 = vmatpush1.bf16.msra.mxu0 0
    %1163 = vmatprep.subr.bf16.mxu0 0
    %1164 = vmatpush1.bf16.msra.mxu0 0
    %1165 = vmatprep.subr.bf16.mxu0 0
    %1166 = vmatpush1.bf16.msra.mxu0 0
    %1167 = vmatprep.subr.bf16.mxu0 0
    %1168 = vmatpush1.bf16.msra.mxu0 0
    %1169 = vmatprep.subr.bf16.mxu0 0
    %1170 = vmatpush1.bf16.msra.mxu0 0
    %1171 = vmatprep.subr.bf16.mxu0 0
    %1172 = vmatpush1.bf16.msra.mxu0 0
    %1173 = vmatprep.subr.bf16.mxu0 0
    %1174 = vmatpush1.bf16.msra.mxu0 0
    %1175 = vmatprep.subr.bf16.mxu0 0
    %1176 = vmatpush1.bf16.msra.mxu0 0
    %1177 = vmatprep.subr.bf16.mxu0 0
    %1178 = vmatpush1.bf16.msra.mxu0 0
    %1179 = vmatprep.subr.bf16.mxu0 0
    %1180 = vmatpush1.bf16.msra.mxu0 0
    %1181 = vmatprep.mubr.bf16.mxu0 0
    %1182 = vmatmul.mubr.bf16.gmra.mrb[0].mxu0 %v1147
    %v1183 = vpop.f32.mrb[0].mxu0
    %v1184 = vadd.f32 0.0, %v1183
    %v1185 = vpop.f32.mrb[0].mxu0
    %v1186 = vpop.f32.mrb[0].mxu0
    %v1187 = vpop.f32.mrb[0].mxu0
    %1188 = vdwg.mxu0
    %v1190 = vrot.slane %v1184, 6
    %v1192 = vadd.f32 %v273, %v1190
    %v1193 = vpack.c.bf16 %v1141, %v1141
    %v1195 = vrot.slane %v1193, 3
    %1196 = vrot.lane.b32.xlu0 %v1195, 64
    %v1197 = vpop.permute.xlu0 %1196
    %v1199 = vsel %vm369, %v1197, 0
    %1201 = vmatprep.subr.bf16.mxu0 0
    %1202 = vmatpush1.bf16.msra.mxu0 %v422
    %1203 = vmatprep.subr.bf16.mxu0 0
    %1204 = vmatpush1.bf16.msra.mxu0 %v423
    %1205 = vmatprep.subr.bf16.mxu0 0
    %1206 = vmatpush1.bf16.msra.mxu0 0
    %1207 = vmatprep.subr.bf16.mxu0 0
    %1208 = vmatpush1.bf16.msra.mxu0 0
    %1209 = vmatprep.subr.bf16.mxu0 0
    %1210 = vmatpush1.bf16.msra.mxu0 0
    %1211 = vmatprep.subr.bf16.mxu0 0
    %1212 = vmatpush1.bf16.msra.mxu0 0
    %1213 = vmatprep.subr.bf16.mxu0 0
    %1214 = vmatpush1.bf16.msra.mxu0 0
    %1215 = vmatprep.subr.bf16.mxu0 0
    %1216 = vmatpush1.bf16.msra.mxu0 0
    %1217 = vmatprep.subr.bf16.mxu0 0
    %1218 = vmatpush1.bf16.msra.mxu0 0
    %1219 = vmatprep.subr.bf16.mxu0 0
    %1220 = vmatpush1.bf16.msra.mxu0 0
    %1221 = vmatprep.subr.bf16.mxu0 0
    %1222 = vmatpush1.bf16.msra.mxu0 0
    %1223 = vmatprep.subr.bf16.mxu0 0
    %1224 = vmatpush1.bf16.msra.mxu0 0
    %1225 = vmatprep.subr.bf16.mxu0 0
    %1226 = vmatpush1.bf16.msra.mxu0 0
    %1227 = vmatprep.subr.bf16.mxu0 0
    %1228 = vmatpush1.bf16.msra.mxu0 0
    %1229 = vmatprep.subr.bf16.mxu0 0
    %1230 = vmatpush1.bf16.msra.mxu0 0
    %1231 = vmatprep.subr.bf16.mxu0 0
    %1232 = vmatpush1.bf16.msra.mxu0 0
    %1233 = vmatprep.mubr.bf16.mxu0 0
    %1234 = vmatmul.mubr.bf16.gmra.mrb[0].mxu0 %v1199
    %v1235 = vpop.f32.mrb[0].mxu0
    %v1236 = vadd.f32 0.0, %v1235
    %v1237 = vpop.f32.mrb[0].mxu0
    %v1238 = vpop.f32.mrb[0].mxu0
    %v1239 = vpop.f32.mrb[0].mxu0
    %1240 = vdwg.mxu0
    %v1242 = vrot.slane %v1236, 4
    %v1244 = vadd.f32 %v349, %v1242
    %v1245 = vxor.u32 %v1192, 2147483648
    %v1246 = vmul.f32 %v1245, 1.442695
    %v1247 = vpow.pop %v1246
    %v1248 = vadd.f32 %v1247, 1.0
    %v1249 = vrcp.pop %v1248
    %v1250 = vmul.f32 1.0, %v1249
    %v1251 = vtanh.pop %v1192
    %v1252 = vxor.u32 %v1244, 2147483648
    %v1253 = vmul.f32 %v1252, 1.442695
    %v1254 = vpow.pop %v1253
    %v1255 = vadd.f32 %v1254, 1.0
    %v1256 = vrcp.pop %v1255
    %v1257 = vmul.f32 1.0, %v1256
    %v1258 = vtanh.pop %v1244
    %v1260 = vrot.slane %v1115, 6
    %v1262 = vmul.f32 %v1250, %v1260
    %1264 = vrot.lane.b32.xlu0 %v1251, 32
    %v1265 = vpop.permute.xlu0 %1264
    %v1267 = vmul.f32 %v1250, %v1265
    %1269 = vrot.lane.b32.xlu0 %v1267, 32
    %v1270 = vpop.permute.xlu0 %1269
    %v1272 = vadd.f32 %v1262, %v1270
    %v1274 = vrot.slane %v1129, 2
    %v1276 = vmul.f32 %v1257, %v1274
    %1278 = vrot.lane.b32.xlu0 %v1258, 32
    %v1279 = vpop.permute.xlu0 %1278
    %v1281 = vmul.f32 %v1257, %v1279
    %1283 = vrot.lane.b32.xlu0 %v1281, 32
    %v1284 = vpop.permute.xlu0 %1283
    %v1286 = vadd.f32 %v1276, %v1284
    %v1287 = vtanh.pop %v1272
    %1289 = vrot.lane.b32.xlu0 %v1287, 32
    %v1290 = vpop.permute.xlu0 %1289
    %v1292 = vmul.f32 %v1250, %v1290
    %v1293 = vtanh.pop %v1286
    %1295 = vrot.lane.b32.xlu0 %v1293, 32
    %v1296 = vpop.permute.xlu0 %1295
    %v1298 = vmul.f32 %v1257, %v1296
    %v1299 = vpack.c.bf16 %v1292, %v1292
    %v1301 = vrot.slane %v1299, 1
    %1302 = vrot.lane.b32.xlu0 %v1301, 64
    %v1303 = vpop.permute.xlu0 %1302
    %v1305 = vsel %vm369, %v1303, 0
    %1307 = vmatprep.subr.bf16.mxu0 0
    %1308 = vmatpush1.bf16.msra.mxu0 %v365
    %1309 = vmatprep.subr.bf16.mxu0 0
    %1310 = vmatpush1.bf16.msra.mxu0 %v366
    %1311 = vmatprep.subr.bf16.mxu0 0
    %1312 = vmatpush1.bf16.msra.mxu0 0
    %1313 = vmatprep.subr.bf16.mxu0 0
    %1314 = vmatpush1.bf16.msra.mxu0 0
    %1315 = vmatprep.subr.bf16.mxu0 0
    %1316 = vmatpush1.bf16.msra.mxu0 0
    %1317 = vmatprep.subr.bf16.mxu0 0
    %1318 = vmatpush1.bf16.msra.mxu0 0
    %1319 = vmatprep.subr.bf16.mxu0 0
    %1320 = vmatpush1.bf16.msra.mxu0 0
    %1321 = vmatprep.subr.bf16.mxu0 0
    %1322 = vmatpush1.bf16.msra.mxu0 0
    %1323 = vmatprep.subr.bf16.mxu0 0
    %1324 = vmatpush1.bf16.msra.mxu0 0
    %1325 = vmatprep.subr.bf16.mxu0 0
    %1326 = vmatpush1.bf16.msra.mxu0 0
    %1327 = vmatprep.subr.bf16.mxu0 0
    %1328 = vmatpush1.bf16.msra.mxu0 0
    %1329 = vmatprep.subr.bf16.mxu0 0
    %1330 = vmatpush1.bf16.msra.mxu0 0
    %1331 = vmatprep.subr.bf16.mxu0 0
    %1332 = vmatpush1.bf16.msra.mxu0 0
    %1333 = vmatprep.subr.bf16.mxu0 0
    %1334 = vmatpush1.bf16.msra.mxu0 0
    %1335 = vmatprep.subr.bf16.mxu0 0
    %1336 = vmatpush1.bf16.msra.mxu0 0
    %1337 = vmatprep.subr.bf16.mxu0 0
    %1338 = vmatpush1.bf16.msra.mxu0 0
    %1339 = vmatprep.mubr.bf16.mxu0 0
    %1340 = vmatmul.mubr.bf16.gmra.mrb[0].mxu0 %v1305
    %v1341 = vpop.f32.mrb[0].mxu0
    %v1342 = vadd.f32 0.0, %v1341
    %v1343 = vpop.f32.mrb[0].mxu0
    %v1344 = vpop.f32.mrb[0].mxu0
    %v1345 = vpop.f32.mrb[0].mxu0
    %1346 = vdwg.mxu0
    %v1348 = vrot.slane %v1342, 4
    %v1350 = vadd.f32 %v273, %v1348
    %v1351 = vpack.c.bf16 %v1298, %v1298
    %v1353 = vrot.slane %v1351, 2
    %1354 = vrot.lane.b32.xlu0 %v1353, 64
    %v1355 = vpop.permute.xlu0 %1354
    %v1357 = vsel %vm369, %v1355, 0
    %1359 = vmatprep.subr.bf16.mxu0 0
    %1360 = vmatpush1.bf16.msra.mxu0 %v422
    %1361 = vmatprep.subr.bf16.mxu0 0
    %1362 = vmatpush1.bf16.msra.mxu0 %v423
    %1363 = vmatprep.subr.bf16.mxu0 0
    %1364 = vmatpush1.bf16.msra.mxu0 0
    %1365 = vmatprep.subr.bf16.mxu0 0
    %1366 = vmatpush1.bf16.msra.mxu0 0
    %1367 = vmatprep.subr.bf16.mxu0 0
    %1368 = vmatpush1.bf16.msra.mxu0 0
    %1369 = vmatprep.subr.bf16.mxu0 0
    %1370 = vmatpush1.bf16.msra.mxu0 0
    %1371 = vmatprep.subr.bf16.mxu0 0
    %1372 = vmatpush1.bf16.msra.mxu0 0
    %1373 = vmatprep.subr.bf16.mxu0 0
    %1374 = vmatpush1.bf16.msra.mxu0 0
    %1375 = vmatprep.subr.bf16.mxu0 0
    %1376 = vmatpush1.bf16.msra.mxu0 0
    %1377 = vmatprep.subr.bf16.mxu0 0
    %1378 = vmatpush1.bf16.msra.mxu0 0
    %1379 = vmatprep.subr.bf16.mxu0 0
    %1380 = vmatpush1.bf16.msra.mxu0 0
    %1381 = vmatprep.subr.bf16.mxu0 0
    %1382 = vmatpush1.bf16.msra.mxu0 0
    %1383 = vmatprep.subr.bf16.mxu0 0
    %1384 = vmatpush1.bf16.msra.mxu0 0
    %1385 = vmatprep.subr.bf16.mxu0 0
    %1386 = vmatpush1.bf16.msra.mxu0 0
    %1387 = vmatprep.subr.bf16.mxu0 0
    %1388 = vmatpush1.bf16.msra.mxu0 0
    %1389 = vmatprep.subr.bf16.mxu0 0
    %1390 = vmatpush1.bf16.msra.mxu0 0
    %1391 = vmatprep.mubr.bf16.mxu0 0
    %1392 = vmatmul.mubr.bf16.gmra.mrb[0].mxu0 %v1357
    %v1393 = vpop.f32.mrb[0].mxu0
    %v1394 = vadd.f32 0.0, %v1393
    %v1395 = vpop.f32.mrb[0].mxu0
    %v1396 = vpop.f32.mrb[0].mxu0
    %v1397 = vpop.f32.mrb[0].mxu0
    %1398 = vdwg.mxu0
    %v1400 = vrot.slane %v1394, 6
    %v1402 = vadd.f32 %v349, %v1400
    %v1403 = vxor.u32 %v1350, 2147483648
    %v1404 = vmul.f32 %v1403, 1.442695
    %v1405 = vpow.pop %v1404
    %v1406 = vadd.f32 %v1405, 1.0
    %v1407 = vrcp.pop %v1406
    %v1408 = vmul.f32 1.0, %v1407
    %v1409 = vtanh.pop %v1350
    %v1410 = vxor.u32 %v1402, 2147483648
    %v1411 = vmul.f32 %v1410, 1.442695
    %v1412 = vpow.pop %v1411
    %v1413 = vadd.f32 %v1412, 1.0
    %v1414 = vrcp.pop %v1413
    %v1415 = vmul.f32 1.0, %v1414
    %v1416 = vtanh.pop %v1402
    %v1418 = vrot.slane %v1272, 6
    %v1420 = vmul.f32 %v1408, %v1418
    %1422 = vrot.lane.b32.xlu0 %v1409, 32
    %v1423 = vpop.permute.xlu0 %1422
    %v1425 = vmul.f32 %v1408, %v1423
    %1427 = vrot.lane.b32.xlu0 %v1425, 32
    %v1428 = vpop.permute.xlu0 %1427
    %v1430 = vadd.f32 %v1420, %v1428
    %v1432 = vrot.slane %v1286, 2
    %v1434 = vmul.f32 %v1415, %v1432
    %1436 = vrot.lane.b32.xlu0 %v1416, 32
    %v1437 = vpop.permute.xlu0 %1436
    %v1439 = vmul.f32 %v1415, %v1437
    %1441 = vrot.lane.b32.xlu0 %v1439, 32
    %v1442 = vpop.permute.xlu0 %1441
    %v1444 = vadd.f32 %v1434, %v1442
    %v1445 = vtanh.pop %v1430
    %1447 = vrot.lane.b32.xlu0 %v1445, 32
    %v1448 = vpop.permute.xlu0 %1447
    %v1450 = vmul.f32 %v1408, %v1448
    %v1451 = vtanh.pop %v1444
    %1453 = vrot.lane.b32.xlu0 %v1451, 32
    %v1454 = vpop.permute.xlu0 %1453
    %v1456 = vmul.f32 %v1415, %v1454
    %v1457 = vpack.c.bf16 %v1450, %v1450
    %v1459 = vrot.slane %v1457, 2
    %1460 = vrot.lane.b32.xlu0 %v1459, 64
    %v1461 = vpop.permute.xlu0 %1460
    %v1463 = vsel %vm369, %v1461, 0
    %1465 = vmatprep.subr.bf16.mxu0 0
    %1466 = vmatpush1.bf16.msra.mxu0 %v365
    %1467 = vmatprep.subr.bf16.mxu0 0
    %1468 = vmatpush1.bf16.msra.mxu0 %v366
    %1469 = vmatprep.subr.bf16.mxu0 0
    %1470 = vmatpush1.bf16.msra.mxu0 0
    %1471 = vmatprep.subr.bf16.mxu0 0
    %1472 = vmatpush1.bf16.msra.mxu0 0
    %1473 = vmatprep.subr.bf16.mxu0 0
    %1474 = vmatpush1.bf16.msra.mxu0 0
    %1475 = vmatprep.subr.bf16.mxu0 0
    %1476 = vmatpush1.bf16.msra.mxu0 0
    %1477 = vmatprep.subr.bf16.mxu0 0
    %1478 = vmatpush1.bf16.msra.mxu0 0
    %1479 = vmatprep.subr.bf16.mxu0 0
    %1480 = vmatpush1.bf16.msra.mxu0 0
    %1481 = vmatprep.subr.bf16.mxu0 0
    %1482 = vmatpush1.bf16.msra.mxu0 0
    %1483 = vmatprep.subr.bf16.mxu0 0
    %1484 = vmatpush1.bf16.msra.mxu0 0
    %1485 = vmatprep.subr.bf16.mxu0 0
    %1486 = vmatpush1.bf16.msra.mxu0 0
    %1487 = vmatprep.subr.bf16.mxu0 0
    %1488 = vmatpush1.bf16.msra.mxu0 0
    %1489 = vmatprep.subr.bf16.mxu0 0
    %1490 = vmatpush1.bf16.msra.mxu0 0
    %1491 = vmatprep.subr.bf16.mxu0 0
    %1492 = vmatpush1.bf16.msra.mxu0 0
    %1493 = vmatprep.subr.bf16.mxu0 0
    %1494 = vmatpush1.bf16.msra.mxu0 0
    %1495 = vmatprep.subr.bf16.mxu0 0
    %1496 = vmatpush1.bf16.msra.mxu0 0
    %1497 = vmatprep.mubr.bf16.mxu0 0
    %1498 = vmatmul.mubr.bf16.gmra.mrb[0].mxu0 %v1463
    %v1499 = vpop.f32.mrb[0].mxu0
    %v1500 = vadd.f32 0.0, %v1499
    %v1501 = vpop.f32.mrb[0].mxu0
    %v1502 = vpop.f32.mrb[0].mxu0
    %v1503 = vpop.f32.mrb[0].mxu0
    %1504 = vdwg.mxu0
    %v1506 = vrot.slane %v1500, 2
    %v1508 = vadd.f32 %v273, %v1506
    %v1509 = vpack.c.bf16 %v1456, %v1456
    %v1511 = vrot.slane %v1509, 1
    %1512 = vrot.lane.b32.xlu0 %v1511, 64
    %v1513 = vpop.permute.xlu0 %1512
    %v1515 = vsel %vm369, %v1513, 0
    %1517 = vmatprep.subr.bf16.mxu0 0
    %1518 = vmatpush1.bf16.msra.mxu0 %v422
    %1519 = vmatprep.subr.bf16.mxu0 0
    %1520 = vmatpush1.bf16.msra.mxu0 %v423
    %1521 = vmatprep.subr.bf16.mxu0 0
    %1522 = vmatpush1.bf16.msra.mxu0 0
    %1523 = vmatprep.subr.bf16.mxu0 0
    %1524 = vmatpush1.bf16.msra.mxu0 0
    %1525 = vmatprep.subr.bf16.mxu0 0
    %1526 = vmatpush1.bf16.msra.mxu0 0
    %1527 = vmatprep.subr.bf16.mxu0 0
    %1528 = vmatpush1.bf16.msra.mxu0 0
    %1529 = vmatprep.subr.bf16.mxu0 0
    %1530 = vmatpush1.bf16.msra.mxu0 0
    %1531 = vmatprep.subr.bf16.mxu0 0
    %1532 = vmatpush1.bf16.msra.mxu0 0
    %1533 = vmatprep.subr.bf16.mxu0 0
    %1534 = vmatpush1.bf16.msra.mxu0 0
    %1535 = vmatprep.subr.bf16.mxu0 0
    %1536 = vmatpush1.bf16.msra.mxu0 0
    %1537 = vmatprep.subr.bf16.mxu0 0
    %1538 = vmatpush1.bf16.msra.mxu0 0
    %1539 = vmatprep.subr.bf16.mxu0 0
    %1540 = vmatpush1.bf16.msra.mxu0 0
    %1541 = vmatprep.subr.bf16.mxu0 0
    %1542 = vmatpush1.bf16.msra.mxu0 0
    %1543 = vmatprep.subr.bf16.mxu0 0
    %1544 = vmatpush1.bf16.msra.mxu0 0
    %1545 = vmatprep.subr.bf16.mxu0 0
    %1546 = vmatpush1.bf16.msra.mxu0 0
    %1547 = vmatprep.subr.bf16.mxu0 0
    %1548 = vmatpush1.bf16.msra.mxu0 0
    %1549 = vmatprep.mubr.bf16.mxu0 0
    %1550 = vmatmul.mubr.bf16.gmra.mrb[0].mxu0 %v1515
    %v1551 = vpop.f32.mrb[0].mxu0
    %v1552 = vadd.f32 0.0, %v1551
    %v1553 = vpop.f32.mrb[0].mxu0
    %v1554 = vpop.f32.mrb[0].mxu0
    %v1555 = vpop.f32.mrb[0].mxu0
    %1556 = vdwg.mxu0
    %v1557 = vadd.f32 %v349, %v1552
    %v1558 = vxor.u32 %v1508, 2147483648
    %v1559 = vmul.f32 %v1558, 1.442695
    %v1560 = vpow.pop %v1559
    %v1561 = vadd.f32 %v1560, 1.0
    %v1562 = vrcp.pop %v1561
    %v1563 = vmul.f32 1.0, %v1562
    %v1564 = vtanh.pop %v1508
    %v1565 = vxor.u32 %v1557, 2147483648
    %v1566 = vmul.f32 %v1565, 1.442695
    %v1567 = vpow.pop %v1566
    %v1568 = vadd.f32 %v1567, 1.0
    %v1569 = vrcp.pop %v1568
    %v1570 = vmul.f32 1.0, %v1569
    %v1571 = vtanh.pop %v1557
    %v1573 = vrot.slane %v1430, 6
    %v1575 = vmul.f32 %v1563, %v1573
    %1577 = vrot.lane.b32.xlu0 %v1564, 32
    %v1578 = vpop.permute.xlu0 %1577
    %v1580 = vmul.f32 %v1563, %v1578
    %1582 = vrot.lane.b32.xlu0 %v1580, 32
    %v1583 = vpop.permute.xlu0 %1582
    %v1585 = vadd.f32 %v1575, %v1583
    %v1587 = vrot.slane %v1444, 2
    %v1589 = vmul.f32 %v1570, %v1587
    %1591 = vrot.lane.b32.xlu0 %v1571, 32
    %v1592 = vpop.permute.xlu0 %1591
    %v1594 = vmul.f32 %v1570, %v1592
    %1596 = vrot.lane.b32.xlu0 %v1594, 32
    %v1597 = vpop.permute.xlu0 %1596
    %v1599 = vadd.f32 %v1589, %v1597
    %v1600 = vtanh.pop %v1585
    %1602 = vrot.lane.b32.xlu0 %v1600, 32
    %v1603 = vpop.permute.xlu0 %1602
    %v1605 = vmul.f32 %v1563, %v1603
    %v1606 = vtanh.pop %v1599
    %1608 = vrot.lane.b32.xlu0 %v1606, 32
    %v1609 = vpop.permute.xlu0 %1608
    %v1611 = vmul.f32 %v1570, %v1609
    %vm1612 = vcmask 1041408
    %v1613 = vsel %vm1612, %v511, %v668
    %vm1614 = vcmask 1043456
    %v1615 = vsel %vm1614, %v1613, %v826
    %vm1616 = vcmask 1045504
    %v1617 = vsel %vm1616, %v1615, %v981
    %v1618 = vsel %vm1612, %v1135, %v1292
    %v1619 = vsel %vm1614, %v1618, %v1450
    %v1620 = vsel %vm1616, %v1619, %v1605
    %v1621 = vsel %vm1612, %v1611, %v1456
    %v1622 = vsel %vm1614, %v1621, %v1298
    %v1623 = vsel %vm1616, %v1622, %v1141
    %v1624 = vsel %vm1612, %v987, %v832
    %v1625 = vsel %vm1614, %v1624, %v674
    %v1626 = vsel %vm1616, %v1625, %v517
    %1629 = vrot.lane.b32.xlu0 %v1617, 64
    %v1630 = vpop.permute.xlu0 %1629
    %1631 = vrot.lane.b32.xlu0 %v1620, 64
    %v1632 = vpop.permute.xlu0 %1631
    %1637 = vrot.lane.b32.xlu0 %v1623, 96
    %v1638 = vpop.permute.xlu0 %1637
    %1639 = vrot.lane.b32.xlu0 %v1626, 96
    %v1640 = vpop.permute.xlu0 %1639
    %v1643 = vsel %vm369, %v1630, %v1638
    %v1644 = vsel %vm369, %v1632, %v1640
    %v1645 = vld [vmem:[%s8] sm:$0xff]
    %v1646 = vld [vmem:[%s8 + $0x8] sm:$0xff]
    %v1647 = vld [vmem:[%s8 + $0x10] sm:$0xff]
    %v1648 = vld [vmem:[%s8 + $0x18] sm:$0xff]
    %v1649 = vld [vmem:[%s8 + $0x20] sm:$0xff]
    %v1650 = vld [vmem:[%s8 + $0x28] sm:$0xff]
    %v1651 = vld [vmem:[%s8 + $0x30] sm:$0xff]
    %v1652 = vld [vmem:[%s8 + $0x38] sm:$0xff]
    %v1653 = vld [vmem:[%s9] sm:$0xf]
    %v1654 = vld [vmem:[%s9 + $0x4] sm:$0xf]
    %v1655 = vld [vmem:[%s9 + $0x8] sm:$0xf]
    %v1656 = vld [vmem:[%s9 + $0xc] sm:$0xf]
    %v1657 = vld [vmem:[%s10] sm:$0x1]
    %v1658 = vld [vmem:[%s11] sm:$0xff]
    %v1659 = vld [vmem:[%s11 + $0x8] sm:$0xff]
    %v1660 = vld [vmem:[%s11 + $0x10] sm:$0xff]
    %v1661 = vld [vmem:[%s11 + $0x18] sm:$0xff]
    %v1662 = vld [vmem:[%s11 + $0x20] sm:$0xff]
    %v1663 = vld [vmem:[%s11 + $0x28] sm:$0xff]
    %v1664 = vld [vmem:[%s11 + $0x30] sm:$0xff]
    %v1665 = vld [vmem:[%s11 + $0x38] sm:$0xff]
    %v1666 = vld [vmem:[%s12] sm:$0xf]
    %v1667 = vld [vmem:[%s12 + $0x4] sm:$0xf]
    %v1668 = vld [vmem:[%s12 + $0x8] sm:$0xf]
    %v1669 = vld [vmem:[%s12 + $0xc] sm:$0xf]
    %v1670 = vld [vmem:[%s13] sm:$0x1]
    %v1672 = vlaneseq
    %v1673 = vshrl.u32 %v1672, 7
    %v1674 = vsub.s32 0, %v1673
    %v1675 = vrot.slane %v1657, %v1674
    %vm1677 = vcmask 523264
    %v1679 = vsel %vm1677, %v1643, 0
    %v1682 = vsel %vm1677, %v1644, 0
    %1684 = vmatprep.subr.mxu0 0.0
    %1685 = vmatpush1.msra.mxu0 %v1645
    %1686 = vmatprep.subr.mxu0 0.0
    %1687 = vmatpush1.msra.mxu0 %v1646
    %1688 = vmatprep.subr.mxu0 0.0
    %1689 = vmatpush1.msra.mxu0 %v1647
    %1690 = vmatprep.subr.mxu0 0.0
    %1691 = vmatpush1.msra.mxu0 %v1648
    %1692 = vmatprep.subr.mxu0 0.0
    %1693 = vmatpush1.msra.mxu0 %v1649
    %1694 = vmatprep.subr.mxu0 0.0
    %1695 = vmatpush1.msra.mxu0 %v1650
    %1696 = vmatprep.subr.mxu0 0.0
    %1697 = vmatpush1.msra.mxu0 %v1651
    %1698 = vmatprep.subr.mxu0 0.0
    %1699 = vmatpush1.msra.mxu0 %v1652
    %1700 = vmatprep.subr.mxu0 0.0
    %1701 = vmatpush1.msra.mxu0 0.0
    %1702 = vmatprep.subr.mxu0 0.0
    %1703 = vmatpush1.msra.mxu0 0.0
    %1704 = vmatprep.subr.mxu0 0.0
    %1705 = vmatpush1.msra.mxu0 0.0
    %1706 = vmatprep.subr.mxu0 0.0
    %1707 = vmatpush1.msra.mxu0 0.0
    %1708 = vmatprep.subr.mxu0 0.0
    %1709 = vmatpush1.msra.mxu0 0.0
    %1710 = vmatprep.subr.mxu0 0.0
    %1711 = vmatpush1.msra.mxu0 0.0
    %1712 = vmatprep.subr.mxu0 0.0
    %1713 = vmatpush1.msra.mxu0 0.0
    %1714 = vmatprep.subr.mxu0 0.0
    %1715 = vmatpush1.msra.mxu0 0.0
    %1716 = vmatprep.subr.mxu0 0.0
    %1717 = vmatpush1.msra.mxu0 0.0
    %1718 = vmatprep.subr.mxu0 0.0
    %1719 = vmatpush1.msra.mxu0 0.0
    %1720 = vmatprep.subr.mxu0 0.0
    %1721 = vmatpush1.msra.mxu0 0.0
    %1722 = vmatprep.subr.mxu0 0.0
    %1723 = vmatpush1.msra.mxu0 0.0
    %1724 = vmatprep.subr.mxu0 0.0
    %1725 = vmatpush1.msra.mxu0 0.0
    %1726 = vmatprep.subr.mxu0 0.0
    %1727 = vmatpush1.msra.mxu0 0.0
    %1728 = vmatprep.subr.mxu0 0.0
    %1729 = vmatpush1.msra.mxu0 0.0
    %1730 = vmatprep.subr.mxu0 0.0
    %1731 = vmatpush1.msra.mxu0 0.0
    %1732 = vmatprep.subr.mxu0 0.0
    %1733 = vmatpush1.msra.mxu0 0.0
    %1734 = vmatprep.subr.mxu0 0.0
    %1735 = vmatpush1.msra.mxu0 0.0
    %1736 = vmatprep.subr.mxu0 0.0
    %1737 = vmatpush1.msra.mxu0 0.0
    %1738 = vmatprep.subr.mxu0 0.0
    %1739 = vmatpush1.msra.mxu0 0.0
    %1740 = vmatprep.subr.mxu0 0.0
    %1741 = vmatpush1.msra.mxu0 0.0
    %1742 = vmatprep.subr.mxu0 0.0
    %1743 = vmatpush1.msra.mxu0 0.0
    %1744 = vmatprep.subr.mxu0 0.0
    %1745 = vmatpush1.msra.mxu0 0.0
    %1746 = vmatprep.subr.mxu0 0.0
    %1747 = vmatpush1.msra.mxu0 0.0
    %1748 = vmatprep.mubr.f32.mxu0 0.0
    %1749 = vmatmul.mubr.f32.gmra.mrb[0].mxu0 %v1679
    %v1750 = vpop.f32.mrb[0].mxu0
    %v1751 = vadd.f32 %v1675, %v1750
    %v1752 = vpop.f32.mrb[0].mxu0
    %1753 = vmatprep.mubr.f32.mxu0 0.0
    %1754 = vmatmul.mubr.f32.gmra.mrb[0].mxu0 %v1682
    %v1755 = vpop.f32.mrb[0].mxu0
    %v1756 = vadd.f32 %v1675, %v1755
    %v1757 = vpop.f32.mrb[0].mxu0
    %1758 = vdwg.mxu0
    %v1760 = vlaneseq
    %v1761 = vshrl.u32 %v1760, 7
    %v1762 = vsub.s32 0, %v1761
    %v1763 = vrot.slane %v1670, %v1762
    %1765 = vmatprep.subr.mxu0 0.0
    %1766 = vmatpush1.msra.mxu0 %v1658
    %1767 = vmatprep.subr.mxu0 0.0
    %1768 = vmatpush1.msra.mxu0 %v1659
    %1769 = vmatprep.subr.mxu0 0.0
    %1770 = vmatpush1.msra.mxu0 %v1660
    %1771 = vmatprep.subr.mxu0 0.0
    %1772 = vmatpush1.msra.mxu0 %v1661
    %1773 = vmatprep.subr.mxu0 0.0
    %1774 = vmatpush1.msra.mxu0 %v1662
    %1775 = vmatprep.subr.mxu0 0.0
    %1776 = vmatpush1.msra.mxu0 %v1663
    %1777 = vmatprep.subr.mxu0 0.0
    %1778 = vmatpush1.msra.mxu0 %v1664
    %1779 = vmatprep.subr.mxu0 0.0
    %1780 = vmatpush1.msra.mxu0 %v1665
    %1781 = vmatprep.subr.mxu0 0.0
    %1782 = vmatpush1.msra.mxu0 0.0
    %1783 = vmatprep.subr.mxu0 0.0
    %1784 = vmatpush1.msra.mxu0 0.0
    %1785 = vmatprep.subr.mxu0 0.0
    %1786 = vmatpush1.msra.mxu0 0.0
    %1787 = vmatprep.subr.mxu0 0.0
    %1788 = vmatpush1.msra.mxu0 0.0
    %1789 = vmatprep.subr.mxu0 0.0
    %1790 = vmatpush1.msra.mxu0 0.0
    %1791 = vmatprep.subr.mxu0 0.0
    %1792 = vmatpush1.msra.mxu0 0.0
    %1793 = vmatprep.subr.mxu0 0.0
    %1794 = vmatpush1.msra.mxu0 0.0
    %1795 = vmatprep.subr.mxu0 0.0
    %1796 = vmatpush1.msra.mxu0 0.0
    %1797 = vmatprep.subr.mxu0 0.0
    %1798 = vmatpush1.msra.mxu0 0.0
    %1799 = vmatprep.subr.mxu0 0.0
    %1800 = vmatpush1.msra.mxu0 0.0
    %1801 = vmatprep.subr.mxu0 0.0
    %1802 = vmatpush1.msra.mxu0 0.0
    %1803 = vmatprep.subr.mxu0 0.0
    %1804 = vmatpush1.msra.mxu0 0.0
    %1805 = vmatprep.subr.mxu0 0.0
    %1806 = vmatpush1.msra.mxu0 0.0
    %1807 = vmatprep.subr.mxu0 0.0
    %1808 = vmatpush1.msra.mxu0 0.0
    %1809 = vmatprep.subr.mxu0 0.0
    %1810 = vmatpush1.msra.mxu0 0.0
    %1811 = vmatprep.subr.mxu0 0.0
    %1812 = vmatpush1.msra.mxu0 0.0
    %1813 = vmatprep.subr.mxu0 0.0
    %1814 = vmatpush1.msra.mxu0 0.0
    %1815 = vmatprep.subr.mxu0 0.0
    %1816 = vmatpush1.msra.mxu0 0.0
    %1817 = vmatprep.subr.mxu0 0.0
    %1818 = vmatpush1.msra.mxu0 0.0
    %1819 = vmatprep.subr.mxu0 0.0
    %1820 = vmatpush1.msra.mxu0 0.0
    %1821 = vmatprep.subr.mxu0 0.0
    %1822 = vmatpush1.msra.mxu0 0.0
    %1823 = vmatprep.subr.mxu0 0.0
    %1824 = vmatpush1.msra.mxu0 0.0
    %1825 = vmatprep.subr.mxu0 0.0
    %1826 = vmatpush1.msra.mxu0 0.0
    %1827 = vmatprep.subr.mxu0 0.0
    %1828 = vmatpush1.msra.mxu0 0.0
    %1829 = vmatprep.mubr.f32.mxu0 0.0
    %1830 = vmatmul.mubr.f32.gmra.mrb[0].mxu0 %v1679
    %v1831 = vpop.f32.mrb[0].mxu0
    %v1832 = vadd.f32 %v1763, %v1831
    %v1833 = vpop.f32.mrb[0].mxu0
    %1834 = vmatprep.mubr.f32.mxu0 0.0
    %1835 = vmatmul.mubr.f32.gmra.mrb[0].mxu0 %v1682
    %v1836 = vpop.f32.mrb[0].mxu0
    %v1837 = vadd.f32 %v1763, %v1836
    %v1838 = vpop.f32.mrb[0].mxu0
    %1839 = vdwg.mxu0
    %v1844 = vunpack.c.l.b16 %v1653
    %v1845 = vunpack.c.l.b16 %v1654
    %v1846 = vunpack.c.l.b16 %v1655
    %v1847 = vunpack.c.l.b16 %v1656
    %v1848 = vpack.c.b16 %v1845, %v1844
    %v1849 = vpack.c.b16 %v1847, %v1846
    %1852 = vmatprep.subr.bf16.mxu0 0
    %1853 = vmatpush1.bf16.msra.mxu0 %v1848
    %1854 = vmatprep.subr.bf16.mxu0 0
    %1855 = vmatpush1.bf16.msra.mxu0 %v1849
    %1856 = vmatprep.subr.bf16.mxu0 0
    %1857 = vmatpush1.bf16.msra.mxu0 0
    %1858 = vmatprep.subr.bf16.mxu0 0
    %1859 = vmatpush1.bf16.msra.mxu0 0
    %1860 = vmatprep.subr.bf16.mxu0 0
    %1861 = vmatpush1.bf16.msra.mxu0 0
    %1862 = vmatprep.subr.bf16.mxu0 0
    %1863 = vmatpush1.bf16.msra.mxu0 0
    %1864 = vmatprep.subr.bf16.mxu0 0
    %1865 = vmatpush1.bf16.msra.mxu0 0
    %1866 = vmatprep.subr.bf16.mxu0 0
    %1867 = vmatpush1.bf16.msra.mxu0 0
    %1868 = vmatprep.subr.bf16.mxu0 0
    %1869 = vmatpush1.bf16.msra.mxu0 0
    %1870 = vmatprep.subr.bf16.mxu0 0
    %1871 = vmatpush1.bf16.msra.mxu0 0
    %1872 = vmatprep.subr.bf16.mxu0 0
    %1873 = vmatpush1.bf16.msra.mxu0 0
    %1874 = vmatprep.subr.bf16.mxu0 0
    %1875 = vmatpush1.bf16.msra.mxu0 0
    %1876 = vmatprep.subr.bf16.mxu0 0
    %1877 = vmatpush1.bf16.msra.mxu0 0
    %1878 = vmatprep.subr.bf16.mxu0 0
    %1879 = vmatpush1.bf16.msra.mxu0 0
    %1880 = vmatprep.subr.bf16.mxu0 0
    %1881 = vmatpush1.bf16.msra.mxu0 0
    %1882 = vmatprep.subr.bf16.mxu0 0
    %1883 = vmatpush1.bf16.msra.mxu0 0
    %1884 = vmatprep.mubr.bf16.mxu0 0
    %1885 = vmatmul.mubr.bf16.gmra.mrb[0].mxu0 %v371
    %v1886 = vpop.f32.mrb[0].mxu0
    %v1887 = vadd.f32 0.0, %v1886
    %v1888 = vpop.f32.mrb[0].mxu0
    %v1889 = vpop.f32.mrb[0].mxu0
    %v1890 = vpop.f32.mrb[0].mxu0
    %1891 = vdwg.mxu0
    %v1892 = vadd.f32 %v1751, %v1887
    %v1897 = vunpack.c.l.b16 %v1666
    %v1898 = vunpack.c.l.b16 %v1667
    %v1899 = vunpack.c.l.b16 %v1668
    %v1900 = vunpack.c.l.b16 %v1669
    %v1901 = vpack.c.b16 %v1898, %v1897
    %v1902 = vpack.c.b16 %v1900, %v1899
    %1905 = vmatprep.subr.bf16.mxu0 0
    %1906 = vmatpush1.bf16.msra.mxu0 %v1901
    %1907 = vmatprep.subr.bf16.mxu0 0
    %1908 = vmatpush1.bf16.msra.mxu0 %v1902
    %1909 = vmatprep.subr.bf16.mxu0 0
    %1910 = vmatpush1.bf16.msra.mxu0 0
    %1911 = vmatprep.subr.bf16.mxu0 0
    %1912 = vmatpush1.bf16.msra.mxu0 0
    %1913 = vmatprep.subr.bf16.mxu0 0
    %1914 = vmatpush1.bf16.msra.mxu0 0
    %1915 = vmatprep.subr.bf16.mxu0 0
    %1916 = vmatpush1.bf16.msra.mxu0 0
    %1917 = vmatprep.subr.bf16.mxu0 0
    %1918 = vmatpush1.bf16.msra.mxu0 0
    %1919 = vmatprep.subr.bf16.mxu0 0
    %1920 = vmatpush1.bf16.msra.mxu0 0
    %1921 = vmatprep.subr.bf16.mxu0 0
    %1922 = vmatpush1.bf16.msra.mxu0 0
    %1923 = vmatprep.subr.bf16.mxu0 0
    %1924 = vmatpush1.bf16.msra.mxu0 0
    %1925 = vmatprep.subr.bf16.mxu0 0
    %1926 = vmatpush1.bf16.msra.mxu0 0
    %1927 = vmatprep.subr.bf16.mxu0 0
    %1928 = vmatpush1.bf16.msra.mxu0 0
    %1929 = vmatprep.subr.bf16.mxu0 0
    %1930 = vmatpush1.bf16.msra.mxu0 0
    %1931 = vmatprep.subr.bf16.mxu0 0
    %1932 = vmatpush1.bf16.msra.mxu0 0
    %1933 = vmatprep.subr.bf16.mxu0 0
    %1934 = vmatpush1.bf16.msra.mxu0 0
    %1935 = vmatprep.subr.bf16.mxu0 0
    %1936 = vmatpush1.bf16.msra.mxu0 0
    %1937 = vmatprep.mubr.bf16.mxu0 0
    %1938 = vmatmul.mubr.bf16.gmra.mrb[0].mxu0 %v371
    %v1939 = vpop.f32.mrb[0].mxu0
    %v1940 = vadd.f32 0.0, %v1939
    %v1941 = vpop.f32.mrb[0].mxu0
    %v1942 = vpop.f32.mrb[0].mxu0
    %v1943 = vpop.f32.mrb[0].mxu0
    %1944 = vdwg.mxu0
    %v1946 = vrot.slane %v1940, 2
    %v1948 = vadd.f32 %v1837, %v1946
    %v1949 = vxor.u32 %v1892, 2147483648
    %v1950 = vmul.f32 %v1949, 1.442695
    %v1951 = vpow.pop %v1950
    %v1952 = vadd.f32 %v1951, 1.0
    %v1953 = vrcp.pop %v1952
    %v1954 = vmul.f32 1.0, %v1953
    %v1955 = vtanh.pop %v1892
    %v1956 = vxor.u32 %v1948, 2147483648
    %v1957 = vmul.f32 %v1956, 1.442695
    %v1958 = vpow.pop %v1957
    %v1959 = vadd.f32 %v1958, 1.0
    %v1960 = vrcp.pop %v1959
    %v1961 = vmul.f32 1.0, %v1960
    %v1962 = vtanh.pop %v1948
    %v1963 = vmul.f32 %v1954, 0.0
    %1965 = vrot.lane.b32.xlu0 %v1955, 32
    %v1966 = vpop.permute.xlu0 %1965
    %v1968 = vmul.f32 %v1954, %v1966
    %1970 = vrot.lane.b32.xlu0 %v1968, 32
    %v1971 = vpop.permute.xlu0 %1970
    %v1973 = vadd.f32 %v1963, %v1971
    %v1974 = vmul.f32 %v1961, 0.0
    %1976 = vrot.lane.b32.xlu0 %v1962, 32
    %v1977 = vpop.permute.xlu0 %1976
    %v1979 = vmul.f32 %v1961, %v1977
    %1981 = vrot.lane.b32.xlu0 %v1979, 32
    %v1982 = vpop.permute.xlu0 %1981
    %v1984 = vadd.f32 %v1974, %v1982
    %v1985 = vtanh.pop %v1973
    %1987 = vrot.lane.b32.xlu0 %v1985, 32
    %v1988 = vpop.permute.xlu0 %1987
    %v1990 = vmul.f32 %v1954, %v1988
    %v1991 = vtanh.pop %v1984
    %1993 = vrot.lane.b32.xlu0 %v1991, 32
    %v1994 = vpop.permute.xlu0 %1993
    %v1996 = vmul.f32 %v1961, %v1994
    %v1997 = vpack.c.bf16 %v1990, %v1990
    %1999 = vrot.lane.b32.xlu0 %v1997, 64
    %v2000 = vpop.permute.xlu0 %1999
    %v2002 = vsel %vm369, %v2000, 0
    %2004 = vmatprep.subr.bf16.mxu0 0
    %2005 = vmatpush1.bf16.msra.mxu0 %v1848
    %2006 = vmatprep.subr.bf16.mxu0 0
    %2007 = vmatpush1.bf16.msra.mxu0 %v1849
    %2008 = vmatprep.subr.bf16.mxu0 0
    %2009 = vmatpush1.bf16.msra.mxu0 0
    %2010 = vmatprep.subr.bf16.mxu0 0
    %2011 = vmatpush1.bf16.msra.mxu0 0
    %2012 = vmatprep.subr.bf16.mxu0 0
    %2013 = vmatpush1.bf16.msra.mxu0 0
    %2014 = vmatprep.subr.bf16.mxu0 0
    %2015 = vmatpush1.bf16.msra.mxu0 0
    %2016 = vmatprep.subr.bf16.mxu0 0
    %2017 = vmatpush1.bf16.msra.mxu0 0
    %2018 = vmatprep.subr.bf16.mxu0 0
    %2019 = vmatpush1.bf16.msra.mxu0 0
    %2020 = vmatprep.subr.bf16.mxu0 0
    %2021 = vmatpush1.bf16.msra.mxu0 0
    %2022 = vmatprep.subr.bf16.mxu0 0
    %2023 = vmatpush1.bf16.msra.mxu0 0
    %2024 = vmatprep.subr.bf16.mxu0 0
    %2025 = vmatpush1.bf16.msra.mxu0 0
    %2026 = vmatprep.subr.bf16.mxu0 0
    %2027 = vmatpush1.bf16.msra.mxu0 0
    %2028 = vmatprep.subr.bf16.mxu0 0
    %2029 = vmatpush1.bf16.msra.mxu0 0
    %2030 = vmatprep.subr.bf16.mxu0 0
    %2031 = vmatpush1.bf16.msra.mxu0 0
    %2032 = vmatprep.subr.bf16.mxu0 0
    %2033 = vmatpush1.bf16.msra.mxu0 0
    %2034 = vmatprep.subr.bf16.mxu0 0
    %2035 = vmatpush1.bf16.msra.mxu0 0
    %2036 = vmatprep.mubr.bf16.mxu0 0
    %2037 = vmatmul.mubr.bf16.gmra.mrb[0].mxu0 %v2002
    %v2038 = vpop.f32.mrb[0].mxu0
    %v2039 = vadd.f32 0.0, %v2038
    %v2040 = vpop.f32.mrb[0].mxu0
    %v2041 = vpop.f32.mrb[0].mxu0
    %v2042 = vpop.f32.mrb[0].mxu0
    %2043 = vdwg.mxu0
    %v2045 = vrot.slane %v2039, 6
    %v2047 = vadd.f32 %v1751, %v2045
    %v2048 = vpack.c.bf16 %v1996, %v1996
    %v2050 = vrot.slane %v2048, 3
    %2051 = vrot.lane.b32.xlu0 %v2050, 64
    %v2052 = vpop.permute.xlu0 %2051
    %v2054 = vsel %vm369, %v2052, 0
    %2056 = vmatprep.subr.bf16.mxu0 0
    %2057 = vmatpush1.bf16.msra.mxu0 %v1901
    %2058 = vmatprep.subr.bf16.mxu0 0
    %2059 = vmatpush1.bf16.msra.mxu0 %v1902
    %2060 = vmatprep.subr.bf16.mxu0 0
    %2061 = vmatpush1.bf16.msra.mxu0 0
    %2062 = vmatprep.subr.bf16.mxu0 0
    %2063 = vmatpush1.bf16.msra.mxu0 0
    %2064 = vmatprep.subr.bf16.mxu0 0
    %2065 = vmatpush1.bf16.msra.mxu0 0
    %2066 = vmatprep.subr.bf16.mxu0 0
    %2067 = vmatpush1.bf16.msra.mxu0 0
    %2068 = vmatprep.subr.bf16.mxu0 0
    %2069 = vmatpush1.bf16.msra.mxu0 0
    %2070 = vmatprep.subr.bf16.mxu0 0
    %2071 = vmatpush1.bf16.msra.mxu0 0
    %2072 = vmatprep.subr.bf16.mxu0 0
    %2073 = vmatpush1.bf16.msra.mxu0 0
    %2074 = vmatprep.subr.bf16.mxu0 0
    %2075 = vmatpush1.bf16.msra.mxu0 0
    %2076 = vmatprep.subr.bf16.mxu0 0
    %2077 = vmatpush1.bf16.msra.mxu0 0
    %2078 = vmatprep.subr.bf16.mxu0 0
    %2079 = vmatpush1.bf16.msra.mxu0 0
    %2080 = vmatprep.subr.bf16.mxu0 0
    %2081 = vmatpush1.bf16.msra.mxu0 0
    %2082 = vmatprep.subr.bf16.mxu0 0
    %2083 = vmatpush1.bf16.msra.mxu0 0
    %2084 = vmatprep.subr.bf16.mxu0 0
    %2085 = vmatpush1.bf16.msra.mxu0 0
    %2086 = vmatprep.subr.bf16.mxu0 0
    %2087 = vmatpush1.bf16.msra.mxu0 0
    %2088 = vmatprep.mubr.bf16.mxu0 0
    %2089 = vmatmul.mubr.bf16.gmra.mrb[0].mxu0 %v2054
    %v2090 = vpop.f32.mrb[0].mxu0
    %v2091 = vadd.f32 0.0, %v2090
    %v2092 = vpop.f32.mrb[0].mxu0
    %v2093 = vpop.f32.mrb[0].mxu0
    %v2094 = vpop.f32.mrb[0].mxu0
    %2095 = vdwg.mxu0
    %v2097 = vrot.slane %v2091, 4
    %v2099 = vadd.f32 %v1837, %v2097
    %v2100 = vxor.u32 %v2047, 2147483648
    %v2101 = vmul.f32 %v2100, 1.442695
    %v2102 = vpow.pop %v2101
    %v2103 = vadd.f32 %v2102, 1.0
    %v2104 = vrcp.pop %v2103
    %v2105 = vmul.f32 1.0, %v2104
    %v2106 = vtanh.pop %v2047
    %v2107 = vxor.u32 %v2099, 2147483648
    %v2108 = vmul.f32 %v2107, 1.442695
    %v2109 = vpow.pop %v2108
    %v2110 = vadd.f32 %v2109, 1.0
    %v2111 = vrcp.pop %v2110
    %v2112 = vmul.f32 1.0, %v2111
    %v2113 = vtanh.pop %v2099
    %v2115 = vrot.slane %v1973, 6
    %v2117 = vmul.f32 %v2105, %v2115
    %2119 = vrot.lane.b32.xlu0 %v2106, 32
    %v2120 = vpop.permute.xlu0 %2119
    %v2122 = vmul.f32 %v2105, %v2120
    %2124 = vrot.lane.b32.xlu0 %v2122, 32
    %v2125 = vpop.permute.xlu0 %2124
    %v2127 = vadd.f32 %v2117, %v2125
    %v2129 = vrot.slane %v1984, 2
    %v2131 = vmul.f32 %v2112, %v2129
    %2133 = vrot.lane.b32.xlu0 %v2113, 32
    %v2134 = vpop.permute.xlu0 %2133
    %v2136 = vmul.f32 %v2112, %v2134
    %2138 = vrot.lane.b32.xlu0 %v2136, 32
    %v2139 = vpop.permute.xlu0 %2138
    %v2141 = vadd.f32 %v2131, %v2139
    %v2142 = vtanh.pop %v2127
    %2144 = vrot.lane.b32.xlu0 %v2142, 32
    %v2145 = vpop.permute.xlu0 %2144
    %v2147 = vmul.f32 %v2105, %v2145
    %v2148 = vtanh.pop %v2141
    %2150 = vrot.lane.b32.xlu0 %v2148, 32
    %v2151 = vpop.permute.xlu0 %2150
    %v2153 = vmul.f32 %v2112, %v2151
    %v2155 = vrot.slane %v2147, 2
    %v2157 = vmax.f32 %v1990, %v2155
    %v2159 = vrot.slane %v2153, 6
    %v2161 = vmax.f32 %v1996, %v2159
    %v2162 = vpack.c.bf16 %v2147, %v2147
    %v2164 = vrot.slane %v2162, 1
    %2165 = vrot.lane.b32.xlu0 %v2164, 64
    %v2166 = vpop.permute.xlu0 %2165
    %v2168 = vsel %vm369, %v2166, 0
    %2170 = vmatprep.subr.bf16.mxu0 0
    %2171 = vmatpush1.bf16.msra.mxu0 %v1848
    %2172 = vmatprep.subr.bf16.mxu0 0
    %2173 = vmatpush1.bf16.msra.mxu0 %v1849
    %2174 = vmatprep.subr.bf16.mxu0 0
    %2175 = vmatpush1.bf16.msra.mxu0 0
    %2176 = vmatprep.subr.bf16.mxu0 0
    %2177 = vmatpush1.bf16.msra.mxu0 0
    %2178 = vmatprep.subr.bf16.mxu0 0
    %2179 = vmatpush1.bf16.msra.mxu0 0
    %2180 = vmatprep.subr.bf16.mxu0 0
    %2181 = vmatpush1.bf16.msra.mxu0 0
    %2182 = vmatprep.subr.bf16.mxu0 0
    %2183 = vmatpush1.bf16.msra.mxu0 0
    %2184 = vmatprep.subr.bf16.mxu0 0
    %2185 = vmatpush1.bf16.msra.mxu0 0
    %2186 = vmatprep.subr.bf16.mxu0 0
    %2187 = vmatpush1.bf16.msra.mxu0 0
    %2188 = vmatprep.subr.bf16.mxu0 0
    %2189 = vmatpush1.bf16.msra.mxu0 0
    %2190 = vmatprep.subr.bf16.mxu0 0
    %2191 = vmatpush1.bf16.msra.mxu0 0
    %2192 = vmatprep.subr.bf16.mxu0 0
    %2193 = vmatpush1.bf16.msra.mxu0 0
    %2194 = vmatprep.subr.bf16.mxu0 0
    %2195 = vmatpush1.bf16.msra.mxu0 0
    %2196 = vmatprep.subr.bf16.mxu0 0
    %2197 = vmatpush1.bf16.msra.mxu0 0
    %2198 = vmatprep.subr.bf16.mxu0 0
    %2199 = vmatpush1.bf16.msra.mxu0 0
    %2200 = vmatprep.subr.bf16.mxu0 0
    %2201 = vmatpush1.bf16.msra.mxu0 0
    %2202 = vmatprep.mubr.bf16.mxu0 0
    %2203 = vmatmul.mubr.bf16.gmra.mrb[0].mxu0 %v2168
    %v2204 = vpop.f32.mrb[0].mxu0
    %v2205 = vadd.f32 0.0, %v2204
    %v2206 = vpop.f32.mrb[0].mxu0
    %v2207 = vpop.f32.mrb[0].mxu0
    %v2208 = vpop.f32.mrb[0].mxu0
    %2209 = vdwg.mxu0
    %v2211 = vrot.slane %v2205, 4
    %v2213 = vadd.f32 %v1751, %v2211
    %v2214 = vpack.c.bf16 %v2153, %v2153
    %v2216 = vrot.slane %v2214, 2
    %2217 = vrot.lane.b32.xlu0 %v2216, 64
    %v2218 = vpop.permute.xlu0 %2217
    %v2220 = vsel %vm369, %v2218, 0
    %2222 = vmatprep.subr.bf16.mxu0 0
    %2223 = vmatpush1.bf16.msra.mxu0 %v1901
    %2224 = vmatprep.subr.bf16.mxu0 0
    %2225 = vmatpush1.bf16.msra.mxu0 %v1902
    %2226 = vmatprep.subr.bf16.mxu0 0
    %2227 = vmatpush1.bf16.msra.mxu0 0
    %2228 = vmatprep.subr.bf16.mxu0 0
    %2229 = vmatpush1.bf16.msra.mxu0 0
    %2230 = vmatprep.subr.bf16.mxu0 0
    %2231 = vmatpush1.bf16.msra.mxu0 0
    %2232 = vmatprep.subr.bf16.mxu0 0
    %2233 = vmatpush1.bf16.msra.mxu0 0
    %2234 = vmatprep.subr.bf16.mxu0 0
    %2235 = vmatpush1.bf16.msra.mxu0 0
    %2236 = vmatprep.subr.bf16.mxu0 0
    %2237 = vmatpush1.bf16.msra.mxu0 0
    %2238 = vmatprep.subr.bf16.mxu0 0
    %2239 = vmatpush1.bf16.msra.mxu0 0
    %2240 = vmatprep.subr.bf16.mxu0 0
    %2241 = vmatpush1.bf16.msra.mxu0 0
    %2242 = vmatprep.subr.bf16.mxu0 0
    %2243 = vmatpush1.bf16.msra.mxu0 0
    %2244 = vmatprep.subr.bf16.mxu0 0
    %2245 = vmatpush1.bf16.msra.mxu0 0
    %2246 = vmatprep.subr.bf16.mxu0 0
    %2247 = vmatpush1.bf16.msra.mxu0 0
    %2248 = vmatprep.subr.bf16.mxu0 0
    %2249 = vmatpush1.bf16.msra.mxu0 0
    %2250 = vmatprep.subr.bf16.mxu0 0
    %2251 = vmatpush1.bf16.msra.mxu0 0
    %2252 = vmatprep.subr.bf16.mxu0 0
    %2253 = vmatpush1.bf16.msra.mxu0 0
    %2254 = vmatprep.mubr.bf16.mxu0 0
    %2255 = vmatmul.mubr.bf16.gmra.mrb[0].mxu0 %v2220
    %v2256 = vpop.f32.mrb[0].mxu0
    %v2257 = vadd.f32 0.0, %v2256
    %v2258 = vpop.f32.mrb[0].mxu0
    %v2259 = vpop.f32.mrb[0].mxu0
    %v2260 = vpop.f32.mrb[0].mxu0
    %2261 = vdwg.mxu0
    %v2263 = vrot.slane %v2257, 6
    %v2265 = vadd.f32 %v1837, %v2263
    %v2266 = vxor.u32 %v2213, 2147483648
    %v2267 = vmul.f32 %v2266, 1.442695
    %v2268 = vpow.pop %v2267
    %v2269 = vadd.f32 %v2268, 1.0
    %v2270 = vrcp.pop %v2269
    %v2271 = vmul.f32 1.0, %v2270
    %v2272 = vtanh.pop %v2213
    %v2273 = vxor.u32 %v2265, 2147483648
    %v2274 = vmul.f32 %v2273, 1.442695
    %v2275 = vpow.pop %v2274
    %v2276 = vadd.f32 %v2275, 1.0
    %v2277 = vrcp.pop %v2276
    %v2278 = vmul.f32 1.0, %v2277
    %v2279 = vtanh.pop %v2265
    %v2281 = vrot.slane %v2127, 6
    %v2283 = vmul.f32 %v2271, %v2281
    %2285 = vrot.lane.b32.xlu0 %v2272, 32
    %v2286 = vpop.permute.xlu0 %2285
    %v2288 = vmul.f32 %v2271, %v2286
    %2290 = vrot.lane.b32.xlu0 %v2288, 32
    %v2291 = vpop.permute.xlu0 %2290
    %v2293 = vadd.f32 %v2283, %v2291
    %v2295 = vrot.slane %v2141, 2
    %v2297 = vmul.f32 %v2278, %v2295
    %2299 = vrot.lane.b32.xlu0 %v2279, 32
    %v2300 = vpop.permute.xlu0 %2299
    %v2302 = vmul.f32 %v2278, %v2300
    %2304 = vrot.lane.b32.xlu0 %v2302, 32
    %v2305 = vpop.permute.xlu0 %2304
    %v2307 = vadd.f32 %v2297, %v2305
    %v2308 = vtanh.pop %v2293
    %2310 = vrot.lane.b32.xlu0 %v2308, 32
    %v2311 = vpop.permute.xlu0 %2310
    %v2313 = vmul.f32 %v2271, %v2311
    %v2314 = vtanh.pop %v2307
    %2316 = vrot.lane.b32.xlu0 %v2314, 32
    %v2317 = vpop.permute.xlu0 %2316
    %v2319 = vmul.f32 %v2278, %v2317
    %v2321 = vrot.slane %v2313, 4
    %v2323 = vmax.f32 %v2157, %v2321
    %v2325 = vrot.slane %v2319, 4
    %v2327 = vmax.f32 %v2161, %v2325
    %v2328 = vpack.c.bf16 %v2313, %v2313
    %v2330 = vrot.slane %v2328, 2
    %2331 = vrot.lane.b32.xlu0 %v2330, 64
    %v2332 = vpop.permute.xlu0 %2331
    %v2334 = vsel %vm369, %v2332, 0
    %2336 = vmatprep.subr.bf16.mxu0 0
    %2337 = vmatpush1.bf16.msra.mxu0 %v1848
    %2338 = vmatprep.subr.bf16.mxu0 0
    %2339 = vmatpush1.bf16.msra.mxu0 %v1849
    %2340 = vmatprep.subr.bf16.mxu0 0
    %2341 = vmatpush1.bf16.msra.mxu0 0
    %2342 = vmatprep.subr.bf16.mxu0 0
    %2343 = vmatpush1.bf16.msra.mxu0 0
    %2344 = vmatprep.subr.bf16.mxu0 0
    %2345 = vmatpush1.bf16.msra.mxu0 0
    %2346 = vmatprep.subr.bf16.mxu0 0
    %2347 = vmatpush1.bf16.msra.mxu0 0
    %2348 = vmatprep.subr.bf16.mxu0 0
    %2349 = vmatpush1.bf16.msra.mxu0 0
    %2350 = vmatprep.subr.bf16.mxu0 0
    %2351 = vmatpush1.bf16.msra.mxu0 0
    %2352 = vmatprep.subr.bf16.mxu0 0
    %2353 = vmatpush1.bf16.msra.mxu0 0
    %2354 = vmatprep.subr.bf16.mxu0 0
    %2355 = vmatpush1.bf16.msra.mxu0 0
    %2356 = vmatprep.subr.bf16.mxu0 0
    %2357 = vmatpush1.bf16.msra.mxu0 0
    %2358 = vmatprep.subr.bf16.mxu0 0
    %2359 = vmatpush1.bf16.msra.mxu0 0
    %2360 = vmatprep.subr.bf16.mxu0 0
    %2361 = vmatpush1.bf16.msra.mxu0 0
    %2362 = vmatprep.subr.bf16.mxu0 0
    %2363 = vmatpush1.bf16.msra.mxu0 0
    %2364 = vmatprep.subr.bf16.mxu0 0
    %2365 = vmatpush1.bf16.msra.mxu0 0
    %2366 = vmatprep.subr.bf16.mxu0 0
    %2367 = vmatpush1.bf16.msra.mxu0 0
    %2368 = vmatprep.mubr.bf16.mxu0 0
    %2369 = vmatmul.mubr.bf16.gmra.mrb[0].mxu0 %v2334
    %v2370 = vpop.f32.mrb[0].mxu0
    %v2371 = vadd.f32 0.0, %v2370
    %v2372 = vpop.f32.mrb[0].mxu0
    %v2373 = vpop.f32.mrb[0].mxu0
    %v2374 = vpop.f32.mrb[0].mxu0
    %2375 = vdwg.mxu0
    %v2377 = vrot.slane %v2371, 2
    %v2379 = vadd.f32 %v1751, %v2377
    %v2380 = vpack.c.bf16 %v2319, %v2319
    %v2382 = vrot.slane %v2380, 1
    %2383 = vrot.lane.b32.xlu0 %v2382, 64
    %v2384 = vpop.permute.xlu0 %2383
    %v2386 = vsel %vm369, %v2384, 0
    %2388 = vmatprep.subr.bf16.mxu0 0
    %2389 = vmatpush1.bf16.msra.mxu0 %v1901
    %2390 = vmatprep.subr.bf16.mxu0 0
    %2391 = vmatpush1.bf16.msra.mxu0 %v1902
    %2392 = vmatprep.subr.bf16.mxu0 0
    %2393 = vmatpush1.bf16.msra.mxu0 0
    %2394 = vmatprep.subr.bf16.mxu0 0
    %2395 = vmatpush1.bf16.msra.mxu0 0
    %2396 = vmatprep.subr.bf16.mxu0 0
    %2397 = vmatpush1.bf16.msra.mxu0 0
    %2398 = vmatprep.subr.bf16.mxu0 0
    %2399 = vmatpush1.bf16.msra.mxu0 0
    %2400 = vmatprep.subr.bf16.mxu0 0
    %2401 = vmatpush1.bf16.msra.mxu0 0
    %2402 = vmatprep.subr.bf16.mxu0 0
    %2403 = vmatpush1.bf16.msra.mxu0 0
    %2404 = vmatprep.subr.bf16.mxu0 0
    %2405 = vmatpush1.bf16.msra.mxu0 0
    %2406 = vmatprep.subr.bf16.mxu0 0
    %2407 = vmatpush1.bf16.msra.mxu0 0
    %2408 = vmatprep.subr.bf16.mxu0 0
    %2409 = vmatpush1.bf16.msra.mxu0 0
    %2410 = vmatprep.subr.bf16.mxu0 0
    %2411 = vmatpush1.bf16.msra.mxu0 0
    %2412 = vmatprep.subr.bf16.mxu0 0
    %2413 = vmatpush1.bf16.msra.mxu0 0
    %2414 = vmatprep.subr.bf16.mxu0 0
    %2415 = vmatpush1.bf16.msra.mxu0 0
    %2416 = vmatprep.subr.bf16.mxu0 0
    %2417 = vmatpush1.bf16.msra.mxu0 0
    %2418 = vmatprep.subr.bf16.mxu0 0
    %2419 = vmatpush1.bf16.msra.mxu0 0
    %2420 = vmatprep.mubr.bf16.mxu0 0
    %2421 = vmatmul.mubr.bf16.gmra.mrb[0].mxu0 %v2386
    %v2422 = vpop.f32.mrb[0].mxu0
    %v2423 = vadd.f32 0.0, %v2422
    %v2424 = vpop.f32.mrb[0].mxu0
    %v2425 = vpop.f32.mrb[0].mxu0
    %v2426 = vpop.f32.mrb[0].mxu0
    %2427 = vdwg.mxu0
    %v2428 = vadd.f32 %v1837, %v2423
    %v2429 = vxor.u32 %v2379, 2147483648
    %v2430 = vmul.f32 %v2429, 1.442695
    %v2431 = vpow.pop %v2430
    %v2432 = vadd.f32 %v2431, 1.0
    %v2433 = vrcp.pop %v2432
    %v2434 = vmul.f32 1.0, %v2433
    %v2435 = vtanh.pop %v2379
    %v2436 = vxor.u32 %v2428, 2147483648
    %v2437 = vmul.f32 %v2436, 1.442695
    %v2438 = vpow.pop %v2437
    %v2439 = vadd.f32 %v2438, 1.0
    %v2440 = vrcp.pop %v2439
    %v2441 = vmul.f32 1.0, %v2440
    %v2442 = vtanh.pop %v2428
    %v2444 = vrot.slane %v2293, 6
    %v2446 = vmul.f32 %v2434, %v2444
    %2448 = vrot.lane.b32.xlu0 %v2435, 32
    %v2449 = vpop.permute.xlu0 %2448
    %v2451 = vmul.f32 %v2434, %v2449
    %2453 = vrot.lane.b32.xlu0 %v2451, 32
    %v2454 = vpop.permute.xlu0 %2453
    %v2456 = vadd.f32 %v2446, %v2454
    %v2458 = vrot.slane %v2307, 2
    %v2460 = vmul.f32 %v2441, %v2458
    %2462 = vrot.lane.b32.xlu0 %v2442, 32
    %v2463 = vpop.permute.xlu0 %2462
    %v2465 = vmul.f32 %v2441, %v2463
    %2467 = vrot.lane.b32.xlu0 %v2465, 32
    %v2468 = vpop.permute.xlu0 %2467
    %v2470 = vadd.f32 %v2460, %v2468
    %v2471 = vtanh.pop %v2456
    %2473 = vrot.lane.b32.xlu0 %v2471, 32
    %v2474 = vpop.permute.xlu0 %2473
    %v2476 = vmul.f32 %v2434, %v2474
    %v2477 = vtanh.pop %v2470
    %2479 = vrot.lane.b32.xlu0 %v2477, 32
    %v2480 = vpop.permute.xlu0 %2479
    %v2482 = vmul.f32 %v2441, %v2480
    %v2484 = vrot.slane %v2476, 6
    %v2486 = vmax.f32 %v2323, %v2484
    %v2488 = vrot.slane %v2482, 2
    %v2490 = vmax.f32 %v2327, %v2488
    %v2491 = vpack.c.bf16 %v2476, %v2476
    %v2493 = vrot.slane %v2491, 3
    %2494 = vrot.lane.b32.xlu0 %v2493, 64
    %v2495 = vpop.permute.xlu0 %2494
    %v2497 = vsel %vm369, %v2495, 0
    %2499 = vmatprep.subr.bf16.mxu0 0
    %2500 = vmatpush1.bf16.msra.mxu0 %v1848
    %2501 = vmatprep.subr.bf16.mxu0 0
    %2502 = vmatpush1.bf16.msra.mxu0 %v1849
    %2503 = vmatprep.subr.bf16.mxu0 0
    %2504 = vmatpush1.bf16.msra.mxu0 0
    %2505 = vmatprep.subr.bf16.mxu0 0
    %2506 = vmatpush1.bf16.msra.mxu0 0
    %2507 = vmatprep.subr.bf16.mxu0 0
    %2508 = vmatpush1.bf16.msra.mxu0 0
    %2509 = vmatprep.subr.bf16.mxu0 0
    %2510 = vmatpush1.bf16.msra.mxu0 0
    %2511 = vmatprep.subr.bf16.mxu0 0
    %2512 = vmatpush1.bf16.msra.mxu0 0
    %2513 = vmatprep.subr.bf16.mxu0 0
    %2514 = vmatpush1.bf16.msra.mxu0 0
    %2515 = vmatprep.subr.bf16.mxu0 0
    %2516 = vmatpush1.bf16.msra.mxu0 0
    %2517 = vmatprep.subr.bf16.mxu0 0
    %2518 = vmatpush1.bf16.msra.mxu0 0
    %2519 = vmatprep.subr.bf16.mxu0 0
    %2520 = vmatpush1.bf16.msra.mxu0 0
    %2521 = vmatprep.subr.bf16.mxu0 0
    %2522 = vmatpush1.bf16.msra.mxu0 0
    %2523 = vmatprep.subr.bf16.mxu0 0
    %2524 = vmatpush1.bf16.msra.mxu0 0
    %2525 = vmatprep.subr.bf16.mxu0 0
    %2526 = vmatpush1.bf16.msra.mxu0 0
    %2527 = vmatprep.subr.bf16.mxu0 0
    %2528 = vmatpush1.bf16.msra.mxu0 0
    %2529 = vmatprep.subr.bf16.mxu0 0
    %2530 = vmatpush1.bf16.msra.mxu0 0
    %2531 = vmatprep.mubr.bf16.mxu0 0
    %2532 = vmatmul.mubr.bf16.gmra.mrb[0].mxu0 %v2497
    %v2533 = vpop.f32.mrb[0].mxu0
    %v2534 = vadd.f32 0.0, %v2533
    %v2535 = vpop.f32.mrb[0].mxu0
    %v2536 = vpop.f32.mrb[0].mxu0
    %v2537 = vpop.f32.mrb[0].mxu0
    %2538 = vdwg.mxu0
    %v2539 = vadd.f32 %v1756, %v2534
    %v2540 = vpack.c.bf16 %v2482, %v2482
    %2542 = vrot.lane.b32.xlu0 %v2540, 64
    %v2543 = vpop.permute.xlu0 %2542
    %v2545 = vsel %vm369, %v2543, 0
    %2547 = vmatprep.subr.bf16.mxu0 0
    %2548 = vmatpush1.bf16.msra.mxu0 %v1901
    %2549 = vmatprep.subr.bf16.mxu0 0
    %2550 = vmatpush1.bf16.msra.mxu0 %v1902
    %2551 = vmatprep.subr.bf16.mxu0 0
    %2552 = vmatpush1.bf16.msra.mxu0 0
    %2553 = vmatprep.subr.bf16.mxu0 0
    %2554 = vmatpush1.bf16.msra.mxu0 0
    %2555 = vmatprep.subr.bf16.mxu0 0
    %2556 = vmatpush1.bf16.msra.mxu0 0
    %2557 = vmatprep.subr.bf16.mxu0 0
    %2558 = vmatpush1.bf16.msra.mxu0 0
    %2559 = vmatprep.subr.bf16.mxu0 0
    %2560 = vmatpush1.bf16.msra.mxu0 0
    %2561 = vmatprep.subr.bf16.mxu0 0
    %2562 = vmatpush1.bf16.msra.mxu0 0
    %2563 = vmatprep.subr.bf16.mxu0 0
    %2564 = vmatpush1.bf16.msra.mxu0 0
    %2565 = vmatprep.subr.bf16.mxu0 0
    %2566 = vmatpush1.bf16.msra.mxu0 0
    %2567 = vmatprep.subr.bf16.mxu0 0
    %2568 = vmatpush1.bf16.msra.mxu0 0
    %2569 = vmatprep.subr.bf16.mxu0 0
    %2570 = vmatpush1.bf16.msra.mxu0 0
    %2571 = vmatprep.subr.bf16.mxu0 0
    %2572 = vmatpush1.bf16.msra.mxu0 0
    %2573 = vmatprep.subr.bf16.mxu0 0
    %2574 = vmatpush1.bf16.msra.mxu0 0
    %2575 = vmatprep.subr.bf16.mxu0 0
    %2576 = vmatpush1.bf16.msra.mxu0 0
    %2577 = vmatprep.subr.bf16.mxu0 0
    %2578 = vmatpush1.bf16.msra.mxu0 0
    %2579 = vmatprep.mubr.bf16.mxu0 0
    %2580 = vmatmul.mubr.bf16.gmra.mrb[0].mxu0 %v2545
    %v2581 = vpop.f32.mrb[0].mxu0
    %v2582 = vadd.f32 0.0, %v2581
    %v2583 = vpop.f32.mrb[0].mxu0
    %v2584 = vpop.f32.mrb[0].mxu0
    %v2585 = vpop.f32.mrb[0].mxu0
    %2586 = vdwg.mxu0
    %v2588 = vrot.slane %v2582, 2
    %v2590 = vadd.f32 %v1832, %v2588
    %v2591 = vxor.u32 %v2539, 2147483648
    %v2592 = vmul.f32 %v2591, 1.442695
    %v2593 = vpow.pop %v2592
    %v2594 = vadd.f32 %v2593, 1.0
    %v2595 = vrcp.pop %v2594
    %v2596 = vmul.f32 1.0, %v2595
    %v2597 = vtanh.pop %v2539
    %v2598 = vxor.u32 %v2590, 2147483648
    %v2599 = vmul.f32 %v2598, 1.442695
    %v2600 = vpow.pop %v2599
    %v2601 = vadd.f32 %v2600, 1.0
    %v2602 = vrcp.pop %v2601
    %v2603 = vmul.f32 1.0, %v2602
    %v2604 = vtanh.pop %v2590
    %v2606 = vrot.slane %v2456, 6
    %v2608 = vmul.f32 %v2596, %v2606
    %2610 = vrot.lane.b32.xlu0 %v2597, 32
    %v2611 = vpop.permute.xlu0 %2610
    %v2613 = vmul.f32 %v2596, %v2611
    %2615 = vrot.lane.b32.xlu0 %v2613, 32
    %v2616 = vpop.permute.xlu0 %2615
    %v2618 = vadd.f32 %v2608, %v2616
    %v2620 = vrot.slane %v2470, 2
    %v2622 = vmul.f32 %v2603, %v2620
    %2624 = vrot.lane.b32.xlu0 %v2604, 32
    %v2625 = vpop.permute.xlu0 %2624
    %v2627 = vmul.f32 %v2603, %v2625
    %2629 = vrot.lane.b32.xlu0 %v2627, 32
    %v2630 = vpop.permute.xlu0 %2629
    %v2632 = vadd.f32 %v2622, %v2630
    %v2633 = vtanh.pop %v2618
    %2635 = vrot.lane.b32.xlu0 %v2633, 32
    %v2636 = vpop.permute.xlu0 %2635
    %v2638 = vmul.f32 %v2596, %v2636
    %v2639 = vtanh.pop %v2632
    %2641 = vrot.lane.b32.xlu0 %v2639, 32
    %v2642 = vpop.permute.xlu0 %2641
    %v2644 = vmul.f32 %v2603, %v2642
    %v2645 = vmax.f32 %v2486, %v2638
    %v2646 = vmax.f32 %v2490, %v2644
    %v2647 = vpack.c.bf16 %v2638, %v2638
    %2649 = vrot.lane.b32.xlu0 %v2647, 64
    %v2650 = vpop.permute.xlu0 %2649
    %v2652 = vsel %vm369, %v2650, 0
    %2654 = vmatprep.subr.bf16.mxu0 0
    %2655 = vmatpush1.bf16.msra.mxu0 %v1848
    %2656 = vmatprep.subr.bf16.mxu0 0
    %2657 = vmatpush1.bf16.msra.mxu0 %v1849
    %2658 = vmatprep.subr.bf16.mxu0 0
    %2659 = vmatpush1.bf16.msra.mxu0 0
    %2660 = vmatprep.subr.bf16.mxu0 0
    %2661 = vmatpush1.bf16.msra.mxu0 0
    %2662 = vmatprep.subr.bf16.mxu0 0
    %2663 = vmatpush1.bf16.msra.mxu0 0
    %2664 = vmatprep.subr.bf16.mxu0 0
    %2665 = vmatpush1.bf16.msra.mxu0 0
    %2666 = vmatprep.subr.bf16.mxu0 0
    %2667 = vmatpush1.bf16.msra.mxu0 0
    %2668 = vmatprep.subr.bf16.mxu0 0
    %2669 = vmatpush1.bf16.msra.mxu0 0
    %2670 = vmatprep.subr.bf16.mxu0 0
    %2671 = vmatpush1.bf16.msra.mxu0 0
    %2672 = vmatprep.subr.bf16.mxu0 0
    %2673 = vmatpush1.bf16.msra.mxu0 0
    %2674 = vmatprep.subr.bf16.mxu0 0
    %2675 = vmatpush1.bf16.msra.mxu0 0
    %2676 = vmatprep.subr.bf16.mxu0 0
    %2677 = vmatpush1.bf16.msra.mxu0 0
    %2678 = vmatprep.subr.bf16.mxu0 0
    %2679 = vmatpush1.bf16.msra.mxu0 0
    %2680 = vmatprep.subr.bf16.mxu0 0
    %2681 = vmatpush1.bf16.msra.mxu0 0
    %2682 = vmatprep.subr.bf16.mxu0 0
    %2683 = vmatpush1.bf16.msra.mxu0 0
    %2684 = vmatprep.subr.bf16.mxu0 0
    %2685 = vmatpush1.bf16.msra.mxu0 0
    %2686 = vmatprep.mubr.bf16.mxu0 0
    %2687 = vmatmul.mubr.bf16.gmra.mrb[0].mxu0 %v2652
    %v2688 = vpop.f32.mrb[0].mxu0
    %v2689 = vadd.f32 0.0, %v2688
    %v2690 = vpop.f32.mrb[0].mxu0
    %v2691 = vpop.f32.mrb[0].mxu0
    %v2692 = vpop.f32.mrb[0].mxu0
    %2693 = vdwg.mxu0
    %v2695 = vrot.slane %v2689, 6
    %v2697 = vadd.f32 %v1756, %v2695
    %v2698 = vpack.c.bf16 %v2644, %v2644
    %v2700 = vrot.slane %v2698, 3
    %2701 = vrot.lane.b32.xlu0 %v2700, 64
    %v2702 = vpop.permute.xlu0 %2701
    %v2704 = vsel %vm369, %v2702, 0
    %2706 = vmatprep.subr.bf16.mxu0 0
    %2707 = vmatpush1.bf16.msra.mxu0 %v1901
    %2708 = vmatprep.subr.bf16.mxu0 0
    %2709 = vmatpush1.bf16.msra.mxu0 %v1902
    %2710 = vmatprep.subr.bf16.mxu0 0
    %2711 = vmatpush1.bf16.msra.mxu0 0
    %2712 = vmatprep.subr.bf16.mxu0 0
    %2713 = vmatpush1.bf16.msra.mxu0 0
    %2714 = vmatprep.subr.bf16.mxu0 0
    %2715 = vmatpush1.bf16.msra.mxu0 0
    %2716 = vmatprep.subr.bf16.mxu0 0
    %2717 = vmatpush1.bf16.msra.mxu0 0
    %2718 = vmatprep.subr.bf16.mxu0 0
    %2719 = vmatpush1.bf16.msra.mxu0 0
    %2720 = vmatprep.subr.bf16.mxu0 0
    %2721 = vmatpush1.bf16.msra.mxu0 0
    %2722 = vmatprep.subr.bf16.mxu0 0
    %2723 = vmatpush1.bf16.msra.mxu0 0
    %2724 = vmatprep.subr.bf16.mxu0 0
    %2725 = vmatpush1.bf16.msra.mxu0 0
    %2726 = vmatprep.subr.bf16.mxu0 0
    %2727 = vmatpush1.bf16.msra.mxu0 0
    %2728 = vmatprep.subr.bf16.mxu0 0
    %2729 = vmatpush1.bf16.msra.mxu0 0
    %2730 = vmatprep.subr.bf16.mxu0 0
    %2731 = vmatpush1.bf16.msra.mxu0 0
    %2732 = vmatprep.subr.bf16.mxu0 0
    %2733 = vmatpush1.bf16.msra.mxu0 0
    %2734 = vmatprep.subr.bf16.mxu0 0
    %2735 = vmatpush1.bf16.msra.mxu0 0
    %2736 = vmatprep.subr.bf16.mxu0 0
    %2737 = vmatpush1.bf16.msra.mxu0 0
    %2738 = vmatprep.mubr.bf16.mxu0 0
    %2739 = vmatmul.mubr.bf16.gmra.mrb[0].mxu0 %v2704
    %v2740 = vpop.f32.mrb[0].mxu0
    %v2741 = vadd.f32 0.0, %v2740
    %v2742 = vpop.f32.mrb[0].mxu0
    %v2743 = vpop.f32.mrb[0].mxu0
    %v2744 = vpop.f32.mrb[0].mxu0
    %2745 = vdwg.mxu0
    %v2747 = vrot.slane %v2741, 4
    %v2749 = vadd.f32 %v1832, %v2747
    %v2750 = vxor.u32 %v2697, 2147483648
    %v2751 = vmul.f32 %v2750, 1.442695
    %v2752 = vpow.pop %v2751
    %v2753 = vadd.f32 %v2752, 1.0
    %v2754 = vrcp.pop %v2753
    %v2755 = vmul.f32 1.0, %v2754
    %v2756 = vtanh.pop %v2697
    %v2757 = vxor.u32 %v2749, 2147483648
    %v2758 = vmul.f32 %v2757, 1.442695
    %v2759 = vpow.pop %v2758
    %v2760 = vadd.f32 %v2759, 1.0
    %v2761 = vrcp.pop %v2760
    %v2762 = vmul.f32 1.0, %v2761
    %v2763 = vtanh.pop %v2749
    %v2765 = vrot.slane %v2618, 6
    %v2767 = vmul.f32 %v2755, %v2765
    %2769 = vrot.lane.b32.xlu0 %v2756, 32
    %v2770 = vpop.permute.xlu0 %2769
    %v2772 = vmul.f32 %v2755, %v2770
    %2774 = vrot.lane.b32.xlu0 %v2772, 32
    %v2775 = vpop.permute.xlu0 %2774
    %v2777 = vadd.f32 %v2767, %v2775
    %v2779 = vrot.slane %v2632, 2
    %v2781 = vmul.f32 %v2762, %v2779
    %2783 = vrot.lane.b32.xlu0 %v2763, 32
    %v2784 = vpop.permute.xlu0 %2783
    %v2786 = vmul.f32 %v2762, %v2784
    %2788 = vrot.lane.b32.xlu0 %v2786, 32
    %v2789 = vpop.permute.xlu0 %2788
    %v2791 = vadd.f32 %v2781, %v2789
    %v2792 = vtanh.pop %v2777
    %2794 = vrot.lane.b32.xlu0 %v2792, 32
    %v2795 = vpop.permute.xlu0 %2794
    %v2797 = vmul.f32 %v2755, %v2795
    %v2798 = vtanh.pop %v2791
    %2800 = vrot.lane.b32.xlu0 %v2798, 32
    %v2801 = vpop.permute.xlu0 %2800
    %v2803 = vmul.f32 %v2762, %v2801
    %v2805 = vrot.slane %v2797, 2
    %v2807 = vmax.f32 %v2645, %v2805
    %v2809 = vrot.slane %v2803, 6
    %v2811 = vmax.f32 %v2646, %v2809
    %v2812 = vpack.c.bf16 %v2797, %v2797
    %v2814 = vrot.slane %v2812, 1
    %2815 = vrot.lane.b32.xlu0 %v2814, 64
    %v2816 = vpop.permute.xlu0 %2815
    %v2818 = vsel %vm369, %v2816, 0
    %2820 = vmatprep.subr.bf16.mxu0 0
    %2821 = vmatpush1.bf16.msra.mxu0 %v1848
    %2822 = vmatprep.subr.bf16.mxu0 0
    %2823 = vmatpush1.bf16.msra.mxu0 %v1849
    %2824 = vmatprep.subr.bf16.mxu0 0
    %2825 = vmatpush1.bf16.msra.mxu0 0
    %2826 = vmatprep.subr.bf16.mxu0 0
    %2827 = vmatpush1.bf16.msra.mxu0 0
    %2828 = vmatprep.subr.bf16.mxu0 0
    %2829 = vmatpush1.bf16.msra.mxu0 0
    %2830 = vmatprep.subr.bf16.mxu0 0
    %2831 = vmatpush1.bf16.msra.mxu0 0
    %2832 = vmatprep.subr.bf16.mxu0 0
    %2833 = vmatpush1.bf16.msra.mxu0 0
    %2834 = vmatprep.subr.bf16.mxu0 0
    %2835 = vmatpush1.bf16.msra.mxu0 0
    %2836 = vmatprep.subr.bf16.mxu0 0
    %2837 = vmatpush1.bf16.msra.mxu0 0
    %2838 = vmatprep.subr.bf16.mxu0 0
    %2839 = vmatpush1.bf16.msra.mxu0 0
    %2840 = vmatprep.subr.bf16.mxu0 0
    %2841 = vmatpush1.bf16.msra.mxu0 0
    %2842 = vmatprep.subr.bf16.mxu0 0
    %2843 = vmatpush1.bf16.msra.mxu0 0
    %2844 = vmatprep.subr.bf16.mxu0 0
    %2845 = vmatpush1.bf16.msra.mxu0 0
    %2846 = vmatprep.subr.bf16.mxu0 0
    %2847 = vmatpush1.bf16.msra.mxu0 0
    %2848 = vmatprep.subr.bf16.mxu0 0
    %2849 = vmatpush1.bf16.msra.mxu0 0
    %2850 = vmatprep.subr.bf16.mxu0 0
    %2851 = vmatpush1.bf16.msra.mxu0 0
    %2852 = vmatprep.mubr.bf16.mxu0 0
    %2853 = vmatmul.mubr.bf16.gmra.mrb[0].mxu0 %v2818
    %v2854 = vpop.f32.mrb[0].mxu0
    %v2855 = vadd.f32 0.0, %v2854
    %v2856 = vpop.f32.mrb[0].mxu0
    %v2857 = vpop.f32.mrb[0].mxu0
    %v2858 = vpop.f32.mrb[0].mxu0
    %2859 = vdwg.mxu0
    %v2861 = vrot.slane %v2855, 4
    %v2863 = vadd.f32 %v1756, %v2861
    %v2864 = vpack.c.bf16 %v2803, %v2803
    %v2866 = vrot.slane %v2864, 2
    %2867 = vrot.lane.b32.xlu0 %v2866, 64
    %v2868 = vpop.permute.xlu0 %2867
    %v2870 = vsel %vm369, %v2868, 0
    %2872 = vmatprep.subr.bf16.mxu0 0
    %2873 = vmatpush1.bf16.msra.mxu0 %v1901
    %2874 = vmatprep.subr.bf16.mxu0 0
    %2875 = vmatpush1.bf16.msra.mxu0 %v1902
    %2876 = vmatprep.subr.bf16.mxu0 0
    %2877 = vmatpush1.bf16.msra.mxu0 0
    %2878 = vmatprep.subr.bf16.mxu0 0
    %2879 = vmatpush1.bf16.msra.mxu0 0
    %2880 = vmatprep.subr.bf16.mxu0 0
    %2881 = vmatpush1.bf16.msra.mxu0 0
    %2882 = vmatprep.subr.bf16.mxu0 0
    %2883 = vmatpush1.bf16.msra.mxu0 0
    %2884 = vmatprep.subr.bf16.mxu0 0
    %2885 = vmatpush1.bf16.msra.mxu0 0
    %2886 = vmatprep.subr.bf16.mxu0 0
    %2887 = vmatpush1.bf16.msra.mxu0 0
    %2888 = vmatprep.subr.bf16.mxu0 0
    %2889 = vmatpush1.bf16.msra.mxu0 0
    %2890 = vmatprep.subr.bf16.mxu0 0
    %2891 = vmatpush1.bf16.msra.mxu0 0
    %2892 = vmatprep.subr.bf16.mxu0 0
    %2893 = vmatpush1.bf16.msra.mxu0 0
    %2894 = vmatprep.subr.bf16.mxu0 0
    %2895 = vmatpush1.bf16.msra.mxu0 0
    %2896 = vmatprep.subr.bf16.mxu0 0
    %2897 = vmatpush1.bf16.msra.mxu0 0
    %2898 = vmatprep.subr.bf16.mxu0 0
    %2899 = vmatpush1.bf16.msra.mxu0 0
    %2900 = vmatprep.subr.bf16.mxu0 0
    %2901 = vmatpush1.bf16.msra.mxu0 0
    %2902 = vmatprep.subr.bf16.mxu0 0
    %2903 = vmatpush1.bf16.msra.mxu0 0
    %2904 = vmatprep.mubr.bf16.mxu0 0
    %2905 = vmatmul.mubr.bf16.gmra.mrb[0].mxu0 %v2870
    %v2906 = vpop.f32.mrb[0].mxu0
    %v2907 = vadd.f32 0.0, %v2906
    %v2908 = vpop.f32.mrb[0].mxu0
    %v2909 = vpop.f32.mrb[0].mxu0
    %v2910 = vpop.f32.mrb[0].mxu0
    %2911 = vdwg.mxu0
    %v2913 = vrot.slane %v2907, 6
    %v2915 = vadd.f32 %v1832, %v2913
    %v2916 = vxor.u32 %v2863, 2147483648
    %v2917 = vmul.f32 %v2916, 1.442695
    %v2918 = vpow.pop %v2917
    %v2919 = vadd.f32 %v2918, 1.0
    %v2920 = vrcp.pop %v2919
    %v2921 = vmul.f32 1.0, %v2920
    %v2922 = vtanh.pop %v2863
    %v2923 = vxor.u32 %v2915, 2147483648
    %v2924 = vmul.f32 %v2923, 1.442695
    %v2925 = vpow.pop %v2924
    %v2926 = vadd.f32 %v2925, 1.0
    %v2927 = vrcp.pop %v2926
    %v2928 = vmul.f32 1.0, %v2927
    %v2929 = vtanh.pop %v2915
    %v2931 = vrot.slane %v2777, 6
    %v2933 = vmul.f32 %v2921, %v2931
    %2935 = vrot.lane.b32.xlu0 %v2922, 32
    %v2936 = vpop.permute.xlu0 %2935
    %v2938 = vmul.f32 %v2921, %v2936
    %2940 = vrot.lane.b32.xlu0 %v2938, 32
    %v2941 = vpop.permute.xlu0 %2940
    %v2943 = vadd.f32 %v2933, %v2941
    %v2945 = vrot.slane %v2791, 2
    %v2947 = vmul.f32 %v2928, %v2945
    %2949 = vrot.lane.b32.xlu0 %v2929, 32
    %v2950 = vpop.permute.xlu0 %2949
    %v2952 = vmul.f32 %v2928, %v2950
    %2954 = vrot.lane.b32.xlu0 %v2952, 32
    %v2955 = vpop.permute.xlu0 %2954
    %v2957 = vadd.f32 %v2947, %v2955
    %v2958 = vtanh.pop %v2943
    %2960 = vrot.lane.b32.xlu0 %v2958, 32
    %v2961 = vpop.permute.xlu0 %2960
    %v2963 = vmul.f32 %v2921, %v2961
    %v2964 = vtanh.pop %v2957
    %2966 = vrot.lane.b32.xlu0 %v2964, 32
    %v2967 = vpop.permute.xlu0 %2966
    %v2969 = vmul.f32 %v2928, %v2967
    %v2971 = vrot.slane %v2963, 4
    %v2973 = vmax.f32 %v2807, %v2971
    %v2975 = vrot.slane %v2969, 4
    %v2977 = vmax.f32 %v2811, %v2975
    %v2978 = vpack.c.bf16 %v2963, %v2963
    %v2980 = vrot.slane %v2978, 2
    %2981 = vrot.lane.b32.xlu0 %v2980, 64
    %v2982 = vpop.permute.xlu0 %2981
    %v2984 = vsel %vm369, %v2982, 0
    %2986 = vmatprep.subr.bf16.mxu0 0
    %2987 = vmatpush1.bf16.msra.mxu0 %v1848
    %2988 = vmatprep.subr.bf16.mxu0 0
    %2989 = vmatpush1.bf16.msra.mxu0 %v1849
    %2990 = vmatprep.subr.bf16.mxu0 0
    %2991 = vmatpush1.bf16.msra.mxu0 0
    %2992 = vmatprep.subr.bf16.mxu0 0
    %2993 = vmatpush1.bf16.msra.mxu0 0
    %2994 = vmatprep.subr.bf16.mxu0 0
    %2995 = vmatpush1.bf16.msra.mxu0 0
    %2996 = vmatprep.subr.bf16.mxu0 0
    %2997 = vmatpush1.bf16.msra.mxu0 0
    %2998 = vmatprep.subr.bf16.mxu0 0
    %2999 = vmatpush1.bf16.msra.mxu0 0
    %3000 = vmatprep.subr.bf16.mxu0 0
    %3001 = vmatpush1.bf16.msra.mxu0 0
    %3002 = vmatprep.subr.bf16.mxu0 0
    %3003 = vmatpush1.bf16.msra.mxu0 0
    %3004 = vmatprep.subr.bf16.mxu0 0
    %3005 = vmatpush1.bf16.msra.mxu0 0
    %3006 = vmatprep.subr.bf16.mxu0 0
    %3007 = vmatpush1.bf16.msra.mxu0 0
    %3008 = vmatprep.subr.bf16.mxu0 0
    %3009 = vmatpush1.bf16.msra.mxu0 0
    %3010 = vmatprep.subr.bf16.mxu0 0
    %3011 = vmatpush1.bf16.msra.mxu0 0
    %3012 = vmatprep.subr.bf16.mxu0 0
    %3013 = vmatpush1.bf16.msra.mxu0 0
    %3014 = vmatprep.subr.bf16.mxu0 0
    %3015 = vmatpush1.bf16.msra.mxu0 0
    %3016 = vmatprep.subr.bf16.mxu0 0
    %3017 = vmatpush1.bf16.msra.mxu0 0
    %3018 = vmatprep.mubr.bf16.mxu0 0
    %3019 = vmatmul.mubr.bf16.gmra.mrb[0].mxu0 %v2984
    %v3020 = vpop.f32.mrb[0].mxu0
    %v3021 = vadd.f32 0.0, %v3020
    %v3022 = vpop.f32.mrb[0].mxu0
    %v3023 = vpop.f32.mrb[0].mxu0
    %v3024 = vpop.f32.mrb[0].mxu0
    %3025 = vdwg.mxu0
    %v3027 = vrot.slane %v3021, 2
    %v3029 = vadd.f32 %v1756, %v3027
    %v3030 = vpack.c.bf16 %v2969, %v2969
    %v3032 = vrot.slane %v3030, 1
    %3033 = vrot.lane.b32.xlu0 %v3032, 64
    %v3034 = vpop.permute.xlu0 %3033
    %v3036 = vsel %vm369, %v3034, 0
    %3038 = vmatprep.subr.bf16.mxu0 0
    %3039 = vmatpush1.bf16.msra.mxu0 %v1901
    %3040 = vmatprep.subr.bf16.mxu0 0
    %3041 = vmatpush1.bf16.msra.mxu0 %v1902
    %3042 = vmatprep.subr.bf16.mxu0 0
    %3043 = vmatpush1.bf16.msra.mxu0 0
    %3044 = vmatprep.subr.bf16.mxu0 0
    %3045 = vmatpush1.bf16.msra.mxu0 0
    %3046 = vmatprep.subr.bf16.mxu0 0
    %3047 = vmatpush1.bf16.msra.mxu0 0
    %3048 = vmatprep.subr.bf16.mxu0 0
    %3049 = vmatpush1.bf16.msra.mxu0 0
    %3050 = vmatprep.subr.bf16.mxu0 0
    %3051 = vmatpush1.bf16.msra.mxu0 0
    %3052 = vmatprep.subr.bf16.mxu0 0
    %3053 = vmatpush1.bf16.msra.mxu0 0
    %3054 = vmatprep.subr.bf16.mxu0 0
    %3055 = vmatpush1.bf16.msra.mxu0 0
    %3056 = vmatprep.subr.bf16.mxu0 0
    %3057 = vmatpush1.bf16.msra.mxu0 0
    %3058 = vmatprep.subr.bf16.mxu0 0
    %3059 = vmatpush1.bf16.msra.mxu0 0
    %3060 = vmatprep.subr.bf16.mxu0 0
    %3061 = vmatpush1.bf16.msra.mxu0 0
    %3062 = vmatprep.subr.bf16.mxu0 0
    %3063 = vmatpush1.bf16.msra.mxu0 0
    %3064 = vmatprep.subr.bf16.mxu0 0
    %3065 = vmatpush1.bf16.msra.mxu0 0
    %3066 = vmatprep.subr.bf16.mxu0 0
    %3067 = vmatpush1.bf16.msra.mxu0 0
    %3068 = vmatprep.subr.bf16.mxu0 0
    %3069 = vmatpush1.bf16.msra.mxu0 0
    %3070 = vmatprep.mubr.bf16.mxu0 0
    %3071 = vmatmul.mubr.bf16.gmra.mrb[0].mxu0 %v3036
    %v3072 = vpop.f32.mrb[0].mxu0
    %v3073 = vadd.f32 0.0, %v3072
    %v3074 = vpop.f32.mrb[0].mxu0
    %v3075 = vpop.f32.mrb[0].mxu0
    %v3076 = vpop.f32.mrb[0].mxu0
    %3077 = vdwg.mxu0
    %v3078 = vadd.f32 %v1832, %v3073
    %v3079 = vxor.u32 %v3029, 2147483648
    %v3080 = vmul.f32 %v3079, 1.442695
    %v3081 = vpow.pop %v3080
    %v3082 = vadd.f32 %v3081, 1.0
    %v3083 = vrcp.pop %v3082
    %v3084 = vmul.f32 1.0, %v3083
    %v3085 = vtanh.pop %v3029
    %v3086 = vxor.u32 %v3078, 2147483648
    %v3087 = vmul.f32 %v3086, 1.442695
    %v3088 = vpow.pop %v3087
    %v3089 = vadd.f32 %v3088, 1.0
    %v3090 = vrcp.pop %v3089
    %v3091 = vmul.f32 1.0, %v3090
    %v3092 = vtanh.pop %v3078
    %v3094 = vrot.slane %v2943, 6
    %v3096 = vmul.f32 %v3084, %v3094
    %3098 = vrot.lane.b32.xlu0 %v3085, 32
    %v3099 = vpop.permute.xlu0 %3098
    %v3101 = vmul.f32 %v3084, %v3099
    %3103 = vrot.lane.b32.xlu0 %v3101, 32
    %v3104 = vpop.permute.xlu0 %3103
    %v3106 = vadd.f32 %v3096, %v3104
    %v3108 = vrot.slane %v2957, 2
    %v3110 = vmul.f32 %v3091, %v3108
    %3112 = vrot.lane.b32.xlu0 %v3092, 32
    %v3113 = vpop.permute.xlu0 %3112
    %v3115 = vmul.f32 %v3091, %v3113
    %3117 = vrot.lane.b32.xlu0 %v3115, 32
    %v3118 = vpop.permute.xlu0 %3117
    %v3120 = vadd.f32 %v3110, %v3118
    %v3121 = vtanh.pop %v3106
    %3123 = vrot.lane.b32.xlu0 %v3121, 32
    %v3124 = vpop.permute.xlu0 %3123
    %v3126 = vmul.f32 %v3084, %v3124
    %v3127 = vtanh.pop %v3120
    %3129 = vrot.lane.b32.xlu0 %v3127, 32
    %v3130 = vpop.permute.xlu0 %3129
    %v3132 = vmul.f32 %v3091, %v3130
    %v3134 = vrot.slane %v3126, 6
    %v3136 = vmax.f32 %v2973, %v3134
    %v3138 = vrot.slane %v3132, 2
    %v3140 = vmax.f32 %v2977, %v3138
    %3142 = vrot.lane.b32.xlu0 %v3136, 64
    %v3143 = vpop.permute.xlu0 %3142
    %v3146 = vrot.slane %v3140, 6
    %3147 = vrot.lane.b32.xlu0 %v3146, 96
    %v3148 = vpop.permute.xlu0 %3147
    %v3150 = vsel %vm369, %v3143, %v3148
    %v3151 = vld [vmem:[%s14] sm:$0xff]
    %v3152 = vld [vmem:[%s14 + $0x8] sm:$0xff]
    %v3153 = vld [vmem:[%s14 + $0x10] sm:$0xff]
    %v3154 = vld [vmem:[%s14 + $0x18] sm:$0xff]
    %v3155 = vld [vmem:[%s14 + $0x20] sm:$0xff]
    %v3156 = vld [vmem:[%s14 + $0x28] sm:$0xff]
    %v3157 = vld [vmem:[%s14 + $0x30] sm:$0xff]
    %v3158 = vld [vmem:[%s14 + $0x38] sm:$0xff]
    %v3159 = vld [vmem:[%s15] sm:$0x1]
    %v3161 = vlaneseq
    %v3162 = vshrl.u32 %v3161, 7
    %v3163 = vsub.s32 0, %v3162
    %v3164 = vrot.slane %v3159, %v3163
    %v3167 = vsel %vm1677, %v3150, 0
    %3169 = vmatprep.subr.mxu0 0.0
    %3170 = vmatpush1.msra.mxu0 %v3151
    %3171 = vmatprep.subr.mxu0 0.0
    %3172 = vmatpush1.msra.mxu0 %v3152
    %3173 = vmatprep.subr.mxu0 0.0
    %3174 = vmatpush1.msra.mxu0 %v3153
    %3175 = vmatprep.subr.mxu0 0.0
    %3176 = vmatpush1.msra.mxu0 %v3154
    %3177 = vmatprep.subr.mxu0 0.0
    %3178 = vmatpush1.msra.mxu0 %v3155
    %3179 = vmatprep.subr.mxu0 0.0
    %3180 = vmatpush1.msra.mxu0 %v3156
    %3181 = vmatprep.subr.mxu0 0.0
    %3182 = vmatpush1.msra.mxu0 %v3157
    %3183 = vmatprep.subr.mxu0 0.0
    %3184 = vmatpush1.msra.mxu0 %v3158
    %3185 = vmatprep.subr.mxu0 0.0
    %3186 = vmatpush1.msra.mxu0 0.0
    %3187 = vmatprep.subr.mxu0 0.0
    %3188 = vmatpush1.msra.mxu0 0.0
    %3189 = vmatprep.subr.mxu0 0.0
    %3190 = vmatpush1.msra.mxu0 0.0
    %3191 = vmatprep.subr.mxu0 0.0
    %3192 = vmatpush1.msra.mxu0 0.0
    %3193 = vmatprep.subr.mxu0 0.0
    %3194 = vmatpush1.msra.mxu0 0.0
    %3195 = vmatprep.subr.mxu0 0.0
    %3196 = vmatpush1.msra.mxu0 0.0
    %3197 = vmatprep.subr.mxu0 0.0
    %3198 = vmatpush1.msra.mxu0 0.0
    %3199 = vmatprep.subr.mxu0 0.0
    %3200 = vmatpush1.msra.mxu0 0.0
    %3201 = vmatprep.subr.mxu0 0.0
    %3202 = vmatpush1.msra.mxu0 0.0
    %3203 = vmatprep.subr.mxu0 0.0
    %3204 = vmatpush1.msra.mxu0 0.0
    %3205 = vmatprep.subr.mxu0 0.0
    %3206 = vmatpush1.msra.mxu0 0.0
    %3207 = vmatprep.subr.mxu0 0.0
    %3208 = vmatpush1.msra.mxu0 0.0
    %3209 = vmatprep.subr.mxu0 0.0
    %3210 = vmatpush1.msra.mxu0 0.0
    %3211 = vmatprep.subr.mxu0 0.0
    %3212 = vmatpush1.msra.mxu0 0.0
    %3213 = vmatprep.subr.mxu0 0.0
    %3214 = vmatpush1.msra.mxu0 0.0
    %3215 = vmatprep.subr.mxu0 0.0
    %3216 = vmatpush1.msra.mxu0 0.0
    %3217 = vmatprep.subr.mxu0 0.0
    %3218 = vmatpush1.msra.mxu0 0.0
    %3219 = vmatprep.subr.mxu0 0.0
    %3220 = vmatpush1.msra.mxu0 0.0
    %3221 = vmatprep.subr.mxu0 0.0
    %3222 = vmatpush1.msra.mxu0 0.0
    %3223 = vmatprep.subr.mxu0 0.0
    %3224 = vmatpush1.msra.mxu0 0.0
    %3225 = vmatprep.subr.mxu0 0.0
    %3226 = vmatpush1.msra.mxu0 0.0
    %3227 = vmatprep.subr.mxu0 0.0
    %3228 = vmatpush1.msra.mxu0 0.0
    %3229 = vmatprep.subr.mxu0 0.0
    %3230 = vmatpush1.msra.mxu0 0.0
    %3231 = vmatprep.subr.mxu0 0.0
    %3232 = vmatpush1.msra.mxu0 0.0
    %3233 = vmatprep.mubr.f32.mxu0 0.0
    %3234 = vmatmul.mubr.f32.gmra.mrb[0].mxu0 %v3167
    %v3235 = vpop.f32.mrb[0].mxu0
    %v3236 = vadd.f32 %v3164, %v3235
    %v3237 = vpop.f32.mrb[0].mxu0
    %3238 = vdwg.mxu0
    %vm3239 = vcmask 254976
    %3240 = vst.msk [vmem:[#allocation2] sm:$0x3] %vm3239, %v3236
    // Predicated region
    $region66: #{bilstm_kmer_branch.1} parent=1 // pred_check
      _
    $region67: #{bilstm_kmer_branch.1} parent=1 // pred_check_branch
      %3242 = sbr.rel (0) target = $region69
    $region68: #{bilstm_kmer_branch.1} parent=1 // pred_region
      %s3244 = ssub.s32 32, 32
      %3245 = vsyncadd [#allocation3], %s3244
      %s3247 = sshll.u32 [#allocation2], 4
      %s3248 = int_to_ptr.vmem [resolvable:$true] %s3247
      %3250 = dma.vmem_to_hbm [thread:$0]  %s3248, 32, %s16, [#allocation3]
    $region69: #{bilstm_kmer_branch.1} parent=1 // pred_fallthru
      _
    // Predicated region
    $region70: #{bilstm_kmer_branch.1} parent=1 // pred_check
      _
    $region71: #{bilstm_kmer_branch.1} parent=1 // pred_check_branch
      %3252 = sbr.rel (0) target = $region73
    $region72: #{bilstm_kmer_branch.1} parent=1 // pred_region
      %3253 = dma.done [#allocation3], 32
    $region73: #{bilstm_kmer_branch.1} parent=1 // pred_fallthru
      _
    %3254 = vsyncpa [#allocation3], 1

</llo_original>
